<compile_context>
chip_gen: v7x
topology: tpu7x:2x2x1
jax: 0.10.0
libtpu: 0.0.40
codegen_flags: <defaults>
</compile_context>

<pallas_src>
import functools

import jax
import jax.numpy as jnp
from jax.experimental import pallas as pl
from jax.experimental.pallas import tpu as pltpu


def _round_up(x, m):
    return (x + m - 1) // m * m


def _pick_tile_h(h, w, target_rows=1024):
    """Largest divisor of `h` whose GEMM row tile (tile_h * w) stays under
    `target_rows` and keeps the output block sublane-aligned (tile_h*w % 8 == 0
    unless the tile covers the whole image)."""
    cands = [d for d in range(1, h + 1)
             if h % d == 0 and d * w <= target_rows
             and (d == h or (d * w) % 8 == 0)]
    if cands:
        return max(cands)
    cands = [d for d in range(1, h + 1)
             if h % d == 0 and (d == h or (d * w) % 8 == 0)]
    return min(cands) if cands else h


def _pick_tile_n(n_out):
    """Column tile: full width when modest, else a multiple of 128 that divides
    n_out, bounding the double-buffered output tile (matters on v7x VMEM)."""
    if n_out <= 2048:
        return n_out
    for t in (1024, 512, 256, 128):
        if n_out % t == 0:
            return t
    return n_out


# --------------------------------------------------------------------------- #
# Pallas kernel: in-VMEM im2col (9 shifted views) + 9 accumulating MXU dots    #
# against the parity-packed weight, fused BN shift epilogue, bf16 store.       #
# --------------------------------------------------------------------------- #
def _convt_bn_kernel(xp_ref, w_ref, shift_ref, o_ref, *, tile_h, img_w, c_in):
    # xp_ref:    (H+2, W+2, C_in)   padded NHWC image (resident per batch), bf16
    # w_ref:     (9, C_in, tile_n)  per-tap packed weight (BN scale folded), bf16
    # shift_ref: (1, tile_n)        folded conv-bias + BN shift, f32
    # o_ref:     (tile_m, tile_n)   bf16 output tile, tile_m = tile_h * W
    r0 = pl.program_id(1) * tile_h
    tile_m, tile_n = o_ref.shape
    acc = jnp.zeros((tile_m, tile_n), jnp.float32)
    for dy in range(3):
        for dx in range(3):
            x_tap = xp_ref[pl.ds(r0 + dy, tile_h), pl.ds(dx, img_w), :]
            x_tap = x_tap.reshape(tile_m, c_in)          # merge leading dims only
            acc = acc + jnp.dot(x_tap, w_ref[dy * 3 + dx],
                                preferred_element_type=jnp.float32)
    o_ref[...] = (acc + shift_ref[...]).astype(o_ref.dtype)


# --------------------------------------------------------------------------- #
# Trace-time weight packing (no heavy compute).                                #
# --------------------------------------------------------------------------- #
def _pack_weights(w, b, gamma, beta, mean, var, c_grp, eps=1e-5):
    """Pack ConvTranspose weight (C_in, C_out, 4, 4) into a per-tap GEMM weight
    (9, C_in, 4*c_grp): one C_out-wide column block per output parity (py, px),
    BN scale folded in.  Returns (bf16 weight, f32 shift)."""
    c_in, c_out = w.shape[0], w.shape[1]
    scale = gamma / jnp.sqrt(var + eps)                    # (C_out,)
    shift = beta + (b - mean) * scale                      # (C_out,)

    w_big = jnp.zeros((9, c_in, 4 * c_grp), jnp.float32)
    shift_big = jnp.zeros((1, 4 * c_grp), jnp.float32)
    for p_idx, (py, px) in enumerate(((0, 0), (0, 1), (1, 0), (1, 1))):
        col0 = p_idx * c_grp
        shift_big = shift_big.at[0, col0:col0 + c_out].set(shift)
        for ky in range(4):
            if (py + 1 - ky) % 2:          # oy parity selects ky parity
                continue
            dy = (py + 1 - ky) // 2 + 1    # row offset into the padded input
            for kx in range(4):
                if (px + 1 - kx) % 2:
                    continue
                dx = (px + 1 - kx) // 2 + 1
                tap = dy * 3 + dx
                blk = w[:, :, ky, kx] * scale[None, :]     # (C_in, C_out)
                w_big = w_big.at[tap, :, col0:col0 + c_out].set(blk)
    return w_big.astype(jnp.bfloat16), shift_big


# --------------------------------------------------------------------------- #
# Forward pass: NCHW in, NCHW out (PyTorch convention).                        #
# --------------------------------------------------------------------------- #
def upsample_forward(x_nchw, params, *, eps=1e-5):
    w, b = params["convt"]                       # (C_in, C_out, 4, 4), (C_out,)
    gamma, beta, mean, var = params["bn"]
    c_in, c_out = w.shape[0], w.shape[1]
    n, _, h, wd = x_nchw.shape

    c_grp = _round_up(c_out, 32)                 # 4*c_grp is a multiple of 128
    n_out = 4 * c_grp

    # 1x activation HBM traffic: NCHW -> padded NHWC, bf16 (MXU operand dtype).
    x = jnp.transpose(x_nchw, (0, 2, 3, 1)).astype(jnp.bfloat16)
    xp = jnp.pad(x, ((0, 0), (1, 1), (1, 1), (0, 0)))      # (N, H+2, W+2, C_in)

    w_big, shift_big = _pack_weights(w, b, gamma, beta, mean, var, c_grp, eps)

    tile_h = _pick_tile_h(h, wd)
    tile_m = tile_h * wd
    tile_n = _pick_tile_n(n_out)
    grid = (n, h // tile_h, n_out // tile_n)

    kernel = functools.partial(_convt_bn_kernel,
                               tile_h=tile_h, img_w=wd, c_in=c_in)

    # Double-buffered per-step VMEM estimate; only raise the scoped limit when
    # it actually gets large (big images / out_dim) -- relevant on v7x (64 MiB).
    est = 2 * ((h + 2) * (wd + 2) * c_in * 2        # padded image block (bf16)
               + 9 * c_in * tile_n * 2              # weight block (bf16)
               + tile_m * tile_n * 2) + tile_n * 4  # out block (bf16) + shift
    cp_kwargs = dict(dimension_semantics=("parallel", "parallel", "parallel"))
    if est > 12 * 1024 * 1024:
        cp_kwargs["vmem_limit_bytes"] = min(2 * est, 64 * 1024 * 1024)

    out = pl.pallas_call(
        kernel,
        out_shape=jax.ShapeDtypeStruct((n, h * wd, n_out), jnp.bfloat16),
        grid=grid,
        in_specs=[
            # Whole padded image per batch, resident across row/col tiles.
            pl.BlockSpec((None, h + 2, wd + 2, c_in),
                         lambda b_, i, j: (b_, 0, 0, 0)),
            pl.BlockSpec((9, c_in, tile_n), lambda b_, i, j: (0, 0, j)),
            pl.BlockSpec((1, tile_n), lambda b_, i, j: (0, j)),
        ],
        out_specs=pl.BlockSpec((None, tile_m, tile_n),
                               lambda b_, i, j: (b_, i, j)),
        compiler_params=pltpu.CompilerParams(**cp_kwargs),
    )(xp, w_big, shift_big)

    # Single-pass epilogue: parity de-interleave + NHWC->NCHW in ONE transpose,
    # with the f32 cast fused into it (PyTorch returns f32).
    out = out.reshape(n, h, wd, 2, 2, c_grp)[..., :c_out]   # (N,H,W,py,px,C)
    out = jnp.transpose(out, (0, 5, 1, 3, 2, 4))            # (N,C,H,py,W,px)
    return out.reshape(n, c_out, 2 * h, 2 * wd).astype(jnp.float32)


# --------------------------------------------------------------------------- #
# Parameters & pure-JAX reference.                                             #
# --------------------------------------------------------------------------- #
def init_upsample_params(key, in_dim, out_dim):
    k1, k2, k3, k4, k5, k6 = jax.random.split(key, 6)
    fan_in = in_dim * 16
    w = jax.random.normal(k1, (in_dim, out_dim, 4, 4), jnp.float32) / jnp.sqrt(fan_in)
    b = 0.01 * jax.random.normal(k2, (out_dim,), jnp.float32)
    gamma = 1.0 + 0.1 * jax.random.normal(k3, (out_dim,), jnp.float32)
    beta = 0.1 * jax.random.normal(k4, (out_dim,), jnp.float32)
    mean = 0.1 * jax.random.normal(k5, (out_dim,), jnp.float32)
    var = 0.5 + jax.random.uniform(k6, (out_dim,), jnp.float32)
    return {"convt": (w, b), "bn": (gamma, beta, mean, var)}


def _reference_forward(x_nchw, params, eps=1e-5):
    """ConvTranspose2d(4,2,1) + eval-mode BN via input dilation + flipped kernel."""
    w, b = params["convt"]
    gamma, beta, mean, var = params["bn"]
    w_conv = jnp.transpose(jnp.flip(w, axis=(2, 3)), (1, 0, 2, 3))   # OIHW
    y = jax.lax.conv_general_dilated(
        x_nchw, w_conv, window_strides=(1, 1), padding=((2, 2), (2, 2)),
        lhs_dilation=(2, 2), dimension_numbers=("NCHW", "OIHW", "NCHW"))
    y = y + b[None, :, None, None]
    y = (y - mean[None, :, None, None]) / jnp.sqrt(var[None, :, None, None] + eps)
    y = y * gamma[None, :, None, None] + beta[None, :, None, None]
    return y


if __name__ == "__main__":
    key = jax.random.PRNGKey(0)
    k_x, k_p = jax.random.split(key)

    # Small shapes consistent with the module: batch=2, in_dim=4, img=16, out_dim=32.
    N, C_IN, IMG, C_OUT = 2, 4, 16, 32
    x = jax.random.normal(k_x, (N, C_IN, IMG, IMG), jnp.float32)
    params = init_upsample_params(k_p, C_IN, C_OUT)

    out = jax.block_until_ready(jax.jit(upsample_forward)(x, params))

    expected_shape = (N, C_OUT, 2 * IMG, 2 * IMG)
    assert out.shape == expected_shape, (out.shape, expected_shape)

    ref = _reference_forward(x, params)
    max_err = float(jnp.max(jnp.abs(out - ref)))
    assert jnp.allclose(out, ref, rtol=2e-2, atol=2e-2), max_err

    print("KERNEL_OK")
</pallas_src>

<mosaic_0001>
module attributes {stable_mosaic.version = 11 : i64} {
  func.func @_convt_bn_kernel(%arg0: i32, %arg1: i32, %arg2: i32, %arg3: memref<1x18x18x4xbf16, #tpu.memory_space<vmem>>, %arg4: memref<9x4x128xbf16, #tpu.memory_space<vmem>>, %arg5: memref<1x128xf32, #tpu.memory_space<vmem>>, %arg6: memref<1x256x128xbf16, #tpu.memory_space<vmem>>) attributes {dimension_semantics = [#tpu.dimension_semantics<parallel>, #tpu.dimension_semantics<parallel>, #tpu.dimension_semantics<parallel>], iteration_bounds = array<i64: 2, 1, 1>, scalar_prefetch = 0 : i64, scratch_operands = 0 : i64, tpu.core_type = #tpu.core_type<tc>, window_params = [{transform_indices = @transform_0, window_bounds = array<i64: 1, 18, 18, 4>}, {transform_indices = @transform_1, window_bounds = array<i64: 9, 4, 128>}, {transform_indices = @transform_2, window_bounds = array<i64: 1, 128>}, {transform_indices = @transform_3, window_bounds = array<i64: 1, 256, 128>}]} {
    %c16_i32 = arith.constant 16 : i32
    %0 = arith.muli %arg1, %c16_i32 : i32
    %cst = arith.constant 0.000000e+00 : f32
    %1 = vector.broadcast %cst : f32 to vector<256x128xf32>
    %c0_i32 = arith.constant 0 : i32
    %2 = arith.addi %0, %c0_i32 : i32
    %c0 = arith.constant 0 : index
    %3 = arith.index_cast %2 : i32 to index
    %c0_0 = arith.constant 0 : index
    %c0_1 = arith.constant 0 : index
    %4 = vector.load %arg3[%c0, %3, %c0_0, %c0_1] : memref<1x18x18x4xbf16, #tpu.memory_space<vmem>>, vector<1x16x16x4xbf16>
    %5 = vector.shape_cast %4 : vector<1x16x16x4xbf16> to vector<16x16x4xbf16>
    %6 = vector.shape_cast %5 : vector<16x16x4xbf16> to vector<256x4xbf16>
    %c0_2 = arith.constant 0 : index
    %c0_3 = arith.constant 0 : index
    %c0_4 = arith.constant 0 : index
    %7 = vector.load %arg4[%c0_2, %c0_3, %c0_4] : memref<9x4x128xbf16, #tpu.memory_space<vmem>>, vector<1x4x128xbf16>
    %8 = vector.shape_cast %7 : vector<1x4x128xbf16> to vector<4x128xbf16>
    %cst_5 = arith.constant dense<0.000000e+00> : vector<256x128xf32>
    %9 = tpu.matmul %6, %8, %cst_5 {dimension_numbers = #tpu.dot_dimension_numbers<[1], [0], [0], [1], [0, 0, 1, 1], [], []>} : vector<256x4xbf16>, vector<4x128xbf16>, vector<256x128xf32> -> vector<256x128xf32>
    %10 = arith.addf %1, %9 : vector<256x128xf32>
    %c0_i32_6 = arith.constant 0 : i32
    %11 = arith.addi %0, %c0_i32_6 : i32
    %c0_7 = arith.constant 0 : index
    %12 = arith.index_cast %11 : i32 to index
    %c1 = arith.constant 1 : index
    %c0_8 = arith.constant 0 : index
    %13 = vector.load %arg3[%c0_7, %12, %c1, %c0_8] : memref<1x18x18x4xbf16, #tpu.memory_space<vmem>>, vector<1x16x16x4xbf16>
    %14 = vector.shape_cast %13 : vector<1x16x16x4xbf16> to vector<16x16x4xbf16>
    %15 = vector.shape_cast %14 : vector<16x16x4xbf16> to vector<256x4xbf16>
    %c1_9 = arith.constant 1 : index
    %c0_10 = arith.constant 0 : index
    %c0_11 = arith.constant 0 : index
    %16 = vector.load %arg4[%c1_9, %c0_10, %c0_11] : memref<9x4x128xbf16, #tpu.memory_space<vmem>>, vector<1x4x128xbf16>
    %17 = vector.shape_cast %16 : vector<1x4x128xbf16> to vector<4x128xbf16>
    %cst_12 = arith.constant dense<0.000000e+00> : vector<256x128xf32>
    %18 = tpu.matmul %15, %17, %cst_12 {dimension_numbers = #tpu.dot_dimension_numbers<[1], [0], [0], [1], [0, 0, 1, 1], [], []>} : vector<256x4xbf16>, vector<4x128xbf16>, vector<256x128xf32> -> vector<256x128xf32>
    %19 = arith.addf %10, %18 : vector<256x128xf32>
    %c0_i32_13 = arith.constant 0 : i32
    %20 = arith.addi %0, %c0_i32_13 : i32
    %c0_14 = arith.constant 0 : index
    %21 = arith.index_cast %20 : i32 to index
    %c2 = arith.constant 2 : index
    %c0_15 = arith.constant 0 : index
    %22 = vector.load %arg3[%c0_14, %21, %c2, %c0_15] : memref<1x18x18x4xbf16, #tpu.memory_space<vmem>>, vector<1x16x16x4xbf16>
    %23 = vector.shape_cast %22 : vector<1x16x16x4xbf16> to vector<16x16x4xbf16>
    %24 = vector.shape_cast %23 : vector<16x16x4xbf16> to vector<256x4xbf16>
    %c2_16 = arith.constant 2 : index
    %c0_17 = arith.constant 0 : index
    %c0_18 = arith.constant 0 : index
    %25 = vector.load %arg4[%c2_16, %c0_17, %c0_18] : memref<9x4x128xbf16, #tpu.memory_space<vmem>>, vector<1x4x128xbf16>
    %26 = vector.shape_cast %25 : vector<1x4x128xbf16> to vector<4x128xbf16>
    %cst_19 = arith.constant dense<0.000000e+00> : vector<256x128xf32>
    %27 = tpu.matmul %24, %26, %cst_19 {dimension_numbers = #tpu.dot_dimension_numbers<[1], [0], [0], [1], [0, 0, 1, 1], [], []>} : vector<256x4xbf16>, vector<4x128xbf16>, vector<256x128xf32> -> vector<256x128xf32>
    %28 = arith.addf %19, %27 : vector<256x128xf32>
    %c1_i32 = arith.constant 1 : i32
    %29 = arith.addi %0, %c1_i32 : i32
    %c0_20 = arith.constant 0 : index
    %30 = arith.index_cast %29 : i32 to index
    %c0_21 = arith.constant 0 : index
    %c0_22 = arith.constant 0 : index
    %31 = vector.load %arg3[%c0_20, %30, %c0_21, %c0_22] : memref<1x18x18x4xbf16, #tpu.memory_space<vmem>>, vector<1x16x16x4xbf16>
    %32 = vector.shape_cast %31 : vector<1x16x16x4xbf16> to vector<16x16x4xbf16>
    %33 = vector.shape_cast %32 : vector<16x16x4xbf16> to vector<256x4xbf16>
    %c3 = arith.constant 3 : index
    %c0_23 = arith.constant 0 : index
    %c0_24 = arith.constant 0 : index
    %34 = vector.load %arg4[%c3, %c0_23, %c0_24] : memref<9x4x128xbf16, #tpu.memory_space<vmem>>, vector<1x4x128xbf16>
    %35 = vector.shape_cast %34 : vector<1x4x128xbf16> to vector<4x128xbf16>
    %cst_25 = arith.constant dense<0.000000e+00> : vector<256x128xf32>
    %36 = tpu.matmul %33, %35, %cst_25 {dimension_numbers = #tpu.dot_dimension_numbers<[1], [0], [0], [1], [0, 0, 1, 1], [], []>} : vector<256x4xbf16>, vector<4x128xbf16>, vector<256x128xf32> -> vector<256x128xf32>
    %37 = arith.addf %28, %36 : vector<256x128xf32>
    %c1_i32_26 = arith.constant 1 : i32
    %38 = arith.addi %0, %c1_i32_26 : i32
    %c0_27 = arith.constant 0 : index
    %39 = arith.index_cast %38 : i32 to index
    %c1_28 = arith.constant 1 : index
    %c0_29 = arith.constant 0 : index
    %40 = vector.load %arg3[%c0_27, %39, %c1_28, %c0_29] : memref<1x18x18x4xbf16, #tpu.memory_space<vmem>>, vector<1x16x16x4xbf16>
    %41 = vector.shape_cast %40 : vector<1x16x16x4xbf16> to vector<16x16x4xbf16>
    %42 = vector.shape_cast %41 : vector<16x16x4xbf16> to vector<256x4xbf16>
    %c4 = arith.constant 4 : index
    %c0_30 = arith.constant 0 : index
    %c0_31 = arith.constant 0 : index
    %43 = vector.load %arg4[%c4, %c0_30, %c0_31] : memref<9x4x128xbf16, #tpu.memory_space<vmem>>, vector<1x4x128xbf16>
    %44 = vector.shape_cast %43 : vector<1x4x128xbf16> to vector<4x128xbf16>
    %cst_32 = arith.constant dense<0.000000e+00> : vector<256x128xf32>
    %45 = tpu.matmul %42, %44, %cst_32 {dimension_numbers = #tpu.dot_dimension_numbers<[1], [0], [0], [1], [0, 0, 1, 1], [], []>} : vector<256x4xbf16>, vector<4x128xbf16>, vector<256x128xf32> -> vector<256x128xf32>
    %46 = arith.addf %37, %45 : vector<256x128xf32>
    %c1_i32_33 = arith.constant 1 : i32
    %47 = arith.addi %0, %c1_i32_33 : i32
    %c0_34 = arith.constant 0 : index
    %48 = arith.index_cast %47 : i32 to index
    %c2_35 = arith.constant 2 : index
    %c0_36 = arith.constant 0 : index
    %49 = vector.load %arg3[%c0_34, %48, %c2_35, %c0_36] : memref<1x18x18x4xbf16, #tpu.memory_space<vmem>>, vector<1x16x16x4xbf16>
    %50 = vector.shape_cast %49 : vector<1x16x16x4xbf16> to vector<16x16x4xbf16>
    %51 = vector.shape_cast %50 : vector<16x16x4xbf16> to vector<256x4xbf16>
    %c5 = arith.constant 5 : index
    %c0_37 = arith.constant 0 : index
    %c0_38 = arith.constant 0 : index
    %52 = vector.load %arg4[%c5, %c0_37, %c0_38] : memref<9x4x128xbf16, #tpu.memory_space<vmem>>, vector<1x4x128xbf16>
    %53 = vector.shape_cast %52 : vector<1x4x128xbf16> to vector<4x128xbf16>
    %cst_39 = arith.constant dense<0.000000e+00> : vector<256x128xf32>
    %54 = tpu.matmul %51, %53, %cst_39 {dimension_numbers = #tpu.dot_dimension_numbers<[1], [0], [0], [1], [0, 0, 1, 1], [], []>} : vector<256x4xbf16>, vector<4x128xbf16>, vector<256x128xf32> -> vector<256x128xf32>
    %55 = arith.addf %46, %54 : vector<256x128xf32>
    %c2_i32 = arith.constant 2 : i32
    %56 = arith.addi %0, %c2_i32 : i32
    %c0_40 = arith.constant 0 : index
    %57 = arith.index_cast %56 : i32 to index
    %c0_41 = arith.constant 0 : index
    %c0_42 = arith.constant 0 : index
    %58 = vector.load %arg3[%c0_40, %57, %c0_41, %c0_42] : memref<1x18x18x4xbf16, #tpu.memory_space<vmem>>, vector<1x16x16x4xbf16>
    %59 = vector.shape_cast %58 : vector<1x16x16x4xbf16> to vector<16x16x4xbf16>
    %60 = vector.shape_cast %59 : vector<16x16x4xbf16> to vector<256x4xbf16>
    %c6 = arith.constant 6 : index
    %c0_43 = arith.constant 0 : index
    %c0_44 = arith.constant 0 : index
    %61 = vector.load %arg4[%c6, %c0_43, %c0_44] : memref<9x4x128xbf16, #tpu.memory_space<vmem>>, vector<1x4x128xbf16>
    %62 = vector.shape_cast %61 : vector<1x4x128xbf16> to vector<4x128xbf16>
    %cst_45 = arith.constant dense<0.000000e+00> : vector<256x128xf32>
    %63 = tpu.matmul %60, %62, %cst_45 {dimension_numbers = #tpu.dot_dimension_numbers<[1], [0], [0], [1], [0, 0, 1, 1], [], []>} : vector<256x4xbf16>, vector<4x128xbf16>, vector<256x128xf32> -> vector<256x128xf32>
    %64 = arith.addf %55, %63 : vector<256x128xf32>
    %c2_i32_46 = arith.constant 2 : i32
    %65 = arith.addi %0, %c2_i32_46 : i32
    %c0_47 = arith.constant 0 : index
    %66 = arith.index_cast %65 : i32 to index
    %c1_48 = arith.constant 1 : index
    %c0_49 = arith.constant 0 : index
    %67 = vector.load %arg3[%c0_47, %66, %c1_48, %c0_49] : memref<1x18x18x4xbf16, #tpu.memory_space<vmem>>, vector<1x16x16x4xbf16>
    %68 = vector.shape_cast %67 : vector<1x16x16x4xbf16> to vector<16x16x4xbf16>
    %69 = vector.shape_cast %68 : vector<16x16x4xbf16> to vector<256x4xbf16>
    %c7 = arith.constant 7 : index
    %c0_50 = arith.constant 0 : index
    %c0_51 = arith.constant 0 : index
    %70 = vector.load %arg4[%c7, %c0_50, %c0_51] : memref<9x4x128xbf16, #tpu.memory_space<vmem>>, vector<1x4x128xbf16>
    %71 = vector.shape_cast %70 : vector<1x4x128xbf16> to vector<4x128xbf16>
    %cst_52 = arith.constant dense<0.000000e+00> : vector<256x128xf32>
    %72 = tpu.matmul %69, %71, %cst_52 {dimension_numbers = #tpu.dot_dimension_numbers<[1], [0], [0], [1], [0, 0, 1, 1], [], []>} : vector<256x4xbf16>, vector<4x128xbf16>, vector<256x128xf32> -> vector<256x128xf32>
    %73 = arith.addf %64, %72 : vector<256x128xf32>
    %c2_i32_53 = arith.constant 2 : i32
    %74 = arith.addi %0, %c2_i32_53 : i32
    %c0_54 = arith.constant 0 : index
    %75 = arith.index_cast %74 : i32 to index
    %c2_55 = arith.constant 2 : index
    %c0_56 = arith.constant 0 : index
    %76 = vector.load %arg3[%c0_54, %75, %c2_55, %c0_56] : memref<1x18x18x4xbf16, #tpu.memory_space<vmem>>, vector<1x16x16x4xbf16>
    %77 = vector.shape_cast %76 : vector<1x16x16x4xbf16> to vector<16x16x4xbf16>
    %78 = vector.shape_cast %77 : vector<16x16x4xbf16> to vector<256x4xbf16>
    %c8 = arith.constant 8 : index
    %c0_57 = arith.constant 0 : index
    %c0_58 = arith.constant 0 : index
    %79 = vector.load %arg4[%c8, %c0_57, %c0_58] : memref<9x4x128xbf16, #tpu.memory_space<vmem>>, vector<1x4x128xbf16>
    %80 = vector.shape_cast %79 : vector<1x4x128xbf16> to vector<4x128xbf16>
    %cst_59 = arith.constant dense<0.000000e+00> : vector<256x128xf32>
    %81 = tpu.matmul %78, %80, %cst_59 {dimension_numbers = #tpu.dot_dimension_numbers<[1], [0], [0], [1], [0, 0, 1, 1], [], []>} : vector<256x4xbf16>, vector<4x128xbf16>, vector<256x128xf32> -> vector<256x128xf32>
    %82 = arith.addf %73, %81 : vector<256x128xf32>
    %c0_60 = arith.constant 0 : index
    %c0_61 = arith.constant 0 : index
    %83 = vector.load %arg5[%c0_60, %c0_61] : memref<1x128xf32, #tpu.memory_space<vmem>>, vector<1x128xf32>
    %84 = vector.broadcast %83 : vector<1x128xf32> to vector<256x128xf32>
    %85 = arith.addf %82, %84 : vector<256x128xf32>
    %86 = arith.truncf %85 : vector<256x128xf32> to vector<256x128xbf16>
    %c0_62 = arith.constant 0 : index
    %c0_63 = arith.constant 0 : index
    %c0_64 = arith.constant 0 : index
    %87 = vector.load %arg6[%c0_62, %c0_63, %c0_64] : memref<1x256x128xbf16, #tpu.memory_space<vmem>>, vector<1x256x128xbf16>
    %88 = vector.shape_cast %87 : vector<1x256x128xbf16> to vector<256x128xbf16>
    %89 = vector.shape_cast %86 : vector<256x128xbf16> to vector<1x256x128xbf16>
    tpu.vector_store %arg6[%c0_62, %c0_63, %c0_64], %89 {strides = array<i32>} : memref<1x256x128xbf16, #tpu.memory_space<vmem>>, vector<1x256x128xbf16>,
    return
  }
  func.func @transform_0(%arg0: i32, %arg1: i32, %arg2: i32) -> (i32, i32, i32, i32) {
    %c0_i32 = arith.constant 0 : i32
    %c0_i32_0 = arith.constant 0 : i32
    %c0_i32_1 = arith.constant 0 : i32
    %c0_i32_2 = arith.constant 0 : i32
    return %arg0, %c0_i32, %c0_i32_0, %c0_i32_1 : i32, i32, i32, i32
  }
  func.func @transform_1(%arg0: i32, %arg1: i32, %arg2: i32) -> (i32, i32, i32) {
    %c0_i32 = arith.constant 0 : i32
    %c0_i32_0 = arith.constant 0 : i32
    %c0_i32_1 = arith.constant 0 : i32
    return %c0_i32, %c0_i32_0, %arg2 : i32, i32, i32
  }
  func.func @transform_2(%arg0: i32, %arg1: i32, %arg2: i32) -> (i32, i32) {
    %c0_i32 = arith.constant 0 : i32
    %c0_i32_0 = arith.constant 0 : i32
    return %c0_i32, %arg2 : i32, i32
  }
  func.func @transform_3(%arg0: i32, %arg1: i32, %arg2: i32) -> (i32, i32, i32) {
    %c0_i32 = arith.constant 0 : i32
    return %arg0, %arg1, %arg2 : i32, i32, i32
  }
}

</mosaic_0001>

<llo_original>
// kernel: upsample_forward.1
$region0: #{upsample_forward.1}
  #allocation0 [shape = 'u32[]', space=smem, size = 0x4, offset = 0x4, fixed_abs, tag = 'smem constant byte address 0x4 - core index']
  #allocation1 [shape = 'u32[144,128]{1,0:T(1,128)}', space=vmem, size = 0x12000, scoped, tag = 'internal scratch']
  %s0 = inlined_call_operand.vmem [shape: bf16[2,18,18,4], index: 0, kind: input, shape index: {}]
  %s1 = inlined_call_operand.vmem [shape: bf16[9,4,128], index: 1, kind: input, shape index: {}]
  %s2 = inlined_call_operand.vmem [shape: f32[1,128], index: 2, kind: input, shape index: {}]
  %s3 = inlined_call_operand.vmem [shape: bf16[2,256,128], index: 3, kind: output, shape index: {}]
  %s4 = sld [smem:[#allocation0]]
  $region45: #{upsample_forward.1} parent=0
    _
  %s6 = ssub.s32 1, %s4
  %s7 = scalar_select 0, %s6, %s4
  loop: start=0, step=1, limit=4
  $region2: #{upsample_forward.1} parent=0 // loop_pre_header
    _
  $region3: #{upsample_forward.1} parent=0 // loop_header
    %s9 = sphi 0, %s13
    %p10 = scmp.ge.s32.totalorder %s9, 4
    %s16 = sphi 0, %s35
    %s17 = sphi 0, %s31
    %s18 = sphi 0, %s27
    %s19 = sphi 0, %s16
    %s20 = sphi 0, %s17
    %s21 = sphi 0, %s18
    %s22 = sphi 0, %s19
    %s23 = sphi 0, %s20
    %s24 = sphi 0, %s21
    %s38 = sphi 0, %s40
    %s41 = sphi 0, %s38
    %s42 = sphi 0, %s41
    %s58 = sphi 0, %s42
    %s64 = sphi 0, %s66
    %s67 = sphi 0, %s64
    %s68 = sphi 0, %s67
    %s84 = sphi 0, %s68
    %s90 = sphi 0, %s92
    %s93 = sphi 0, %s90
    %s94 = sphi 0, %s93
    %s110 = sphi 0, %s94
    %s120 = sphi 0, %s122
    %s123 = sphi 0, %s120
    %s124 = sphi 0, %s123
    %s140 = sphi 0, %s124
  $region4: #{upsample_forward.1} parent=0 // loop_header_branch
    %12 = sbr.rel (%p10) target = $region8
  $region5: #{upsample_forward.1} parent=0 // loop_body
    %s14 = ssub.s32 %s9, 1
    %s15 = ssub.s32 %s9, 2
    %s25 = sadd.s32 1, %s18
    %p26 = scmp.ge.s32.totalorder %s25, 1
    %s27 = scalar_select %p26, 0, %s25
    %s28 = sadd.s32 1, %s17
    %s29 = scalar_select %p26, %s28, %s17
    %p30 = scmp.ge.s32.totalorder %s29, 1
    %s31 = scalar_select %p30, 0, %s29
    %s32 = sadd.s32 1, %s16
    %s33 = scalar_select %p30, %s32, %s16
    %p34 = scmp.ge.s32.totalorder %s33, 2
    %s35 = scalar_select %p34, 0, %s33
    %s36 = ssub.s32 %s16, %s35
    %p37 = scmp.eq.s32.totalorder %s36, 0
    %s39 = sadd.s32 %s38, 1
    %s40 = scalar_select %p37, %s38, %s39
    %p43 = pneg %p37
    %p44 = scmp.eq.s32.totalorder %s9, 1
    %p45 = por %p43, %p44
    %p46 = scmp.ne.s32.totalorder %s38, %s41
    %p47 = scmp.eq.s32.totalorder %s9, 0
    %p48 = por %p46, %p47
    %p49 = scmp.ne.s32.totalorder %s38, %s41
    %p50 = scmp.eq.s32.totalorder %s14, 1
    %p51 = por %p49, %p50
    %p52 = scmp.ne.s32.totalorder %s41, %s42
    %p53 = scmp.eq.s32.totalorder %s14, 0
    %p54 = por %p52, %p53
    %p55 = scmp.ne.s32.totalorder %s41, %s42
    %p56 = scmp.eq.s32.totalorder %s15, 1
    %p57 = por %p55, %p56
    %p59 = scmp.ne.s32.totalorder %s42, %s58
    %p60 = scmp.eq.s32.totalorder %s15, 0
    %p61 = por %p59, %p60
    %s62 = ssub.s32 %s18, %s27
    %p63 = scmp.eq.s32.totalorder %s62, 0
    %s65 = sadd.s32 %s64, 1
    %s66 = scalar_select %p63, %s64, %s65
    %p69 = pneg %p63
    %p70 = scmp.eq.s32.totalorder %s9, 1
    %p71 = por %p69, %p70
    %p72 = scmp.ne.s32.totalorder %s64, %s67
    %p73 = scmp.eq.s32.totalorder %s9, 0
    %p74 = por %p72, %p73
    %p75 = scmp.ne.s32.totalorder %s64, %s67
    %p76 = scmp.eq.s32.totalorder %s14, 1
    %p77 = por %p75, %p76
    %p78 = scmp.ne.s32.totalorder %s67, %s68
    %p79 = scmp.eq.s32.totalorder %s14, 0
    %p80 = por %p78, %p79
    %p81 = scmp.ne.s32.totalorder %s67, %s68
    %p82 = scmp.eq.s32.totalorder %s15, 1
    %p83 = por %p81, %p82
    %p85 = scmp.ne.s32.totalorder %s68, %s84
    %p86 = scmp.eq.s32.totalorder %s15, 0
    %p87 = por %p85, %p86
    %s88 = ssub.s32 %s18, %s27
    %p89 = scmp.eq.s32.totalorder %s88, 0
    %s91 = sadd.s32 %s90, 1
    %s92 = scalar_select %p89, %s90, %s91
    %p95 = pneg %p89
    %p96 = scmp.eq.s32.totalorder %s9, 1
    %p97 = por %p95, %p96
    %p98 = scmp.ne.s32.totalorder %s90, %s93
    %p99 = scmp.eq.s32.totalorder %s9, 0
    %p100 = por %p98, %p99
    %p101 = scmp.ne.s32.totalorder %s90, %s93
    %p102 = scmp.eq.s32.totalorder %s14, 1
    %p103 = por %p101, %p102
    %p104 = scmp.ne.s32.totalorder %s93, %s94
    %p105 = scmp.eq.s32.totalorder %s14, 0
    %p106 = por %p104, %p105
    %p107 = scmp.ne.s32.totalorder %s93, %s94
    %p108 = scmp.eq.s32.totalorder %s15, 1
    %p109 = por %p107, %p108
    %p111 = scmp.ne.s32.totalorder %s94, %s110
    %p112 = scmp.eq.s32.totalorder %s15, 0
    %p113 = por %p111, %p112
    %s114 = ssub.s32 %s16, %s35
    %s115 = ssub.s32 %s17, %s31
    %s116 = sor.u32 %s114, %s115
    %s117 = ssub.s32 %s18, %s27
    %s118 = sor.u32 %s116, %s117
    %p119 = scmp.eq.s32.totalorder %s118, 0
    %s121 = sadd.s32 %s120, 1
    %s122 = scalar_select %p119, %s120, %s121
    %p125 = pneg %p119
    %p126 = scmp.eq.s32.totalorder %s9, 1
    %p127 = por %p125, %p126
    %p128 = scmp.ne.s32.totalorder %s120, %s123
    %p129 = scmp.eq.s32.totalorder %s9, 0
    %p130 = por %p128, %p129
    %p131 = scmp.ne.s32.totalorder %s120, %s123
    %p132 = scmp.eq.s32.totalorder %s14, 1
    %p133 = por %p131, %p132
    %p134 = scmp.ne.s32.totalorder %s123, %s124
    %p135 = scmp.eq.s32.totalorder %s14, 0
    %p136 = por %p134, %p135
    %p137 = scmp.ne.s32.totalorder %s123, %s124
    %p138 = scmp.eq.s32.totalorder %s15, 1
    %p139 = por %p137, %p138
    %p141 = scmp.ne.s32.totalorder %s124, %s140
    %p142 = scmp.eq.s32.totalorder %s15, 0
    %p143 = por %p141, %p142
    %p144 = scmp.le.s32.totalorder 1, %s9
    %p145 = scmp.lt.s32.totalorder %s9, 3
    %p146 = pnand %p144, %p145
    %p147 = pneg %p146
    // Predicated region
    $region9: #{upsample_forward.1} parent=5 // pred_check
      _
    $region10: #{upsample_forward.1} parent=5 // pred_check_branch
      %149 = sbr.rel (%p146) target = $region12
    $region11: #{upsample_forward.1} parent=5 // pred_region
      %s150 = ssub.s32 %s9, 1
      // Predicated region
      $region13: #{upsample_forward.1} parent=11 // pred_check
        %p151 = pneg %p80
      $region14: #{upsample_forward.1} parent=11 // pred_check_branch
        %153 = sbr.rel (%p151) target = $region16
      $region15: #{upsample_forward.1} parent=11 // pred_region
        %p154 = scmp.lt.s32.totalorder %s21, 0
        %s155 = scalar_select %p154, %s21, 0
        %s156 = smul.addr %s155, 2
        %s157 = scalar_lea.vmem %s1, %s156
      $region16: #{upsample_forward.1} parent=11 // pred_fallthru
        _
      // Predicated region
      $region17: #{upsample_forward.1} parent=11 // pred_check
        %p158 = pneg %p106
      $region18: #{upsample_forward.1} parent=11 // pred_check_branch
        %160 = sbr.rel (%p158) target = $region20
      $region19: #{upsample_forward.1} parent=11 // pred_region
        %p161 = scmp.lt.s32.totalorder %s21, 0
        %s162 = scalar_select %p161, %s21, 0
        %s163 = scalar_lea.vmem %s2, %s162
      $region20: #{upsample_forward.1} parent=11 // pred_fallthru
        _
    $region12: #{upsample_forward.1} parent=5 // pred_fallthru
      _
    %p164 = scmp.lt.s32.totalorder %s9, 2
    // Predicated region
    $region21: #{upsample_forward.1} parent=5 // pred_check
      %p165 = pneg %p164
    $region22: #{upsample_forward.1} parent=5 // pred_check_branch
      %167 = sbr.rel (%p165) target = $region24
    $region23: #{upsample_forward.1} parent=5 // pred_region
      // Predicated region
      $region25: #{upsample_forward.1} parent=23 // pred_check
        %p168 = pneg %p48
      $region26: #{upsample_forward.1} parent=23 // pred_check_branch
        %170 = sbr.rel (%p168) target = $region28
      $region27: #{upsample_forward.1} parent=23 // pred_region
        %p171 = scmp.lt.s32.totalorder %s16, 1
        %s172 = scalar_select %p171, %s16, 1
        %s173 = smul.addr %s172, 54
        %s174 = smul.addr %s173, 4
        %s175 = scalar_lea.vmem %s0, %s174
      $region28: #{upsample_forward.1} parent=23 // pred_fallthru
        _
    $region24: #{upsample_forward.1} parent=5 // pred_fallthru
      _
    %p176 = scmp.le.s32.totalorder 1, %s9
    %p177 = scmp.lt.s32.totalorder %s9, 3
    %p178 = pnand %p176, %p177
    %p179 = pneg %p178
    // Predicated region
    $region29: #{upsample_forward.1} parent=5 // pred_check
      _
    $region30: #{upsample_forward.1} parent=5 // pred_check_branch
      %181 = sbr.rel (%p178) target = $region32
    $region31: #{upsample_forward.1} parent=5 // pred_region
      %s182 = ssub.s32 %s9, 1
      %p183 = scmp.lt.s32.totalorder %s19, 1
      %s184 = scalar_select %p183, %s19, 1
      %s185 = smul.addr %s184, 54
      %s186 = smul.addr %s185, 4
      %s187 = scalar_lea.vmem %s0, %s186
      %p188 = pneg %p54
      %p189 = pneg %p51
      %p190 = scmp.lt.s32.totalorder %s21, 0
      %s191 = scalar_select %p190, %s21, 0
      %s192 = smul.addr %s191, 2
      %s193 = scalar_lea.vmem %s1, %s192
      %p194 = pneg %p80
      %p195 = pneg %p77
      %p196 = scmp.lt.s32.totalorder %s21, 0
      %s197 = scalar_select %p196, %s21, 0
      %s198 = scalar_lea.vmem %s2, %s197
      %p199 = pneg %p106
      %p200 = pneg %p103
      %p201 = pneg %p136
      %p202 = pneg %p133
      %s203 = smul.u32 32, %s20
      %p204 = scmp.lt.s32.totalorder %s19, 1
      %s205 = scalar_select %p204, %s19, 1
      %p206 = scmp.lt.s32.totalorder %s203, 31
      %s207 = scalar_select %p206, %s203, 31
      %p208 = scmp.lt.s32.totalorder %s21, 0
      %s209 = scalar_select %p208, %s21, 0
      %s210 = sadd.s32 %s209, %s207
      %s211 = smul.addr %s205, 32
      %s212 = sadd.s32 %s210, %s211
      %s213 = smul.addr %s212, 4
      %s214 = scalar_lea.vmem %s3, %s213
      %p215 = scmp.lt.s32.totalorder %s19, 1
      %s216 = scalar_select %p215, %s19, 1
      %s217 = smul.addr %s216, 54
      %s218 = smul.addr %s217, 4
      %s219 = scalar_lea.vmem %s0, %s218
      %p220 = scmp.lt.s32.totalorder %s21, 0
      %s221 = scalar_select %p220, %s21, 0
      %s222 = smul.addr %s221, 2
      %s223 = scalar_lea.vmem %s1, %s222
      %p224 = scmp.lt.s32.totalorder %s21, 0
      %s225 = scalar_select %p224, %s21, 0
      %s226 = scalar_lea.vmem %s2, %s225
      %s227 = smul.u32 32, %s20
      %p228 = scmp.lt.s32.totalorder %s19, 1
      %s229 = scalar_select %p228, %s19, 1
      %p230 = scmp.lt.s32.totalorder %s227, 31
      %s231 = scalar_select %p230, %s227, 31
      %p232 = scmp.lt.s32.totalorder %s21, 0
      %s233 = scalar_select %p232, %s21, 0
      %s234 = sadd.s32 %s233, %s231
      %s235 = smul.addr %s229, 32
      %s236 = sadd.s32 %s234, %s235
      %s237 = smul.addr %s236, 4
      %s238 = scalar_lea.vmem %s3, %s237
      %s239 = smul.u32 32, %s20
      %s241 = smul.u32 %s20, 16
      %s242 = smul.u32 %s241, 3
      %s243 = smul.addr %s242, 4
      %s244 = scalar_lea.vmem %s219, %s243
      %v245 = vld [vmem:[%s244] sm:$0xf]
      %v246 = vld [vmem:[%s244 + $0x4] sm:$0xf]
      %v247 = vld [vmem:[%s244 + $0xc] sm:$0xf]
      %v248 = vld [vmem:[%s244 + $0x10] sm:$0xf]
      %v249 = vld [vmem:[%s244 + $0x18] sm:$0xf]
      %v250 = vld [vmem:[%s244 + $0x1c] sm:$0xf]
      %v251 = vld [vmem:[%s244 + $0x24] sm:$0xf]
      %v252 = vld [vmem:[%s244 + $0x28] sm:$0xf]
      %v253 = vld [vmem:[%s244 + $0x30] sm:$0xf]
      %v254 = vld [vmem:[%s244 + $0x34] sm:$0xf]
      %v255 = vld [vmem:[%s244 + $0x3c] sm:$0xf]
      %v256 = vld [vmem:[%s244 + $0x40] sm:$0xf]
      %v257 = vld [vmem:[%s244 + $0x48] sm:$0xf]
      %v258 = vld [vmem:[%s244 + $0x4c] sm:$0xf]
      %v259 = vld [vmem:[%s244 + $0x54] sm:$0xf]
      %v260 = vld [vmem:[%s244 + $0x58] sm:$0xf]
      %v261 = vld [vmem:[%s244 + $0x60] sm:$0xf]
      %v262 = vld [vmem:[%s244 + $0x64] sm:$0xf]
      %v263 = vld [vmem:[%s244 + $0x6c] sm:$0xf]
      %v264 = vld [vmem:[%s244 + $0x70] sm:$0xf]
      %v265 = vld [vmem:[%s244 + $0x78] sm:$0xf]
      %v266 = vld [vmem:[%s244 + $0x7c] sm:$0xf]
      %v267 = vld [vmem:[%s244 + $0x84] sm:$0xf]
      %v268 = vld [vmem:[%s244 + $0x88] sm:$0xf]
      %v269 = vld [vmem:[%s244 + $0x90] sm:$0xf]
      %v270 = vld [vmem:[%s244 + $0x94] sm:$0xf]
      %v271 = vld [vmem:[%s244 + $0x9c] sm:$0xf]
      %v272 = vld [vmem:[%s244 + $0xa0] sm:$0xf]
      %v273 = vld [vmem:[%s244 + $0xa8] sm:$0xf]
      %v274 = vld [vmem:[%s244 + $0xac] sm:$0xf]
      %v275 = vld [vmem:[%s244 + $0xb4] sm:$0xf]
      %v276 = vld [vmem:[%s244 + $0xb8] sm:$0xf]
      %v277 = vld [vmem:[%s223] sm:$0x3]
      %v278 = vld [vmem:[%s244 + $0x8] sm:$0x1]
      %v279 = vld [vmem:[%s244 + $0x14] sm:$0x1]
      %v280 = vld [vmem:[%s244 + $0x20] sm:$0x1]
      %v281 = vld [vmem:[%s244 + $0x2c] sm:$0x1]
      %v282 = vld [vmem:[%s244 + $0x38] sm:$0x1]
      %v283 = vld [vmem:[%s244 + $0x44] sm:$0x1]
      %v284 = vld [vmem:[%s244 + $0x50] sm:$0x1]
      %v285 = vld [vmem:[%s244 + $0x5c] sm:$0x1]
      %v286 = vld [vmem:[%s244 + $0x68] sm:$0x1]
      %v287 = vld [vmem:[%s244 + $0x74] sm:$0x1]
      %v288 = vld [vmem:[%s244 + $0x80] sm:$0x1]
      %v289 = vld [vmem:[%s244 + $0x8c] sm:$0x1]
      %v290 = vld [vmem:[%s244 + $0x98] sm:$0x1]
      %v291 = vld [vmem:[%s244 + $0xa4] sm:$0x1]
      %v292 = vld [vmem:[%s244 + $0xb0] sm:$0x1]
      %v293 = vld [vmem:[%s244 + $0xbc] sm:$0x1]
      %vm294 = vsmask.f32 3328
      %vm295 = vsmask.f32 7440
      %vm296 = vmor %vm294, %vm295
      %v298 = vshrl.u32 %v245, 16
      %v300 = vrot.slane %v298, 4
      %v301 = vshll.u32 %v245, 16
      %v303 = vrot.slane %v301, 5
      %v304 = vor.u32 %v300, %v303
      %v305 = vrot.slane %v304, 4
      %v307 = vshll.u32 %v246, 16
      %v309 = vrot.slane %v307, 5
      %v310 = vsel %vm296, %v305, %v309
      %v311 = vshrl.u32 %v246, 16
      %v313 = vrot.slane %v311, 4
      %v314 = vor.u32 %v313, %v309
      %v315 = vrot.slane %v314, 4
      %v317 = vshll.u32 %v278, 16
      %v319 = vrot.slane %v317, 5
      %v320 = vsel %vm296, %v315, %v319
      %v322 = vshrl.u32 %v247, 16
      %v324 = vrot.slane %v322, 4
      %v325 = vshll.u32 %v247, 16
      %v327 = vrot.slane %v325, 5
      %v328 = vor.u32 %v324, %v327
      %v329 = vrot.slane %v328, 4
      %v331 = vshll.u32 %v248, 16
      %v333 = vrot.slane %v331, 5
      %v334 = vsel %vm296, %v329, %v333
      %v335 = vshrl.u32 %v248, 16
      %v337 = vrot.slane %v335, 4
      %v338 = vor.u32 %v337, %v333
      %v339 = vrot.slane %v338, 4
      %v341 = vshll.u32 %v279, 16
      %v343 = vrot.slane %v341, 5
      %v344 = vsel %vm296, %v339, %v343
      %v346 = vshrl.u32 %v249, 16
      %v348 = vrot.slane %v346, 4
      %v349 = vshll.u32 %v249, 16
      %v351 = vrot.slane %v349, 5
      %v352 = vor.u32 %v348, %v351
      %v353 = vrot.slane %v352, 4
      %v355 = vshll.u32 %v250, 16
      %v357 = vrot.slane %v355, 5
      %v358 = vsel %vm296, %v353, %v357
      %v359 = vshrl.u32 %v250, 16
      %v361 = vrot.slane %v359, 4
      %v362 = vor.u32 %v361, %v357
      %v363 = vrot.slane %v362, 4
      %v365 = vshll.u32 %v280, 16
      %v367 = vrot.slane %v365, 5
      %v368 = vsel %vm296, %v363, %v367
      %v370 = vshrl.u32 %v251, 16
      %v372 = vrot.slane %v370, 4
      %v373 = vshll.u32 %v251, 16
      %v375 = vrot.slane %v373, 5
      %v376 = vor.u32 %v372, %v375
      %v377 = vrot.slane %v376, 4
      %v379 = vshll.u32 %v252, 16
      %v381 = vrot.slane %v379, 5
      %v382 = vsel %vm296, %v377, %v381
      %v383 = vshrl.u32 %v252, 16
      %v385 = vrot.slane %v383, 4
      %v386 = vor.u32 %v385, %v381
      %v387 = vrot.slane %v386, 4
      %v389 = vshll.u32 %v281, 16
      %v391 = vrot.slane %v389, 5
      %v392 = vsel %vm296, %v387, %v391
      %v394 = vshrl.u32 %v253, 16
      %v396 = vrot.slane %v394, 4
      %v397 = vshll.u32 %v253, 16
      %v399 = vrot.slane %v397, 5
      %v400 = vor.u32 %v396, %v399
      %v401 = vrot.slane %v400, 4
      %v403 = vshll.u32 %v254, 16
      %v405 = vrot.slane %v403, 5
      %v406 = vsel %vm296, %v401, %v405
      %v407 = vshrl.u32 %v254, 16
      %v409 = vrot.slane %v407, 4
      %v410 = vor.u32 %v409, %v405
      %v411 = vrot.slane %v410, 4
      %v413 = vshll.u32 %v282, 16
      %v415 = vrot.slane %v413, 5
      %v416 = vsel %vm296, %v411, %v415
      %v418 = vshrl.u32 %v255, 16
      %v420 = vrot.slane %v418, 4
      %v421 = vshll.u32 %v255, 16
      %v423 = vrot.slane %v421, 5
      %v424 = vor.u32 %v420, %v423
      %v425 = vrot.slane %v424, 4
      %v427 = vshll.u32 %v256, 16
      %v429 = vrot.slane %v427, 5
      %v430 = vsel %vm296, %v425, %v429
      %v431 = vshrl.u32 %v256, 16
      %v433 = vrot.slane %v431, 4
      %v434 = vor.u32 %v433, %v429
      %v435 = vrot.slane %v434, 4
      %v437 = vshll.u32 %v283, 16
      %v439 = vrot.slane %v437, 5
      %v440 = vsel %vm296, %v435, %v439
      %v442 = vshrl.u32 %v257, 16
      %v444 = vrot.slane %v442, 4
      %v445 = vshll.u32 %v257, 16
      %v447 = vrot.slane %v445, 5
      %v448 = vor.u32 %v444, %v447
      %v449 = vrot.slane %v448, 4
      %v451 = vshll.u32 %v258, 16
      %v453 = vrot.slane %v451, 5
      %v454 = vsel %vm296, %v449, %v453
      %v455 = vshrl.u32 %v258, 16
      %v457 = vrot.slane %v455, 4
      %v458 = vor.u32 %v457, %v453
      %v459 = vrot.slane %v458, 4
      %v461 = vshll.u32 %v284, 16
      %v463 = vrot.slane %v461, 5
      %v464 = vsel %vm296, %v459, %v463
      %v466 = vshrl.u32 %v259, 16
      %v468 = vrot.slane %v466, 4
      %v469 = vshll.u32 %v259, 16
      %v471 = vrot.slane %v469, 5
      %v472 = vor.u32 %v468, %v471
      %v473 = vrot.slane %v472, 4
      %v475 = vshll.u32 %v260, 16
      %v477 = vrot.slane %v475, 5
      %v478 = vsel %vm296, %v473, %v477
      %v479 = vshrl.u32 %v260, 16
      %v481 = vrot.slane %v479, 4
      %v482 = vor.u32 %v481, %v477
      %v483 = vrot.slane %v482, 4
      %v485 = vshll.u32 %v285, 16
      %v487 = vrot.slane %v485, 5
      %v488 = vsel %vm296, %v483, %v487
      %v490 = vshrl.u32 %v261, 16
      %v492 = vrot.slane %v490, 4
      %v493 = vshll.u32 %v261, 16
      %v495 = vrot.slane %v493, 5
      %v496 = vor.u32 %v492, %v495
      %v497 = vrot.slane %v496, 4
      %v499 = vshll.u32 %v262, 16
      %v501 = vrot.slane %v499, 5
      %v502 = vsel %vm296, %v497, %v501
      %v503 = vshrl.u32 %v262, 16
      %v505 = vrot.slane %v503, 4
      %v506 = vor.u32 %v505, %v501
      %v507 = vrot.slane %v506, 4
      %v509 = vshll.u32 %v286, 16
      %v511 = vrot.slane %v509, 5
      %v512 = vsel %vm296, %v507, %v511
      %v514 = vshrl.u32 %v263, 16
      %v516 = vrot.slane %v514, 4
      %v517 = vshll.u32 %v263, 16
      %v519 = vrot.slane %v517, 5
      %v520 = vor.u32 %v516, %v519
      %v521 = vrot.slane %v520, 4
      %v523 = vshll.u32 %v264, 16
      %v525 = vrot.slane %v523, 5
      %v526 = vsel %vm296, %v521, %v525
      %v527 = vshrl.u32 %v264, 16
      %v529 = vrot.slane %v527, 4
      %v530 = vor.u32 %v529, %v525
      %v531 = vrot.slane %v530, 4
      %v533 = vshll.u32 %v287, 16
      %v535 = vrot.slane %v533, 5
      %v536 = vsel %vm296, %v531, %v535
      %v538 = vshrl.u32 %v265, 16
      %v540 = vrot.slane %v538, 4
      %v541 = vshll.u32 %v265, 16
      %v543 = vrot.slane %v541, 5
      %v544 = vor.u32 %v540, %v543
      %v545 = vrot.slane %v544, 4
      %v547 = vshll.u32 %v266, 16
      %v549 = vrot.slane %v547, 5
      %v550 = vsel %vm296, %v545, %v549
      %v551 = vshrl.u32 %v266, 16
      %v553 = vrot.slane %v551, 4
      %v554 = vor.u32 %v553, %v549
      %v555 = vrot.slane %v554, 4
      %v557 = vshll.u32 %v288, 16
      %v559 = vrot.slane %v557, 5
      %v560 = vsel %vm296, %v555, %v559
      %v562 = vshrl.u32 %v267, 16
      %v564 = vrot.slane %v562, 4
      %v565 = vshll.u32 %v267, 16
      %v567 = vrot.slane %v565, 5
      %v568 = vor.u32 %v564, %v567
      %v569 = vrot.slane %v568, 4
      %v571 = vshll.u32 %v268, 16
      %v573 = vrot.slane %v571, 5
      %v574 = vsel %vm296, %v569, %v573
      %v575 = vshrl.u32 %v268, 16
      %v577 = vrot.slane %v575, 4
      %v578 = vor.u32 %v577, %v573
      %v579 = vrot.slane %v578, 4
      %v581 = vshll.u32 %v289, 16
      %v583 = vrot.slane %v581, 5
      %v584 = vsel %vm296, %v579, %v583
      %v586 = vshrl.u32 %v269, 16
      %v588 = vrot.slane %v586, 4
      %v589 = vshll.u32 %v269, 16
      %v591 = vrot.slane %v589, 5
      %v592 = vor.u32 %v588, %v591
      %v593 = vrot.slane %v592, 4
      %v595 = vshll.u32 %v270, 16
      %v597 = vrot.slane %v595, 5
      %v598 = vsel %vm296, %v593, %v597
      %v599 = vshrl.u32 %v270, 16
      %v601 = vrot.slane %v599, 4
      %v602 = vor.u32 %v601, %v597
      %v603 = vrot.slane %v602, 4
      %v605 = vshll.u32 %v290, 16
      %v607 = vrot.slane %v605, 5
      %v608 = vsel %vm296, %v603, %v607
      %v610 = vshrl.u32 %v271, 16
      %v612 = vrot.slane %v610, 4
      %v613 = vshll.u32 %v271, 16
      %v615 = vrot.slane %v613, 5
      %v616 = vor.u32 %v612, %v615
      %v617 = vrot.slane %v616, 4
      %v619 = vshll.u32 %v272, 16
      %v621 = vrot.slane %v619, 5
      %v622 = vsel %vm296, %v617, %v621
      %v623 = vshrl.u32 %v272, 16
      %v625 = vrot.slane %v623, 4
      %v626 = vor.u32 %v625, %v621
      %v627 = vrot.slane %v626, 4
      %v629 = vshll.u32 %v291, 16
      %v631 = vrot.slane %v629, 5
      %v632 = vsel %vm296, %v627, %v631
      %v634 = vshrl.u32 %v273, 16
      %v636 = vrot.slane %v634, 4
      %v637 = vshll.u32 %v273, 16
      %v639 = vrot.slane %v637, 5
      %v640 = vor.u32 %v636, %v639
      %v641 = vrot.slane %v640, 4
      %v643 = vshll.u32 %v274, 16
      %v645 = vrot.slane %v643, 5
      %v646 = vsel %vm296, %v641, %v645
      %v647 = vshrl.u32 %v274, 16
      %v649 = vrot.slane %v647, 4
      %v650 = vor.u32 %v649, %v645
      %v651 = vrot.slane %v650, 4
      %v653 = vshll.u32 %v292, 16
      %v655 = vrot.slane %v653, 5
      %v656 = vsel %vm296, %v651, %v655
      %v658 = vshrl.u32 %v275, 16
      %v660 = vrot.slane %v658, 4
      %v661 = vshll.u32 %v275, 16
      %v663 = vrot.slane %v661, 5
      %v664 = vor.u32 %v660, %v663
      %v665 = vrot.slane %v664, 4
      %v667 = vshll.u32 %v276, 16
      %v669 = vrot.slane %v667, 5
      %v670 = vsel %vm296, %v665, %v669
      %v671 = vshrl.u32 %v276, 16
      %v673 = vrot.slane %v671, 4
      %v674 = vor.u32 %v673, %v669
      %v675 = vrot.slane %v674, 4
      %v677 = vshll.u32 %v293, 16
      %v679 = vrot.slane %v677, 5
      %v680 = vsel %vm296, %v675, %v679
      %s681 = scalar_lea.vmem %s223, 2
      %v682 = vld [vmem:[%s681] sm:$0x3]
      %v683 = vunpack.c.l.b16 %v310
      %v684 = vunpack.c.l.b16 %v320
      %v685 = vunpack.c.l.b16 %v334
      %v686 = vunpack.c.l.b16 %v344
      %v687 = vunpack.c.l.b16 %v358
      %v688 = vunpack.c.l.b16 %v368
      %v689 = vunpack.c.l.b16 %v382
      %v690 = vunpack.c.l.b16 %v392
      %v691 = vunpack.c.l.b16 %v406
      %v692 = vunpack.c.l.b16 %v416
      %v693 = vunpack.c.l.b16 %v430
      %v694 = vunpack.c.l.b16 %v440
      %v695 = vunpack.c.l.b16 %v454
      %v696 = vunpack.c.l.b16 %v464
      %v697 = vunpack.c.l.b16 %v478
      %v698 = vunpack.c.l.b16 %v488
      %v699 = vunpack.c.l.b16 %v502
      %v700 = vunpack.c.l.b16 %v512
      %v701 = vunpack.c.l.b16 %v526
      %v702 = vunpack.c.l.b16 %v536
      %v703 = vunpack.c.l.b16 %v550
      %v704 = vunpack.c.l.b16 %v560
      %v705 = vunpack.c.l.b16 %v574
      %v706 = vunpack.c.l.b16 %v584
      %v707 = vunpack.c.l.b16 %v598
      %v708 = vunpack.c.l.b16 %v608
      %v709 = vunpack.c.l.b16 %v622
      %v710 = vunpack.c.l.b16 %v632
      %v711 = vunpack.c.l.b16 %v646
      %v712 = vunpack.c.l.b16 %v656
      %v713 = vunpack.c.l.b16 %v670
      %v714 = vunpack.c.l.b16 %v680
      %v715 = vpack.c.b16 %v684, %v683
      %v716 = vpack.c.b16 %v686, %v685
      %v717 = vpack.c.b16 %v688, %v687
      %v718 = vpack.c.b16 %v690, %v689
      %v719 = vpack.c.b16 %v692, %v691
      %v720 = vpack.c.b16 %v694, %v693
      %v721 = vpack.c.b16 %v696, %v695
      %v722 = vpack.c.b16 %v698, %v697
      %v723 = vpack.c.b16 %v700, %v699
      %v724 = vpack.c.b16 %v702, %v701
      %v725 = vpack.c.b16 %v704, %v703
      %v726 = vpack.c.b16 %v706, %v705
      %v727 = vpack.c.b16 %v708, %v707
      %v728 = vpack.c.b16 %v710, %v709
      %v729 = vpack.c.b16 %v712, %v711
      %v730 = vpack.c.b16 %v714, %v713
      %vm731 = vcmask 31744
      %v733 = vsel %vm731, %v715, 0
      %v736 = vsel %vm731, %v716, 0
      %v739 = vsel %vm731, %v717, 0
      %v742 = vsel %vm731, %v718, 0
      %v745 = vsel %vm731, %v719, 0
      %v748 = vsel %vm731, %v720, 0
      %v751 = vsel %vm731, %v721, 0
      %v754 = vsel %vm731, %v722, 0
      %v757 = vsel %vm731, %v723, 0
      %v760 = vsel %vm731, %v724, 0
      %v763 = vsel %vm731, %v725, 0
      %v766 = vsel %vm731, %v726, 0
      %v769 = vsel %vm731, %v727, 0
      %v772 = vsel %vm731, %v728, 0
      %v775 = vsel %vm731, %v729, 0
      %v778 = vsel %vm731, %v730, 0
      %vm780 = vcmask 1041408
      %v782 = vsel %vm780, %v682, 0
      %784 = vmatprep.subr.bf16.mxu0 0
      %785 = vmatpush1.bf16.msra.mxu0 %v782
      %786 = vmatprep.subr.bf16.mxu0 0
      %787 = vmatpush1.bf16.msra.mxu0 0
      %788 = vmatprep.subr.bf16.mxu0 0
      %789 = vmatpush1.bf16.msra.mxu0 0
      %790 = vmatprep.subr.bf16.mxu0 0
      %791 = vmatpush1.bf16.msra.mxu0 0
      %792 = vmatprep.subr.bf16.mxu0 0
      %793 = vmatpush1.bf16.msra.mxu0 0
      %794 = vmatprep.subr.bf16.mxu0 0
      %795 = vmatpush1.bf16.msra.mxu0 0
      %796 = vmatprep.subr.bf16.mxu0 0
      %797 = vmatpush1.bf16.msra.mxu0 0
      %798 = vmatprep.subr.bf16.mxu0 0
      %799 = vmatpush1.bf16.msra.mxu0 0
      %800 = vmatprep.subr.bf16.mxu0 0
      %801 = vmatpush1.bf16.msra.mxu0 0
      %802 = vmatprep.subr.bf16.mxu0 0
      %803 = vmatpush1.bf16.msra.mxu0 0
      %804 = vmatprep.subr.bf16.mxu0 0
      %805 = vmatpush1.bf16.msra.mxu0 0
      %806 = vmatprep.subr.bf16.mxu0 0
      %807 = vmatpush1.bf16.msra.mxu0 0
      %808 = vmatprep.subr.bf16.mxu0 0
      %809 = vmatpush1.bf16.msra.mxu0 0
      %810 = vmatprep.subr.bf16.mxu0 0
      %811 = vmatpush1.bf16.msra.mxu0 0
      %812 = vmatprep.subr.bf16.mxu0 0
      %813 = vmatpush1.bf16.msra.mxu0 0
      %814 = vmatprep.subr.bf16.mxu0 0
      %815 = vmatpush1.bf16.msra.mxu0 0
      %816 = vmatprep.mubr.bf16.mxu0 0
      %817 = vmatmul.mubr.bf16.gmra.mrb[0].mxu0 %v733
      %v818 = vpop.f32.mrb[0].mxu0
      %v819 = vadd.f32 0.0, %v818
      %v820 = vpop.f32.mrb[0].mxu0
      %v821 = vpop.f32.mrb[0].mxu0
      %v822 = vadd.f32 0.0, %v821
      %v823 = vpop.f32.mrb[0].mxu0
      %824 = vmatprep.mubr.bf16.mxu0 0
      %825 = vmatmul.mubr.bf16.gmra.mrb[0].mxu0 %v736
      %v826 = vpop.f32.mrb[0].mxu0
      %v827 = vadd.f32 0.0, %v826
      %v828 = vpop.f32.mrb[0].mxu0
      %v829 = vpop.f32.mrb[0].mxu0
      %v830 = vadd.f32 0.0, %v829
      %v831 = vpop.f32.mrb[0].mxu0
      %832 = vmatprep.mubr.bf16.mxu0 0
      %833 = vmatmul.mubr.bf16.gmra.mrb[0].mxu0 %v739
      %v834 = vpop.f32.mrb[0].mxu0
      %v835 = vadd.f32 0.0, %v834
      %v836 = vpop.f32.mrb[0].mxu0
      %v837 = vpop.f32.mrb[0].mxu0
      %v838 = vadd.f32 0.0, %v837
      %v839 = vpop.f32.mrb[0].mxu0
      %840 = vmatprep.mubr.bf16.mxu0 0
      %841 = vmatmul.mubr.bf16.gmra.mrb[0].mxu0 %v742
      %v842 = vpop.f32.mrb[0].mxu0
      %v843 = vadd.f32 0.0, %v842
      %v844 = vpop.f32.mrb[0].mxu0
      %v845 = vpop.f32.mrb[0].mxu0
      %v846 = vadd.f32 0.0, %v845
      %v847 = vpop.f32.mrb[0].mxu0
      %848 = vmatprep.mubr.bf16.mxu0 0
      %849 = vmatmul.mubr.bf16.gmra.mrb[0].mxu0 %v745
      %v850 = vpop.f32.mrb[0].mxu0
      %v851 = vadd.f32 0.0, %v850
      %v852 = vpop.f32.mrb[0].mxu0
      %v853 = vpop.f32.mrb[0].mxu0
      %v854 = vadd.f32 0.0, %v853
      %v855 = vpop.f32.mrb[0].mxu0
      %856 = vmatprep.mubr.bf16.mxu0 0
      %857 = vmatmul.mubr.bf16.gmra.mrb[0].mxu0 %v748
      %v858 = vpop.f32.mrb[0].mxu0
      %v859 = vadd.f32 0.0, %v858
      %v860 = vpop.f32.mrb[0].mxu0
      %v861 = vpop.f32.mrb[0].mxu0
      %v862 = vadd.f32 0.0, %v861
      %v863 = vpop.f32.mrb[0].mxu0
      %864 = vmatprep.mubr.bf16.mxu0 0
      %865 = vmatmul.mubr.bf16.gmra.mrb[0].mxu0 %v751
      %v866 = vpop.f32.mrb[0].mxu0
      %v867 = vadd.f32 0.0, %v866
      %v868 = vpop.f32.mrb[0].mxu0
      %v869 = vpop.f32.mrb[0].mxu0
      %v870 = vadd.f32 0.0, %v869
      %v871 = vpop.f32.mrb[0].mxu0
      %872 = vmatprep.mubr.bf16.mxu0 0
      %873 = vmatmul.mubr.bf16.gmra.mrb[0].mxu0 %v754
      %v874 = vpop.f32.mrb[0].mxu0
      %v875 = vadd.f32 0.0, %v874
      %v876 = vpop.f32.mrb[0].mxu0
      %v877 = vpop.f32.mrb[0].mxu0
      %v878 = vadd.f32 0.0, %v877
      %v879 = vpop.f32.mrb[0].mxu0
      %880 = vmatprep.mubr.bf16.mxu0 0
      %881 = vmatmul.mubr.bf16.gmra.mrb[0].mxu0 %v757
      %v882 = vpop.f32.mrb[0].mxu0
      %v883 = vadd.f32 0.0, %v882
      %v884 = vpop.f32.mrb[0].mxu0
      %v885 = vpop.f32.mrb[0].mxu0
      %v886 = vadd.f32 0.0, %v885
      %v887 = vpop.f32.mrb[0].mxu0
      %888 = vmatprep.mubr.bf16.mxu0 0
      %889 = vmatmul.mubr.bf16.gmra.mrb[0].mxu0 %v760
      %v890 = vpop.f32.mrb[0].mxu0
      %v891 = vadd.f32 0.0, %v890
      %v892 = vpop.f32.mrb[0].mxu0
      %v893 = vpop.f32.mrb[0].mxu0
      %v894 = vadd.f32 0.0, %v893
      %v895 = vpop.f32.mrb[0].mxu0
      %896 = vmatprep.mubr.bf16.mxu0 0
      %897 = vmatmul.mubr.bf16.gmra.mrb[0].mxu0 %v763
      %v898 = vpop.f32.mrb[0].mxu0
      %v899 = vadd.f32 0.0, %v898
      %v900 = vpop.f32.mrb[0].mxu0
      %v901 = vpop.f32.mrb[0].mxu0
      %v902 = vadd.f32 0.0, %v901
      %v903 = vpop.f32.mrb[0].mxu0
      %904 = vmatprep.mubr.bf16.mxu0 0
      %905 = vmatmul.mubr.bf16.gmra.mrb[0].mxu0 %v766
      %v906 = vpop.f32.mrb[0].mxu0
      %v907 = vadd.f32 0.0, %v906
      %v908 = vpop.f32.mrb[0].mxu0
      %v909 = vpop.f32.mrb[0].mxu0
      %v910 = vadd.f32 0.0, %v909
      %v911 = vpop.f32.mrb[0].mxu0
      %912 = vmatprep.mubr.bf16.mxu0 0
      %913 = vmatmul.mubr.bf16.gmra.mrb[0].mxu0 %v769
      %v914 = vpop.f32.mrb[0].mxu0
      %v915 = vadd.f32 0.0, %v914
      %v916 = vpop.f32.mrb[0].mxu0
      %v917 = vpop.f32.mrb[0].mxu0
      %v918 = vadd.f32 0.0, %v917
      %v919 = vpop.f32.mrb[0].mxu0
      %920 = vmatprep.mubr.bf16.mxu0 0
      %921 = vmatmul.mubr.bf16.gmra.mrb[0].mxu0 %v772
      %v922 = vpop.f32.mrb[0].mxu0
      %v923 = vadd.f32 0.0, %v922
      %v924 = vpop.f32.mrb[0].mxu0
      %v925 = vpop.f32.mrb[0].mxu0
      %v926 = vadd.f32 0.0, %v925
      %v927 = vpop.f32.mrb[0].mxu0
      %928 = vmatprep.mubr.bf16.mxu0 0
      %929 = vmatmul.mubr.bf16.gmra.mrb[0].mxu0 %v775
      %v930 = vpop.f32.mrb[0].mxu0
      %v931 = vadd.f32 0.0, %v930
      %v932 = vpop.f32.mrb[0].mxu0
      %v933 = vpop.f32.mrb[0].mxu0
      %v934 = vadd.f32 0.0, %v933
      %v935 = vpop.f32.mrb[0].mxu0
      %936 = vmatprep.mubr.bf16.mxu0 0
      %937 = vmatmul.mubr.bf16.gmra.mrb[0].mxu0 %v778
      %v938 = vpop.f32.mrb[0].mxu0
      %v939 = vadd.f32 0.0, %v938
      %v940 = vpop.f32.mrb[0].mxu0
      %v941 = vpop.f32.mrb[0].mxu0
      %v942 = vadd.f32 0.0, %v941
      %v943 = vpop.f32.mrb[0].mxu0
      %944 = vdwg.mxu0
      %v977 = vunpack.c.l.b16 %v245
      %v978 = vunpack.c.l.b16 %v246
      %v979 = vunpack.c.l.b16 %v247
      %v980 = vunpack.c.l.b16 %v248
      %v981 = vunpack.c.l.b16 %v249
      %v982 = vunpack.c.l.b16 %v250
      %v983 = vunpack.c.l.b16 %v251
      %v984 = vunpack.c.l.b16 %v252
      %v985 = vunpack.c.l.b16 %v253
      %v986 = vunpack.c.l.b16 %v254
      %v987 = vunpack.c.l.b16 %v255
      %v988 = vunpack.c.l.b16 %v256
      %v989 = vunpack.c.l.b16 %v257
      %v990 = vunpack.c.l.b16 %v258
      %v991 = vunpack.c.l.b16 %v259
      %v992 = vunpack.c.l.b16 %v260
      %v993 = vunpack.c.l.b16 %v261
      %v994 = vunpack.c.l.b16 %v262
      %v995 = vunpack.c.l.b16 %v263
      %v996 = vunpack.c.l.b16 %v264
      %v997 = vunpack.c.l.b16 %v265
      %v998 = vunpack.c.l.b16 %v266
      %v999 = vunpack.c.l.b16 %v267
      %v1000 = vunpack.c.l.b16 %v268
      %v1001 = vunpack.c.l.b16 %v269
      %v1002 = vunpack.c.l.b16 %v270
      %v1003 = vunpack.c.l.b16 %v271
      %v1004 = vunpack.c.l.b16 %v272
      %v1005 = vunpack.c.l.b16 %v273
      %v1006 = vunpack.c.l.b16 %v274
      %v1007 = vunpack.c.l.b16 %v275
      %v1008 = vunpack.c.l.b16 %v276
      %v1009 = vpack.c.b16 %v978, %v977
      %v1010 = vpack.c.b16 %v980, %v979
      %v1011 = vpack.c.b16 %v982, %v981
      %v1012 = vpack.c.b16 %v984, %v983
      %v1013 = vpack.c.b16 %v986, %v985
      %v1014 = vpack.c.b16 %v988, %v987
      %v1015 = vpack.c.b16 %v990, %v989
      %v1016 = vpack.c.b16 %v992, %v991
      %v1017 = vpack.c.b16 %v994, %v993
      %v1018 = vpack.c.b16 %v996, %v995
      %v1019 = vpack.c.b16 %v998, %v997
      %v1020 = vpack.c.b16 %v1000, %v999
      %v1021 = vpack.c.b16 %v1002, %v1001
      %v1022 = vpack.c.b16 %v1004, %v1003
      %v1023 = vpack.c.b16 %v1006, %v1005
      %v1024 = vpack.c.b16 %v1008, %v1007
      %v1026 = vsel %vm731, %v1009, 0
      %v1029 = vsel %vm731, %v1010, 0
      %v1032 = vsel %vm731, %v1011, 0
      %v1035 = vsel %vm731, %v1012, 0
      %v1038 = vsel %vm731, %v1013, 0
      %v1041 = vsel %vm731, %v1014, 0
      %v1044 = vsel %vm731, %v1015, 0
      %v1047 = vsel %vm731, %v1016, 0
      %v1050 = vsel %vm731, %v1017, 0
      %v1053 = vsel %vm731, %v1018, 0
      %v1056 = vsel %vm731, %v1019, 0
      %v1059 = vsel %vm731, %v1020, 0
      %v1062 = vsel %vm731, %v1021, 0
      %v1065 = vsel %vm731, %v1022, 0
      %v1068 = vsel %vm731, %v1023, 0
      %v1071 = vsel %vm731, %v1024, 0
      %v1074 = vsel %vm780, %v277, 0
      %1076 = vmatprep.subr.bf16.mxu0 0
      %1077 = vmatpush1.bf16.msra.mxu0 %v1074
      %1078 = vmatprep.subr.bf16.mxu0 0
      %1079 = vmatpush1.bf16.msra.mxu0 0
      %1080 = vmatprep.subr.bf16.mxu0 0
      %1081 = vmatpush1.bf16.msra.mxu0 0
      %1082 = vmatprep.subr.bf16.mxu0 0
      %1083 = vmatpush1.bf16.msra.mxu0 0
      %1084 = vmatprep.subr.bf16.mxu0 0
      %1085 = vmatpush1.bf16.msra.mxu0 0
      %1086 = vmatprep.subr.bf16.mxu0 0
      %1087 = vmatpush1.bf16.msra.mxu0 0
      %1088 = vmatprep.subr.bf16.mxu0 0
      %1089 = vmatpush1.bf16.msra.mxu0 0
      %1090 = vmatprep.subr.bf16.mxu0 0
      %1091 = vmatpush1.bf16.msra.mxu0 0
      %1092 = vmatprep.subr.bf16.mxu0 0
      %1093 = vmatpush1.bf16.msra.mxu0 0
      %1094 = vmatprep.subr.bf16.mxu0 0
      %1095 = vmatpush1.bf16.msra.mxu0 0
      %1096 = vmatprep.subr.bf16.mxu0 0
      %1097 = vmatpush1.bf16.msra.mxu0 0
      %1098 = vmatprep.subr.bf16.mxu0 0
      %1099 = vmatpush1.bf16.msra.mxu0 0
      %1100 = vmatprep.subr.bf16.mxu0 0
      %1101 = vmatpush1.bf16.msra.mxu0 0
      %1102 = vmatprep.subr.bf16.mxu0 0
      %1103 = vmatpush1.bf16.msra.mxu0 0
      %1104 = vmatprep.subr.bf16.mxu0 0
      %1105 = vmatpush1.bf16.msra.mxu0 0
      %1106 = vmatprep.subr.bf16.mxu0 0
      %1107 = vmatpush1.bf16.msra.mxu0 0
      %1108 = vmatprep.mubr.bf16.mxu0 0
      %1109 = vmatmul.mubr.bf16.gmra.mrb[0].mxu0 %v1026
      %v1110 = vpop.f32.mrb[0].mxu0
      %v1111 = vadd.f32 %v819, %v1110
      %v1112 = vpop.f32.mrb[0].mxu0
      %v1113 = vpop.f32.mrb[0].mxu0
      %v1114 = vadd.f32 %v822, %v1113
      %v1115 = vpop.f32.mrb[0].mxu0
      %1116 = vmatprep.mubr.bf16.mxu0 0
      %1117 = vmatmul.mubr.bf16.gmra.mrb[0].mxu0 %v1029
      %v1118 = vpop.f32.mrb[0].mxu0
      %v1119 = vadd.f32 %v827, %v1118
      %v1120 = vpop.f32.mrb[0].mxu0
      %v1121 = vpop.f32.mrb[0].mxu0
      %v1122 = vadd.f32 %v830, %v1121
      %v1123 = vpop.f32.mrb[0].mxu0
      %1124 = vmatprep.mubr.bf16.mxu0 0
      %1125 = vmatmul.mubr.bf16.gmra.mrb[0].mxu0 %v1032
      %v1126 = vpop.f32.mrb[0].mxu0
      %v1127 = vadd.f32 %v835, %v1126
      %v1128 = vpop.f32.mrb[0].mxu0
      %v1129 = vpop.f32.mrb[0].mxu0
      %v1130 = vadd.f32 %v838, %v1129
      %v1131 = vpop.f32.mrb[0].mxu0
      %1132 = vmatprep.mubr.bf16.mxu0 0
      %1133 = vmatmul.mubr.bf16.gmra.mrb[0].mxu0 %v1035
      %v1134 = vpop.f32.mrb[0].mxu0
      %v1135 = vadd.f32 %v843, %v1134
      %v1136 = vpop.f32.mrb[0].mxu0
      %v1137 = vpop.f32.mrb[0].mxu0
      %v1138 = vadd.f32 %v846, %v1137
      %v1139 = vpop.f32.mrb[0].mxu0
      %1140 = vmatprep.mubr.bf16.mxu0 0
      %1141 = vmatmul.mubr.bf16.gmra.mrb[0].mxu0 %v1038
      %v1142 = vpop.f32.mrb[0].mxu0
      %v1143 = vadd.f32 %v851, %v1142
      %v1144 = vpop.f32.mrb[0].mxu0
      %v1145 = vpop.f32.mrb[0].mxu0
      %v1146 = vadd.f32 %v854, %v1145
      %v1147 = vpop.f32.mrb[0].mxu0
      %1148 = vmatprep.mubr.bf16.mxu0 0
      %1149 = vmatmul.mubr.bf16.gmra.mrb[0].mxu0 %v1041
      %v1150 = vpop.f32.mrb[0].mxu0
      %v1151 = vadd.f32 %v859, %v1150
      %v1152 = vpop.f32.mrb[0].mxu0
      %v1153 = vpop.f32.mrb[0].mxu0
      %v1154 = vadd.f32 %v862, %v1153
      %v1155 = vpop.f32.mrb[0].mxu0
      %1156 = vmatprep.mubr.bf16.mxu0 0
      %1157 = vmatmul.mubr.bf16.gmra.mrb[0].mxu0 %v1044
      %v1158 = vpop.f32.mrb[0].mxu0
      %v1159 = vadd.f32 %v867, %v1158
      %v1160 = vpop.f32.mrb[0].mxu0
      %v1161 = vpop.f32.mrb[0].mxu0
      %v1162 = vadd.f32 %v870, %v1161
      %v1163 = vpop.f32.mrb[0].mxu0
      %1164 = vmatprep.mubr.bf16.mxu0 0
      %1165 = vmatmul.mubr.bf16.gmra.mrb[0].mxu0 %v1047
      %v1166 = vpop.f32.mrb[0].mxu0
      %v1167 = vadd.f32 %v875, %v1166
      %v1168 = vpop.f32.mrb[0].mxu0
      %v1169 = vpop.f32.mrb[0].mxu0
      %v1170 = vadd.f32 %v878, %v1169
      %v1171 = vpop.f32.mrb[0].mxu0
      %1172 = vmatprep.mubr.bf16.mxu0 0
      %1173 = vmatmul.mubr.bf16.gmra.mrb[0].mxu0 %v1050
      %v1174 = vpop.f32.mrb[0].mxu0
      %v1175 = vadd.f32 %v883, %v1174
      %v1176 = vpop.f32.mrb[0].mxu0
      %v1177 = vpop.f32.mrb[0].mxu0
      %v1178 = vadd.f32 %v886, %v1177
      %v1179 = vpop.f32.mrb[0].mxu0
      %1180 = vmatprep.mubr.bf16.mxu0 0
      %1181 = vmatmul.mubr.bf16.gmra.mrb[0].mxu0 %v1053
      %v1182 = vpop.f32.mrb[0].mxu0
      %v1183 = vadd.f32 %v891, %v1182
      %v1184 = vpop.f32.mrb[0].mxu0
      %v1185 = vpop.f32.mrb[0].mxu0
      %v1186 = vadd.f32 %v894, %v1185
      %v1187 = vpop.f32.mrb[0].mxu0
      %1188 = vmatprep.mubr.bf16.mxu0 0
      %1189 = vmatmul.mubr.bf16.gmra.mrb[0].mxu0 %v1056
      %v1190 = vpop.f32.mrb[0].mxu0
      %v1191 = vadd.f32 %v899, %v1190
      %v1192 = vpop.f32.mrb[0].mxu0
      %v1193 = vpop.f32.mrb[0].mxu0
      %v1194 = vadd.f32 %v902, %v1193
      %v1195 = vpop.f32.mrb[0].mxu0
      %1196 = vmatprep.mubr.bf16.mxu0 0
      %1197 = vmatmul.mubr.bf16.gmra.mrb[0].mxu0 %v1059
      %v1198 = vpop.f32.mrb[0].mxu0
      %v1199 = vadd.f32 %v907, %v1198
      %v1200 = vpop.f32.mrb[0].mxu0
      %v1201 = vpop.f32.mrb[0].mxu0
      %v1202 = vadd.f32 %v910, %v1201
      %v1203 = vpop.f32.mrb[0].mxu0
      %1204 = vmatprep.mubr.bf16.mxu0 0
      %1205 = vmatmul.mubr.bf16.gmra.mrb[0].mxu0 %v1062
      %v1206 = vpop.f32.mrb[0].mxu0
      %v1207 = vadd.f32 %v915, %v1206
      %v1208 = vpop.f32.mrb[0].mxu0
      %v1209 = vpop.f32.mrb[0].mxu0
      %v1210 = vadd.f32 %v918, %v1209
      %v1211 = vpop.f32.mrb[0].mxu0
      %1212 = vmatprep.mubr.bf16.mxu0 0
      %1213 = vmatmul.mubr.bf16.gmra.mrb[0].mxu0 %v1065
      %v1214 = vpop.f32.mrb[0].mxu0
      %v1215 = vadd.f32 %v923, %v1214
      %v1216 = vpop.f32.mrb[0].mxu0
      %v1217 = vpop.f32.mrb[0].mxu0
      %v1218 = vadd.f32 %v926, %v1217
      %v1219 = vpop.f32.mrb[0].mxu0
      %1220 = vmatprep.mubr.bf16.mxu0 0
      %1221 = vmatmul.mubr.bf16.gmra.mrb[0].mxu0 %v1068
      %v1222 = vpop.f32.mrb[0].mxu0
      %v1223 = vadd.f32 %v931, %v1222
      %v1224 = vpop.f32.mrb[0].mxu0
      %v1225 = vpop.f32.mrb[0].mxu0
      %v1226 = vadd.f32 %v934, %v1225
      %v1227 = vpop.f32.mrb[0].mxu0
      %1228 = vmatprep.mubr.bf16.mxu0 0
      %1229 = vmatmul.mubr.bf16.gmra.mrb[0].mxu0 %v1071
      %v1230 = vpop.f32.mrb[0].mxu0
      %v1231 = vadd.f32 %v939, %v1230
      %v1232 = vpop.f32.mrb[0].mxu0
      %v1233 = vpop.f32.mrb[0].mxu0
      %v1234 = vadd.f32 %v942, %v1233
      %v1235 = vpop.f32.mrb[0].mxu0
      %1236 = vdwg.mxu0
      %v1237 = vld [vmem:[%s244] sm:$0xe]
      %v1238 = vld [vmem:[%s244 + $0xc] sm:$0xe]
      %v1239 = vld [vmem:[%s244 + $0x18] sm:$0xe]
      %v1240 = vld [vmem:[%s244 + $0x24] sm:$0xe]
      %v1241 = vld [vmem:[%s244 + $0x30] sm:$0xe]
      %v1242 = vld [vmem:[%s244 + $0x3c] sm:$0xe]
      %v1243 = vld [vmem:[%s244 + $0x48] sm:$0xe]
      %v1244 = vld [vmem:[%s244 + $0x54] sm:$0xe]
      %v1245 = vld [vmem:[%s244 + $0x60] sm:$0xe]
      %v1246 = vld [vmem:[%s244 + $0x6c] sm:$0xe]
      %v1247 = vld [vmem:[%s244 + $0x78] sm:$0xe]
      %v1248 = vld [vmem:[%s244 + $0x84] sm:$0xe]
      %v1249 = vld [vmem:[%s244 + $0x90] sm:$0xe]
      %v1250 = vld [vmem:[%s244 + $0x9c] sm:$0xe]
      %v1251 = vld [vmem:[%s244 + $0xa8] sm:$0xe]
      %v1252 = vld [vmem:[%s244 + $0xb4] sm:$0xe]
      %vm1285 = vcmask 1042432
      %vm1286 = vcmask 1046532
      %vm1287 = vmor %vm1285, %vm1286
      %v1288 = vrot.slane %v1237, 5
      %v1289 = vrot.slane %v1288, 4
      %v1290 = vrot.slane %v246, 5
      %v1291 = vsel %vm1287, %v1289, %v1290
      %v1292 = vrot.slane %v1290, 4
      %v1293 = vrot.slane %v278, 5
      %v1294 = vsel %vm1287, %v1292, %v1293
      %v1295 = vrot.slane %v1238, 5
      %v1296 = vrot.slane %v1295, 4
      %v1297 = vrot.slane %v248, 5
      %v1298 = vsel %vm1287, %v1296, %v1297
      %v1299 = vrot.slane %v1297, 4
      %v1300 = vrot.slane %v279, 5
      %v1301 = vsel %vm1287, %v1299, %v1300
      %v1302 = vrot.slane %v1239, 5
      %v1303 = vrot.slane %v1302, 4
      %v1304 = vrot.slane %v250, 5
      %v1305 = vsel %vm1287, %v1303, %v1304
      %v1306 = vrot.slane %v1304, 4
      %v1307 = vrot.slane %v280, 5
      %v1308 = vsel %vm1287, %v1306, %v1307
      %v1309 = vrot.slane %v1240, 5
      %v1310 = vrot.slane %v1309, 4
      %v1311 = vrot.slane %v252, 5
      %v1312 = vsel %vm1287, %v1310, %v1311
      %v1313 = vrot.slane %v1311, 4
      %v1314 = vrot.slane %v281, 5
      %v1315 = vsel %vm1287, %v1313, %v1314
      %v1316 = vrot.slane %v1241, 5
      %v1317 = vrot.slane %v1316, 4
      %v1318 = vrot.slane %v254, 5
      %v1319 = vsel %vm1287, %v1317, %v1318
      %v1320 = vrot.slane %v1318, 4
      %v1321 = vrot.slane %v282, 5
      %v1322 = vsel %vm1287, %v1320, %v1321
      %v1323 = vrot.slane %v1242, 5
      %v1324 = vrot.slane %v1323, 4
      %v1325 = vrot.slane %v256, 5
      %v1326 = vsel %vm1287, %v1324, %v1325
      %v1327 = vrot.slane %v1325, 4
      %v1328 = vrot.slane %v283, 5
      %v1329 = vsel %vm1287, %v1327, %v1328
      %v1330 = vrot.slane %v1243, 5
      %v1331 = vrot.slane %v1330, 4
      %v1332 = vrot.slane %v258, 5
      %v1333 = vsel %vm1287, %v1331, %v1332
      %v1334 = vrot.slane %v1332, 4
      %v1335 = vrot.slane %v284, 5
      %v1336 = vsel %vm1287, %v1334, %v1335
      %v1337 = vrot.slane %v1244, 5
      %v1338 = vrot.slane %v1337, 4
      %v1339 = vrot.slane %v260, 5
      %v1340 = vsel %vm1287, %v1338, %v1339
      %v1341 = vrot.slane %v1339, 4
      %v1342 = vrot.slane %v285, 5
      %v1343 = vsel %vm1287, %v1341, %v1342
      %v1344 = vrot.slane %v1245, 5
      %v1345 = vrot.slane %v1344, 4
      %v1346 = vrot.slane %v262, 5
      %v1347 = vsel %vm1287, %v1345, %v1346
      %v1348 = vrot.slane %v1346, 4
      %v1349 = vrot.slane %v286, 5
      %v1350 = vsel %vm1287, %v1348, %v1349
      %v1351 = vrot.slane %v1246, 5
      %v1352 = vrot.slane %v1351, 4
      %v1353 = vrot.slane %v264, 5
      %v1354 = vsel %vm1287, %v1352, %v1353
      %v1355 = vrot.slane %v1353, 4
      %v1356 = vrot.slane %v287, 5
      %v1357 = vsel %vm1287, %v1355, %v1356
      %v1358 = vrot.slane %v1247, 5
      %v1359 = vrot.slane %v1358, 4
      %v1360 = vrot.slane %v266, 5
      %v1361 = vsel %vm1287, %v1359, %v1360
      %v1362 = vrot.slane %v1360, 4
      %v1363 = vrot.slane %v288, 5
      %v1364 = vsel %vm1287, %v1362, %v1363
      %v1365 = vrot.slane %v1248, 5
      %v1366 = vrot.slane %v1365, 4
      %v1367 = vrot.slane %v268, 5
      %v1368 = vsel %vm1287, %v1366, %v1367
      %v1369 = vrot.slane %v1367, 4
      %v1370 = vrot.slane %v289, 5
      %v1371 = vsel %vm1287, %v1369, %v1370
      %v1372 = vrot.slane %v1249, 5
      %v1373 = vrot.slane %v1372, 4
      %v1374 = vrot.slane %v270, 5
      %v1375 = vsel %vm1287, %v1373, %v1374
      %v1376 = vrot.slane %v1374, 4
      %v1377 = vrot.slane %v290, 5
      %v1378 = vsel %vm1287, %v1376, %v1377
      %v1379 = vrot.slane %v1250, 5
      %v1380 = vrot.slane %v1379, 4
      %v1381 = vrot.slane %v272, 5
      %v1382 = vsel %vm1287, %v1380, %v1381
      %v1383 = vrot.slane %v1381, 4
      %v1384 = vrot.slane %v291, 5
      %v1385 = vsel %vm1287, %v1383, %v1384
      %v1386 = vrot.slane %v1251, 5
      %v1387 = vrot.slane %v1386, 4
      %v1388 = vrot.slane %v274, 5
      %v1389 = vsel %vm1287, %v1387, %v1388
      %v1390 = vrot.slane %v1388, 4
      %v1391 = vrot.slane %v292, 5
      %v1392 = vsel %vm1287, %v1390, %v1391
      %v1393 = vrot.slane %v1252, 5
      %v1394 = vrot.slane %v1393, 4
      %v1395 = vrot.slane %v276, 5
      %v1396 = vsel %vm1287, %v1394, %v1395
      %v1397 = vrot.slane %v1395, 4
      %v1398 = vrot.slane %v293, 5
      %v1399 = vsel %vm1287, %v1397, %v1398
      %s1400 = scalar_lea.vmem %s223, 4
      %v1401 = vld [vmem:[%s1400] sm:$0x3]
      %v1402 = vunpack.c.l.b16 %v1291
      %v1403 = vunpack.c.l.b16 %v1294
      %v1404 = vunpack.c.l.b16 %v1298
      %v1405 = vunpack.c.l.b16 %v1301
      %v1406 = vunpack.c.l.b16 %v1305
      %v1407 = vunpack.c.l.b16 %v1308
      %v1408 = vunpack.c.l.b16 %v1312
      %v1409 = vunpack.c.l.b16 %v1315
      %v1410 = vunpack.c.l.b16 %v1319
      %v1411 = vunpack.c.l.b16 %v1322
      %v1412 = vunpack.c.l.b16 %v1326
      %v1413 = vunpack.c.l.b16 %v1329
      %v1414 = vunpack.c.l.b16 %v1333
      %v1415 = vunpack.c.l.b16 %v1336
      %v1416 = vunpack.c.l.b16 %v1340
      %v1417 = vunpack.c.l.b16 %v1343
      %v1418 = vunpack.c.l.b16 %v1347
      %v1419 = vunpack.c.l.b16 %v1350
      %v1420 = vunpack.c.l.b16 %v1354
      %v1421 = vunpack.c.l.b16 %v1357
      %v1422 = vunpack.c.l.b16 %v1361
      %v1423 = vunpack.c.l.b16 %v1364
      %v1424 = vunpack.c.l.b16 %v1368
      %v1425 = vunpack.c.l.b16 %v1371
      %v1426 = vunpack.c.l.b16 %v1375
      %v1427 = vunpack.c.l.b16 %v1378
      %v1428 = vunpack.c.l.b16 %v1382
      %v1429 = vunpack.c.l.b16 %v1385
      %v1430 = vunpack.c.l.b16 %v1389
      %v1431 = vunpack.c.l.b16 %v1392
      %v1432 = vunpack.c.l.b16 %v1396
      %v1433 = vunpack.c.l.b16 %v1399
      %v1434 = vpack.c.b16 %v1403, %v1402
      %v1435 = vpack.c.b16 %v1405, %v1404
      %v1436 = vpack.c.b16 %v1407, %v1406
      %v1437 = vpack.c.b16 %v1409, %v1408
      %v1438 = vpack.c.b16 %v1411, %v1410
      %v1439 = vpack.c.b16 %v1413, %v1412
      %v1440 = vpack.c.b16 %v1415, %v1414
      %v1441 = vpack.c.b16 %v1417, %v1416
      %v1442 = vpack.c.b16 %v1419, %v1418
      %v1443 = vpack.c.b16 %v1421, %v1420
      %v1444 = vpack.c.b16 %v1423, %v1422
      %v1445 = vpack.c.b16 %v1425, %v1424
      %v1446 = vpack.c.b16 %v1427, %v1426
      %v1447 = vpack.c.b16 %v1429, %v1428
      %v1448 = vpack.c.b16 %v1431, %v1430
      %v1449 = vpack.c.b16 %v1433, %v1432
      %v1451 = vsel %vm731, %v1434, 0
      %v1454 = vsel %vm731, %v1435, 0
      %v1457 = vsel %vm731, %v1436, 0
      %v1460 = vsel %vm731, %v1437, 0
      %v1463 = vsel %vm731, %v1438, 0
      %v1466 = vsel %vm731, %v1439, 0
      %v1469 = vsel %vm731, %v1440, 0
      %v1472 = vsel %vm731, %v1441, 0
      %v1475 = vsel %vm731, %v1442, 0
      %v1478 = vsel %vm731, %v1443, 0
      %v1481 = vsel %vm731, %v1444, 0
      %v1484 = vsel %vm731, %v1445, 0
      %v1487 = vsel %vm731, %v1446, 0
      %v1490 = vsel %vm731, %v1447, 0
      %v1493 = vsel %vm731, %v1448, 0
      %v1496 = vsel %vm731, %v1449, 0
      %v1499 = vsel %vm780, %v1401, 0
      %1501 = vmatprep.subr.bf16.mxu0 0
      %1502 = vmatpush1.bf16.msra.mxu0 %v1499
      %1503 = vmatprep.subr.bf16.mxu0 0
      %1504 = vmatpush1.bf16.msra.mxu0 0
      %1505 = vmatprep.subr.bf16.mxu0 0
      %1506 = vmatpush1.bf16.msra.mxu0 0
      %1507 = vmatprep.subr.bf16.mxu0 0
      %1508 = vmatpush1.bf16.msra.mxu0 0
      %1509 = vmatprep.subr.bf16.mxu0 0
      %1510 = vmatpush1.bf16.msra.mxu0 0
      %1511 = vmatprep.subr.bf16.mxu0 0
      %1512 = vmatpush1.bf16.msra.mxu0 0
      %1513 = vmatprep.subr.bf16.mxu0 0
      %1514 = vmatpush1.bf16.msra.mxu0 0
      %1515 = vmatprep.subr.bf16.mxu0 0
      %1516 = vmatpush1.bf16.msra.mxu0 0
      %1517 = vmatprep.subr.bf16.mxu0 0
      %1518 = vmatpush1.bf16.msra.mxu0 0
      %1519 = vmatprep.subr.bf16.mxu0 0
      %1520 = vmatpush1.bf16.msra.mxu0 0
      %1521 = vmatprep.subr.bf16.mxu0 0
      %1522 = vmatpush1.bf16.msra.mxu0 0
      %1523 = vmatprep.subr.bf16.mxu0 0
      %1524 = vmatpush1.bf16.msra.mxu0 0
      %1525 = vmatprep.subr.bf16.mxu0 0
      %1526 = vmatpush1.bf16.msra.mxu0 0
      %1527 = vmatprep.subr.bf16.mxu0 0
      %1528 = vmatpush1.bf16.msra.mxu0 0
      %1529 = vmatprep.subr.bf16.mxu0 0
      %1530 = vmatpush1.bf16.msra.mxu0 0
      %1531 = vmatprep.subr.bf16.mxu0 0
      %1532 = vmatpush1.bf16.msra.mxu0 0
      %1533 = vmatprep.mubr.bf16.mxu0 0
      %1534 = vmatmul.mubr.bf16.gmra.mrb[0].mxu0 %v1451
      %v1535 = vpop.f32.mrb[0].mxu0
      %v1536 = vadd.f32 0.0, %v1535
      %v1537 = vpop.f32.mrb[0].mxu0
      %v1538 = vpop.f32.mrb[0].mxu0
      %v1539 = vadd.f32 0.0, %v1538
      %v1540 = vpop.f32.mrb[0].mxu0
      %1541 = vmatprep.mubr.bf16.mxu0 0
      %1542 = vmatmul.mubr.bf16.gmra.mrb[0].mxu0 %v1454
      %v1543 = vpop.f32.mrb[0].mxu0
      %v1544 = vadd.f32 0.0, %v1543
      %v1545 = vpop.f32.mrb[0].mxu0
      %v1546 = vpop.f32.mrb[0].mxu0
      %v1547 = vadd.f32 0.0, %v1546
      %v1548 = vpop.f32.mrb[0].mxu0
      %1549 = vmatprep.mubr.bf16.mxu0 0
      %1550 = vmatmul.mubr.bf16.gmra.mrb[0].mxu0 %v1457
      %v1551 = vpop.f32.mrb[0].mxu0
      %v1552 = vadd.f32 0.0, %v1551
      %v1553 = vpop.f32.mrb[0].mxu0
      %v1554 = vpop.f32.mrb[0].mxu0
      %v1555 = vadd.f32 0.0, %v1554
      %v1556 = vpop.f32.mrb[0].mxu0
      %1557 = vmatprep.mubr.bf16.mxu0 0
      %1558 = vmatmul.mubr.bf16.gmra.mrb[0].mxu0 %v1460
      %v1559 = vpop.f32.mrb[0].mxu0
      %v1560 = vadd.f32 0.0, %v1559
      %v1561 = vpop.f32.mrb[0].mxu0
      %v1562 = vpop.f32.mrb[0].mxu0
      %v1563 = vadd.f32 0.0, %v1562
      %v1564 = vpop.f32.mrb[0].mxu0
      %1565 = vmatprep.mubr.bf16.mxu0 0
      %1566 = vmatmul.mubr.bf16.gmra.mrb[0].mxu0 %v1463
      %v1567 = vpop.f32.mrb[0].mxu0
      %v1568 = vadd.f32 0.0, %v1567
      %v1569 = vpop.f32.mrb[0].mxu0
      %v1570 = vpop.f32.mrb[0].mxu0
      %v1571 = vadd.f32 0.0, %v1570
      %v1572 = vpop.f32.mrb[0].mxu0
      %1573 = vmatprep.mubr.bf16.mxu0 0
      %1574 = vmatmul.mubr.bf16.gmra.mrb[0].mxu0 %v1466
      %v1575 = vpop.f32.mrb[0].mxu0
      %v1576 = vadd.f32 0.0, %v1575
      %v1577 = vpop.f32.mrb[0].mxu0
      %v1578 = vpop.f32.mrb[0].mxu0
      %v1579 = vadd.f32 0.0, %v1578
      %v1580 = vpop.f32.mrb[0].mxu0
      %1581 = vmatprep.mubr.bf16.mxu0 0
      %1582 = vmatmul.mubr.bf16.gmra.mrb[0].mxu0 %v1469
      %v1583 = vpop.f32.mrb[0].mxu0
      %v1584 = vadd.f32 0.0, %v1583
      %v1585 = vpop.f32.mrb[0].mxu0
      %v1586 = vpop.f32.mrb[0].mxu0
      %v1587 = vadd.f32 0.0, %v1586
      %v1588 = vpop.f32.mrb[0].mxu0
      %1589 = vmatprep.mubr.bf16.mxu0 0
      %1590 = vmatmul.mubr.bf16.gmra.mrb[0].mxu0 %v1472
      %v1591 = vpop.f32.mrb[0].mxu0
      %v1592 = vadd.f32 0.0, %v1591
      %v1593 = vpop.f32.mrb[0].mxu0
      %v1594 = vpop.f32.mrb[0].mxu0
      %v1595 = vadd.f32 0.0, %v1594
      %v1596 = vpop.f32.mrb[0].mxu0
      %1597 = vmatprep.mubr.bf16.mxu0 0
      %1598 = vmatmul.mubr.bf16.gmra.mrb[0].mxu0 %v1475
      %v1599 = vpop.f32.mrb[0].mxu0
      %v1600 = vadd.f32 0.0, %v1599
      %v1601 = vpop.f32.mrb[0].mxu0
      %v1602 = vpop.f32.mrb[0].mxu0
      %v1603 = vadd.f32 0.0, %v1602
      %v1604 = vpop.f32.mrb[0].mxu0
      %1605 = vmatprep.mubr.bf16.mxu0 0
      %1606 = vmatmul.mubr.bf16.gmra.mrb[0].mxu0 %v1478
      %v1607 = vpop.f32.mrb[0].mxu0
      %v1608 = vadd.f32 0.0, %v1607
      %v1609 = vpop.f32.mrb[0].mxu0
      %v1610 = vpop.f32.mrb[0].mxu0
      %v1611 = vadd.f32 0.0, %v1610
      %v1612 = vpop.f32.mrb[0].mxu0
      %1613 = vmatprep.mubr.bf16.mxu0 0
      %1614 = vmatmul.mubr.bf16.gmra.mrb[0].mxu0 %v1481
      %v1615 = vpop.f32.mrb[0].mxu0
      %v1616 = vadd.f32 0.0, %v1615
      %v1617 = vpop.f32.mrb[0].mxu0
      %v1618 = vpop.f32.mrb[0].mxu0
      %v1619 = vadd.f32 0.0, %v1618
      %v1620 = vpop.f32.mrb[0].mxu0
      %1621 = vmatprep.mubr.bf16.mxu0 0
      %1622 = vmatmul.mubr.bf16.gmra.mrb[0].mxu0 %v1484
      %v1623 = vpop.f32.mrb[0].mxu0
      %v1624 = vadd.f32 0.0, %v1623
      %v1625 = vpop.f32.mrb[0].mxu0
      %v1626 = vpop.f32.mrb[0].mxu0
      %v1627 = vadd.f32 0.0, %v1626
      %v1628 = vpop.f32.mrb[0].mxu0
      %1629 = vmatprep.mubr.bf16.mxu0 0
      %1630 = vmatmul.mubr.bf16.gmra.mrb[0].mxu0 %v1487
      %v1631 = vpop.f32.mrb[0].mxu0
      %v1632 = vadd.f32 0.0, %v1631
      %v1633 = vpop.f32.mrb[0].mxu0
      %v1634 = vpop.f32.mrb[0].mxu0
      %v1635 = vadd.f32 0.0, %v1634
      %v1636 = vpop.f32.mrb[0].mxu0
      %1637 = vmatprep.mubr.bf16.mxu0 0
      %1638 = vmatmul.mubr.bf16.gmra.mrb[0].mxu0 %v1490
      %v1639 = vpop.f32.mrb[0].mxu0
      %v1640 = vadd.f32 0.0, %v1639
      %v1641 = vpop.f32.mrb[0].mxu0
      %v1642 = vpop.f32.mrb[0].mxu0
      %v1643 = vadd.f32 0.0, %v1642
      %v1644 = vpop.f32.mrb[0].mxu0
      %1645 = vmatprep.mubr.bf16.mxu0 0
      %1646 = vmatmul.mubr.bf16.gmra.mrb[0].mxu0 %v1493
      %v1647 = vpop.f32.mrb[0].mxu0
      %v1648 = vadd.f32 0.0, %v1647
      %v1649 = vpop.f32.mrb[0].mxu0
      %v1650 = vpop.f32.mrb[0].mxu0
      %v1651 = vadd.f32 0.0, %v1650
      %v1652 = vpop.f32.mrb[0].mxu0
      %1653 = vmatprep.mubr.bf16.mxu0 0
      %1654 = vmatmul.mubr.bf16.gmra.mrb[0].mxu0 %v1496
      %v1655 = vpop.f32.mrb[0].mxu0
      %v1656 = vadd.f32 0.0, %v1655
      %v1657 = vpop.f32.mrb[0].mxu0
      %v1658 = vpop.f32.mrb[0].mxu0
      %v1659 = vadd.f32 0.0, %v1658
      %v1660 = vpop.f32.mrb[0].mxu0
      %1661 = vdwg.mxu0
      %v1662 = vadd.f32 %v1111, %v1536
      %v1663 = vadd.f32 %v1114, %v1539
      %v1664 = vadd.f32 %v1119, %v1544
      %v1665 = vadd.f32 %v1122, %v1547
      %v1666 = vadd.f32 %v1127, %v1552
      %v1667 = vadd.f32 %v1130, %v1555
      %v1668 = vadd.f32 %v1135, %v1560
      %v1669 = vadd.f32 %v1138, %v1563
      %v1670 = vadd.f32 %v1143, %v1568
      %v1671 = vadd.f32 %v1146, %v1571
      %v1672 = vadd.f32 %v1151, %v1576
      %v1673 = vadd.f32 %v1154, %v1579
      %v1674 = vadd.f32 %v1159, %v1584
      %v1675 = vadd.f32 %v1162, %v1587
      %v1676 = vadd.f32 %v1167, %v1592
      %v1677 = vadd.f32 %v1170, %v1595
      %v1678 = vadd.f32 %v1175, %v1600
      %v1679 = vadd.f32 %v1178, %v1603
      %v1680 = vadd.f32 %v1183, %v1608
      %v1681 = vadd.f32 %v1186, %v1611
      %v1682 = vadd.f32 %v1191, %v1616
      %v1683 = vadd.f32 %v1194, %v1619
      %v1684 = vadd.f32 %v1199, %v1624
      %v1685 = vadd.f32 %v1202, %v1627
      %v1686 = vadd.f32 %v1207, %v1632
      %v1687 = vadd.f32 %v1210, %v1635
      %v1688 = vadd.f32 %v1215, %v1640
      %v1689 = vadd.f32 %v1218, %v1643
      %v1690 = vadd.f32 %v1223, %v1648
      %v1691 = vadd.f32 %v1226, %v1651
      %v1692 = vadd.f32 %v1231, %v1656
      %v1693 = vadd.f32 %v1234, %v1659
      %s1694 = sadd.s32 %s241, 1
      %s1695 = smul.u32 %s1694, 3
      %s1696 = smul.addr %s1695, 4
      %s1697 = scalar_lea.vmem %s219, %s1696
      %v1698 = vld [vmem:[%s1697] sm:$0xf]
      %v1699 = vld [vmem:[%s1697 + $0x4] sm:$0xf]
      %v1700 = vld [vmem:[%s1697 + $0xc] sm:$0xf]
      %v1701 = vld [vmem:[%s1697 + $0x10] sm:$0xf]
      %v1702 = vld [vmem:[%s1697 + $0x18] sm:$0xf]
      %v1703 = vld [vmem:[%s1697 + $0x1c] sm:$0xf]
      %v1704 = vld [vmem:[%s1697 + $0x24] sm:$0xf]
      %v1705 = vld [vmem:[%s1697 + $0x28] sm:$0xf]
      %v1706 = vld [vmem:[%s1697 + $0x30] sm:$0xf]
      %v1707 = vld [vmem:[%s1697 + $0x34] sm:$0xf]
      %v1708 = vld [vmem:[%s1697 + $0x3c] sm:$0xf]
      %v1709 = vld [vmem:[%s1697 + $0x40] sm:$0xf]
      %v1710 = vld [vmem:[%s1697 + $0x48] sm:$0xf]
      %v1711 = vld [vmem:[%s1697 + $0x4c] sm:$0xf]
      %v1712 = vld [vmem:[%s1697 + $0x54] sm:$0xf]
      %v1713 = vld [vmem:[%s1697 + $0x58] sm:$0xf]
      %v1714 = vld [vmem:[%s1697 + $0x60] sm:$0xf]
      %v1715 = vld [vmem:[%s1697 + $0x64] sm:$0xf]
      %v1716 = vld [vmem:[%s1697 + $0x6c] sm:$0xf]
      %v1717 = vld [vmem:[%s1697 + $0x70] sm:$0xf]
      %v1718 = vld [vmem:[%s1697 + $0x78] sm:$0xf]
      %v1719 = vld [vmem:[%s1697 + $0x7c] sm:$0xf]
      %v1720 = vld [vmem:[%s1697 + $0x84] sm:$0xf]
      %v1721 = vld [vmem:[%s1697 + $0x88] sm:$0xf]
      %v1722 = vld [vmem:[%s1697 + $0x90] sm:$0xf]
      %v1723 = vld [vmem:[%s1697 + $0x94] sm:$0xf]
      %v1724 = vld [vmem:[%s1697 + $0x9c] sm:$0xf]
      %v1725 = vld [vmem:[%s1697 + $0xa0] sm:$0xf]
      %v1726 = vld [vmem:[%s1697 + $0xa8] sm:$0xf]
      %v1727 = vld [vmem:[%s1697 + $0xac] sm:$0xf]
      %v1728 = vld [vmem:[%s1697 + $0xb4] sm:$0xf]
      %v1729 = vld [vmem:[%s1697 + $0xb8] sm:$0xf]
      %s1730 = scalar_lea.vmem %s223, 6
      %v1731 = vld [vmem:[%s1730] sm:$0x3]
      %v1764 = vunpack.c.l.b16 %v1698
      %v1765 = vunpack.c.l.b16 %v1699
      %v1766 = vunpack.c.l.b16 %v1700
      %v1767 = vunpack.c.l.b16 %v1701
      %v1768 = vunpack.c.l.b16 %v1702
      %v1769 = vunpack.c.l.b16 %v1703
      %v1770 = vunpack.c.l.b16 %v1704
      %v1771 = vunpack.c.l.b16 %v1705
      %v1772 = vunpack.c.l.b16 %v1706
      %v1773 = vunpack.c.l.b16 %v1707
      %v1774 = vunpack.c.l.b16 %v1708
      %v1775 = vunpack.c.l.b16 %v1709
      %v1776 = vunpack.c.l.b16 %v1710
      %v1777 = vunpack.c.l.b16 %v1711
      %v1778 = vunpack.c.l.b16 %v1712
      %v1779 = vunpack.c.l.b16 %v1713
      %v1780 = vunpack.c.l.b16 %v1714
      %v1781 = vunpack.c.l.b16 %v1715
      %v1782 = vunpack.c.l.b16 %v1716
      %v1783 = vunpack.c.l.b16 %v1717
      %v1784 = vunpack.c.l.b16 %v1718
      %v1785 = vunpack.c.l.b16 %v1719
      %v1786 = vunpack.c.l.b16 %v1720
      %v1787 = vunpack.c.l.b16 %v1721
      %v1788 = vunpack.c.l.b16 %v1722
      %v1789 = vunpack.c.l.b16 %v1723
      %v1790 = vunpack.c.l.b16 %v1724
      %v1791 = vunpack.c.l.b16 %v1725
      %v1792 = vunpack.c.l.b16 %v1726
      %v1793 = vunpack.c.l.b16 %v1727
      %v1794 = vunpack.c.l.b16 %v1728
      %v1795 = vunpack.c.l.b16 %v1729
      %v1796 = vpack.c.b16 %v1765, %v1764
      %v1797 = vpack.c.b16 %v1767, %v1766
      %v1798 = vpack.c.b16 %v1769, %v1768
      %v1799 = vpack.c.b16 %v1771, %v1770
      %v1800 = vpack.c.b16 %v1773, %v1772
      %v1801 = vpack.c.b16 %v1775, %v1774
      %v1802 = vpack.c.b16 %v1777, %v1776
      %v1803 = vpack.c.b16 %v1779, %v1778
      %v1804 = vpack.c.b16 %v1781, %v1780
      %v1805 = vpack.c.b16 %v1783, %v1782
      %v1806 = vpack.c.b16 %v1785, %v1784
      %v1807 = vpack.c.b16 %v1787, %v1786
      %v1808 = vpack.c.b16 %v1789, %v1788
      %v1809 = vpack.c.b16 %v1791, %v1790
      %v1810 = vpack.c.b16 %v1793, %v1792
      %v1811 = vpack.c.b16 %v1795, %v1794
      %v1813 = vsel %vm731, %v1796, 0
      %v1816 = vsel %vm731, %v1797, 0
      %v1819 = vsel %vm731, %v1798, 0
      %v1822 = vsel %vm731, %v1799, 0
      %v1825 = vsel %vm731, %v1800, 0
      %v1828 = vsel %vm731, %v1801, 0
      %v1831 = vsel %vm731, %v1802, 0
      %v1834 = vsel %vm731, %v1803, 0
      %v1837 = vsel %vm731, %v1804, 0
      %v1840 = vsel %vm731, %v1805, 0
      %v1843 = vsel %vm731, %v1806, 0
      %v1846 = vsel %vm731, %v1807, 0
      %v1849 = vsel %vm731, %v1808, 0
      %v1852 = vsel %vm731, %v1809, 0
      %v1855 = vsel %vm731, %v1810, 0
      %v1858 = vsel %vm731, %v1811, 0
      %v1861 = vsel %vm780, %v1731, 0
      %1863 = vmatprep.subr.bf16.mxu0 0
      %1864 = vmatpush1.bf16.msra.mxu0 %v1861
      %1865 = vmatprep.subr.bf16.mxu0 0
      %1866 = vmatpush1.bf16.msra.mxu0 0
      %1867 = vmatprep.subr.bf16.mxu0 0
      %1868 = vmatpush1.bf16.msra.mxu0 0
      %1869 = vmatprep.subr.bf16.mxu0 0
      %1870 = vmatpush1.bf16.msra.mxu0 0
      %1871 = vmatprep.subr.bf16.mxu0 0
      %1872 = vmatpush1.bf16.msra.mxu0 0
      %1873 = vmatprep.subr.bf16.mxu0 0
      %1874 = vmatpush1.bf16.msra.mxu0 0
      %1875 = vmatprep.subr.bf16.mxu0 0
      %1876 = vmatpush1.bf16.msra.mxu0 0
      %1877 = vmatprep.subr.bf16.mxu0 0
      %1878 = vmatpush1.bf16.msra.mxu0 0
      %1879 = vmatprep.subr.bf16.mxu0 0
      %1880 = vmatpush1.bf16.msra.mxu0 0
      %1881 = vmatprep.subr.bf16.mxu0 0
      %1882 = vmatpush1.bf16.msra.mxu0 0
      %1883 = vmatprep.subr.bf16.mxu0 0
      %1884 = vmatpush1.bf16.msra.mxu0 0
      %1885 = vmatprep.subr.bf16.mxu0 0
      %1886 = vmatpush1.bf16.msra.mxu0 0
      %1887 = vmatprep.subr.bf16.mxu0 0
      %1888 = vmatpush1.bf16.msra.mxu0 0
      %1889 = vmatprep.subr.bf16.mxu0 0
      %1890 = vmatpush1.bf16.msra.mxu0 0
      %1891 = vmatprep.subr.bf16.mxu0 0
      %1892 = vmatpush1.bf16.msra.mxu0 0
      %1893 = vmatprep.subr.bf16.mxu0 0
      %1894 = vmatpush1.bf16.msra.mxu0 0
      %1895 = vmatprep.mubr.bf16.mxu0 0
      %1896 = vmatmul.mubr.bf16.gmra.mrb[0].mxu0 %v1813
      %v1897 = vpop.f32.mrb[0].mxu0
      %v1898 = vadd.f32 0.0, %v1897
      %v1899 = vpop.f32.mrb[0].mxu0
      %v1900 = vpop.f32.mrb[0].mxu0
      %v1901 = vadd.f32 0.0, %v1900
      %v1902 = vpop.f32.mrb[0].mxu0
      %1903 = vmatprep.mubr.bf16.mxu0 0
      %1904 = vmatmul.mubr.bf16.gmra.mrb[0].mxu0 %v1816
      %v1905 = vpop.f32.mrb[0].mxu0
      %v1906 = vadd.f32 0.0, %v1905
      %v1907 = vpop.f32.mrb[0].mxu0
      %v1908 = vpop.f32.mrb[0].mxu0
      %v1909 = vadd.f32 0.0, %v1908
      %v1910 = vpop.f32.mrb[0].mxu0
      %1911 = vmatprep.mubr.bf16.mxu0 0
      %1912 = vmatmul.mubr.bf16.gmra.mrb[0].mxu0 %v1819
      %v1913 = vpop.f32.mrb[0].mxu0
      %v1914 = vadd.f32 0.0, %v1913
      %v1915 = vpop.f32.mrb[0].mxu0
      %v1916 = vpop.f32.mrb[0].mxu0
      %v1917 = vadd.f32 0.0, %v1916
      %v1918 = vpop.f32.mrb[0].mxu0
      %1919 = vmatprep.mubr.bf16.mxu0 0
      %1920 = vmatmul.mubr.bf16.gmra.mrb[0].mxu0 %v1822
      %v1921 = vpop.f32.mrb[0].mxu0
      %v1922 = vadd.f32 0.0, %v1921
      %v1923 = vpop.f32.mrb[0].mxu0
      %v1924 = vpop.f32.mrb[0].mxu0
      %v1925 = vadd.f32 0.0, %v1924
      %v1926 = vpop.f32.mrb[0].mxu0
      %1927 = vmatprep.mubr.bf16.mxu0 0
      %1928 = vmatmul.mubr.bf16.gmra.mrb[0].mxu0 %v1825
      %v1929 = vpop.f32.mrb[0].mxu0
      %v1930 = vadd.f32 0.0, %v1929
      %v1931 = vpop.f32.mrb[0].mxu0
      %v1932 = vpop.f32.mrb[0].mxu0
      %v1933 = vadd.f32 0.0, %v1932
      %v1934 = vpop.f32.mrb[0].mxu0
      %1935 = vmatprep.mubr.bf16.mxu0 0
      %1936 = vmatmul.mubr.bf16.gmra.mrb[0].mxu0 %v1828
      %v1937 = vpop.f32.mrb[0].mxu0
      %v1938 = vadd.f32 0.0, %v1937
      %v1939 = vpop.f32.mrb[0].mxu0
      %v1940 = vpop.f32.mrb[0].mxu0
      %v1941 = vadd.f32 0.0, %v1940
      %v1942 = vpop.f32.mrb[0].mxu0
      %1943 = vmatprep.mubr.bf16.mxu0 0
      %1944 = vmatmul.mubr.bf16.gmra.mrb[0].mxu0 %v1831
      %v1945 = vpop.f32.mrb[0].mxu0
      %v1946 = vadd.f32 0.0, %v1945
      %v1947 = vpop.f32.mrb[0].mxu0
      %v1948 = vpop.f32.mrb[0].mxu0
      %v1949 = vadd.f32 0.0, %v1948
      %v1950 = vpop.f32.mrb[0].mxu0
      %1951 = vmatprep.mubr.bf16.mxu0 0
      %1952 = vmatmul.mubr.bf16.gmra.mrb[0].mxu0 %v1834
      %v1953 = vpop.f32.mrb[0].mxu0
      %v1954 = vadd.f32 0.0, %v1953
      %v1955 = vpop.f32.mrb[0].mxu0
      %v1956 = vpop.f32.mrb[0].mxu0
      %v1957 = vadd.f32 0.0, %v1956
      %v1958 = vpop.f32.mrb[0].mxu0
      %1959 = vmatprep.mubr.bf16.mxu0 0
      %1960 = vmatmul.mubr.bf16.gmra.mrb[0].mxu0 %v1837
      %v1961 = vpop.f32.mrb[0].mxu0
      %v1962 = vadd.f32 0.0, %v1961
      %v1963 = vpop.f32.mrb[0].mxu0
      %v1964 = vpop.f32.mrb[0].mxu0
      %v1965 = vadd.f32 0.0, %v1964
      %v1966 = vpop.f32.mrb[0].mxu0
      %1967 = vmatprep.mubr.bf16.mxu0 0
      %1968 = vmatmul.mubr.bf16.gmra.mrb[0].mxu0 %v1840
      %v1969 = vpop.f32.mrb[0].mxu0
      %v1970 = vadd.f32 0.0, %v1969
      %v1971 = vpop.f32.mrb[0].mxu0
      %v1972 = vpop.f32.mrb[0].mxu0
      %v1973 = vadd.f32 0.0, %v1972
      %v1974 = vpop.f32.mrb[0].mxu0
      %1975 = vmatprep.mubr.bf16.mxu0 0
      %1976 = vmatmul.mubr.bf16.gmra.mrb[0].mxu0 %v1843
      %v1977 = vpop.f32.mrb[0].mxu0
      %v1978 = vadd.f32 0.0, %v1977
      %v1979 = vpop.f32.mrb[0].mxu0
      %v1980 = vpop.f32.mrb[0].mxu0
      %v1981 = vadd.f32 0.0, %v1980
      %v1982 = vpop.f32.mrb[0].mxu0
      %1983 = vmatprep.mubr.bf16.mxu0 0
      %1984 = vmatmul.mubr.bf16.gmra.mrb[0].mxu0 %v1846
      %v1985 = vpop.f32.mrb[0].mxu0
      %v1986 = vadd.f32 0.0, %v1985
      %v1987 = vpop.f32.mrb[0].mxu0
      %v1988 = vpop.f32.mrb[0].mxu0
      %v1989 = vadd.f32 0.0, %v1988
      %v1990 = vpop.f32.mrb[0].mxu0
      %1991 = vmatprep.mubr.bf16.mxu0 0
      %1992 = vmatmul.mubr.bf16.gmra.mrb[0].mxu0 %v1849
      %v1993 = vpop.f32.mrb[0].mxu0
      %v1994 = vadd.f32 0.0, %v1993
      %v1995 = vpop.f32.mrb[0].mxu0
      %v1996 = vpop.f32.mrb[0].mxu0
      %v1997 = vadd.f32 0.0, %v1996
      %v1998 = vpop.f32.mrb[0].mxu0
      %1999 = vmatprep.mubr.bf16.mxu0 0
      %2000 = vmatmul.mubr.bf16.gmra.mrb[0].mxu0 %v1852
      %v2001 = vpop.f32.mrb[0].mxu0
      %v2002 = vadd.f32 0.0, %v2001
      %v2003 = vpop.f32.mrb[0].mxu0
      %v2004 = vpop.f32.mrb[0].mxu0
      %v2005 = vadd.f32 0.0, %v2004
      %v2006 = vpop.f32.mrb[0].mxu0
      %2007 = vmatprep.mubr.bf16.mxu0 0
      %2008 = vmatmul.mubr.bf16.gmra.mrb[0].mxu0 %v1855
      %v2009 = vpop.f32.mrb[0].mxu0
      %v2010 = vadd.f32 0.0, %v2009
      %v2011 = vpop.f32.mrb[0].mxu0
      %v2012 = vpop.f32.mrb[0].mxu0
      %v2013 = vadd.f32 0.0, %v2012
      %v2014 = vpop.f32.mrb[0].mxu0
      %2015 = vmatprep.mubr.bf16.mxu0 0
      %2016 = vmatmul.mubr.bf16.gmra.mrb[0].mxu0 %v1858
      %v2017 = vpop.f32.mrb[0].mxu0
      %v2018 = vadd.f32 0.0, %v2017
      %v2019 = vpop.f32.mrb[0].mxu0
      %v2020 = vpop.f32.mrb[0].mxu0
      %v2021 = vadd.f32 0.0, %v2020
      %v2022 = vpop.f32.mrb[0].mxu0
      %2023 = vdwg.mxu0
      %v2024 = vadd.f32 %v1662, %v1898
      %v2025 = vadd.f32 %v1663, %v1901
      %v2026 = vadd.f32 %v1664, %v1906
      %v2027 = vadd.f32 %v1665, %v1909
      %v2028 = vadd.f32 %v1666, %v1914
      %v2029 = vadd.f32 %v1667, %v1917
      %v2030 = vadd.f32 %v1668, %v1922
      %v2031 = vadd.f32 %v1669, %v1925
      %v2032 = vadd.f32 %v1670, %v1930
      %v2033 = vadd.f32 %v1671, %v1933
      %v2034 = vadd.f32 %v1672, %v1938
      %v2035 = vadd.f32 %v1673, %v1941
      %v2036 = vadd.f32 %v1674, %v1946
      %v2037 = vadd.f32 %v1675, %v1949
      %v2038 = vadd.f32 %v1676, %v1954
      %v2039 = vadd.f32 %v1677, %v1957
      %v2040 = vadd.f32 %v1678, %v1962
      %v2041 = vadd.f32 %v1679, %v1965
      %v2042 = vadd.f32 %v1680, %v1970
      %v2043 = vadd.f32 %v1681, %v1973
      %v2044 = vadd.f32 %v1682, %v1978
      %v2045 = vadd.f32 %v1683, %v1981
      %v2046 = vadd.f32 %v1684, %v1986
      %v2047 = vadd.f32 %v1685, %v1989
      %v2048 = vadd.f32 %v1686, %v1994
      %v2049 = vadd.f32 %v1687, %v1997
      %v2050 = vadd.f32 %v1688, %v2002
      %v2051 = vadd.f32 %v1689, %v2005
      %v2052 = vadd.f32 %v1690, %v2010
      %v2053 = vadd.f32 %v1691, %v2013
      %v2054 = vadd.f32 %v1692, %v2018
      %v2055 = vadd.f32 %v1693, %v2021
      %v2056 = vld [vmem:[%s1697] sm:$0xf]
      %v2057 = vld [vmem:[%s1697 + $0x4] sm:$0xf]
      %v2058 = vld [vmem:[%s1697 + $0x8] sm:$0x1]
      %v2059 = vld [vmem:[%s1697 + $0xc] sm:$0xf]
      %v2060 = vld [vmem:[%s1697 + $0x10] sm:$0xf]
      %v2061 = vld [vmem:[%s1697 + $0x14] sm:$0x1]
      %v2062 = vld [vmem:[%s1697 + $0x18] sm:$0xf]
      %v2063 = vld [vmem:[%s1697 + $0x1c] sm:$0xf]
      %v2064 = vld [vmem:[%s1697 + $0x20] sm:$0x1]
      %v2065 = vld [vmem:[%s1697 + $0x24] sm:$0xf]
      %v2066 = vld [vmem:[%s1697 + $0x28] sm:$0xf]
      %v2067 = vld [vmem:[%s1697 + $0x2c] sm:$0x1]
      %v2068 = vld [vmem:[%s1697 + $0x30] sm:$0xf]
      %v2069 = vld [vmem:[%s1697 + $0x34] sm:$0xf]
      %v2070 = vld [vmem:[%s1697 + $0x38] sm:$0x1]
      %v2071 = vld [vmem:[%s1697 + $0x3c] sm:$0xf]
      %v2072 = vld [vmem:[%s1697 + $0x40] sm:$0xf]
      %v2073 = vld [vmem:[%s1697 + $0x44] sm:$0x1]
      %v2074 = vld [vmem:[%s1697 + $0x48] sm:$0xf]
      %v2075 = vld [vmem:[%s1697 + $0x4c] sm:$0xf]
      %v2076 = vld [vmem:[%s1697 + $0x50] sm:$0x1]
      %v2077 = vld [vmem:[%s1697 + $0x54] sm:$0xf]
      %v2078 = vld [vmem:[%s1697 + $0x58] sm:$0xf]
      %v2079 = vld [vmem:[%s1697 + $0x5c] sm:$0x1]
      %v2080 = vld [vmem:[%s1697 + $0x60] sm:$0xf]
      %v2081 = vld [vmem:[%s1697 + $0x64] sm:$0xf]
      %v2082 = vld [vmem:[%s1697 + $0x68] sm:$0x1]
      %v2083 = vld [vmem:[%s1697 + $0x6c] sm:$0xf]
      %v2084 = vld [vmem:[%s1697 + $0x70] sm:$0xf]
      %v2085 = vld [vmem:[%s1697 + $0x74] sm:$0x1]
      %v2086 = vld [vmem:[%s1697 + $0x78] sm:$0xf]
      %v2087 = vld [vmem:[%s1697 + $0x7c] sm:$0xf]
      %v2088 = vld [vmem:[%s1697 + $0x80] sm:$0x1]
      %v2089 = vld [vmem:[%s1697 + $0x84] sm:$0xf]
      %v2090 = vld [vmem:[%s1697 + $0x88] sm:$0xf]
      %v2091 = vld [vmem:[%s1697 + $0x8c] sm:$0x1]
      %v2092 = vld [vmem:[%s1697 + $0x90] sm:$0xf]
      %v2093 = vld [vmem:[%s1697 + $0x94] sm:$0xf]
      %v2094 = vld [vmem:[%s1697 + $0x98] sm:$0x1]
      %v2095 = vld [vmem:[%s1697 + $0x9c] sm:$0xf]
      %v2096 = vld [vmem:[%s1697 + $0xa0] sm:$0xf]
      %v2097 = vld [vmem:[%s1697 + $0xa4] sm:$0x1]
      %v2098 = vld [vmem:[%s1697 + $0xa8] sm:$0xf]
      %v2099 = vld [vmem:[%s1697 + $0xac] sm:$0xf]
      %v2100 = vld [vmem:[%s1697 + $0xb0] sm:$0x1]
      %v2101 = vld [vmem:[%s1697 + $0xb4] sm:$0xf]
      %v2102 = vld [vmem:[%s1697 + $0xb8] sm:$0xf]
      %v2103 = vld [vmem:[%s1697 + $0xbc] sm:$0x1]
      %v2105 = vshrl.u32 %v2056, 16
      %v2107 = vrot.slane %v2105, 4
      %v2108 = vshll.u32 %v2056, 16
      %v2110 = vrot.slane %v2108, 5
      %v2111 = vor.u32 %v2107, %v2110
      %v2112 = vrot.slane %v2111, 4
      %v2114 = vshll.u32 %v2057, 16
      %v2116 = vrot.slane %v2114, 5
      %v2117 = vsel %vm296, %v2112, %v2116
      %v2118 = vshrl.u32 %v2057, 16
      %v2120 = vrot.slane %v2118, 4
      %v2121 = vor.u32 %v2120, %v2116
      %v2122 = vrot.slane %v2121, 4
      %v2124 = vshll.u32 %v2058, 16
      %v2126 = vrot.slane %v2124, 5
      %v2127 = vsel %vm296, %v2122, %v2126
      %v2129 = vshrl.u32 %v2059, 16
      %v2131 = vrot.slane %v2129, 4
      %v2132 = vshll.u32 %v2059, 16
      %v2134 = vrot.slane %v2132, 5
      %v2135 = vor.u32 %v2131, %v2134
      %v2136 = vrot.slane %v2135, 4
      %v2138 = vshll.u32 %v2060, 16
      %v2140 = vrot.slane %v2138, 5
      %v2141 = vsel %vm296, %v2136, %v2140
      %v2142 = vshrl.u32 %v2060, 16
      %v2144 = vrot.slane %v2142, 4
      %v2145 = vor.u32 %v2144, %v2140
      %v2146 = vrot.slane %v2145, 4
      %v2148 = vshll.u32 %v2061, 16
      %v2150 = vrot.slane %v2148, 5
      %v2151 = vsel %vm296, %v2146, %v2150
      %v2153 = vshrl.u32 %v2062, 16
      %v2155 = vrot.slane %v2153, 4
      %v2156 = vshll.u32 %v2062, 16
      %v2158 = vrot.slane %v2156, 5
      %v2159 = vor.u32 %v2155, %v2158
      %v2160 = vrot.slane %v2159, 4
      %v2162 = vshll.u32 %v2063, 16
      %v2164 = vrot.slane %v2162, 5
      %v2165 = vsel %vm296, %v2160, %v2164
      %v2166 = vshrl.u32 %v2063, 16
      %v2168 = vrot.slane %v2166, 4
      %v2169 = vor.u32 %v2168, %v2164
      %v2170 = vrot.slane %v2169, 4
      %v2172 = vshll.u32 %v2064, 16
      %v2174 = vrot.slane %v2172, 5
      %v2175 = vsel %vm296, %v2170, %v2174
      %v2177 = vshrl.u32 %v2065, 16
      %v2179 = vrot.slane %v2177, 4
      %v2180 = vshll.u32 %v2065, 16
      %v2182 = vrot.slane %v2180, 5
      %v2183 = vor.u32 %v2179, %v2182
      %v2184 = vrot.slane %v2183, 4
      %v2186 = vshll.u32 %v2066, 16
      %v2188 = vrot.slane %v2186, 5
      %v2189 = vsel %vm296, %v2184, %v2188
      %v2190 = vshrl.u32 %v2066, 16
      %v2192 = vrot.slane %v2190, 4
      %v2193 = vor.u32 %v2192, %v2188
      %v2194 = vrot.slane %v2193, 4
      %v2196 = vshll.u32 %v2067, 16
      %v2198 = vrot.slane %v2196, 5
      %v2199 = vsel %vm296, %v2194, %v2198
      %v2201 = vshrl.u32 %v2068, 16
      %v2203 = vrot.slane %v2201, 4
      %v2204 = vshll.u32 %v2068, 16
      %v2206 = vrot.slane %v2204, 5
      %v2207 = vor.u32 %v2203, %v2206
      %v2208 = vrot.slane %v2207, 4
      %v2210 = vshll.u32 %v2069, 16
      %v2212 = vrot.slane %v2210, 5
      %v2213 = vsel %vm296, %v2208, %v2212
      %v2214 = vshrl.u32 %v2069, 16
      %v2216 = vrot.slane %v2214, 4
      %v2217 = vor.u32 %v2216, %v2212
      %v2218 = vrot.slane %v2217, 4
      %v2220 = vshll.u32 %v2070, 16
      %v2222 = vrot.slane %v2220, 5
      %v2223 = vsel %vm296, %v2218, %v2222
      %v2225 = vshrl.u32 %v2071, 16
      %v2227 = vrot.slane %v2225, 4
      %v2228 = vshll.u32 %v2071, 16
      %v2230 = vrot.slane %v2228, 5
      %v2231 = vor.u32 %v2227, %v2230
      %v2232 = vrot.slane %v2231, 4
      %v2234 = vshll.u32 %v2072, 16
      %v2236 = vrot.slane %v2234, 5
      %v2237 = vsel %vm296, %v2232, %v2236
      %v2238 = vshrl.u32 %v2072, 16
      %v2240 = vrot.slane %v2238, 4
      %v2241 = vor.u32 %v2240, %v2236
      %v2242 = vrot.slane %v2241, 4
      %v2244 = vshll.u32 %v2073, 16
      %v2246 = vrot.slane %v2244, 5
      %v2247 = vsel %vm296, %v2242, %v2246
      %v2249 = vshrl.u32 %v2074, 16
      %v2251 = vrot.slane %v2249, 4
      %v2252 = vshll.u32 %v2074, 16
      %v2254 = vrot.slane %v2252, 5
      %v2255 = vor.u32 %v2251, %v2254
      %v2256 = vrot.slane %v2255, 4
      %v2258 = vshll.u32 %v2075, 16
      %v2260 = vrot.slane %v2258, 5
      %v2261 = vsel %vm296, %v2256, %v2260
      %v2262 = vshrl.u32 %v2075, 16
      %v2264 = vrot.slane %v2262, 4
      %v2265 = vor.u32 %v2264, %v2260
      %v2266 = vrot.slane %v2265, 4
      %v2268 = vshll.u32 %v2076, 16
      %v2270 = vrot.slane %v2268, 5
      %v2271 = vsel %vm296, %v2266, %v2270
      %v2273 = vshrl.u32 %v2077, 16
      %v2275 = vrot.slane %v2273, 4
      %v2276 = vshll.u32 %v2077, 16
      %v2278 = vrot.slane %v2276, 5
      %v2279 = vor.u32 %v2275, %v2278
      %v2280 = vrot.slane %v2279, 4
      %v2282 = vshll.u32 %v2078, 16
      %v2284 = vrot.slane %v2282, 5
      %v2285 = vsel %vm296, %v2280, %v2284
      %v2286 = vshrl.u32 %v2078, 16
      %v2288 = vrot.slane %v2286, 4
      %v2289 = vor.u32 %v2288, %v2284
      %v2290 = vrot.slane %v2289, 4
      %v2292 = vshll.u32 %v2079, 16
      %v2294 = vrot.slane %v2292, 5
      %v2295 = vsel %vm296, %v2290, %v2294
      %v2297 = vshrl.u32 %v2080, 16
      %v2299 = vrot.slane %v2297, 4
      %v2300 = vshll.u32 %v2080, 16
      %v2302 = vrot.slane %v2300, 5
      %v2303 = vor.u32 %v2299, %v2302
      %v2304 = vrot.slane %v2303, 4
      %v2306 = vshll.u32 %v2081, 16
      %v2308 = vrot.slane %v2306, 5
      %v2309 = vsel %vm296, %v2304, %v2308
      %v2310 = vshrl.u32 %v2081, 16
      %v2312 = vrot.slane %v2310, 4
      %v2313 = vor.u32 %v2312, %v2308
      %v2314 = vrot.slane %v2313, 4
      %v2316 = vshll.u32 %v2082, 16
      %v2318 = vrot.slane %v2316, 5
      %v2319 = vsel %vm296, %v2314, %v2318
      %v2321 = vshrl.u32 %v2083, 16
      %v2323 = vrot.slane %v2321, 4
      %v2324 = vshll.u32 %v2083, 16
      %v2326 = vrot.slane %v2324, 5
      %v2327 = vor.u32 %v2323, %v2326
      %v2328 = vrot.slane %v2327, 4
      %v2330 = vshll.u32 %v2084, 16
      %v2332 = vrot.slane %v2330, 5
      %v2333 = vsel %vm296, %v2328, %v2332
      %v2334 = vshrl.u32 %v2084, 16
      %v2336 = vrot.slane %v2334, 4
      %v2337 = vor.u32 %v2336, %v2332
      %v2338 = vrot.slane %v2337, 4
      %v2340 = vshll.u32 %v2085, 16
      %v2342 = vrot.slane %v2340, 5
      %v2343 = vsel %vm296, %v2338, %v2342
      %v2345 = vshrl.u32 %v2086, 16
      %v2347 = vrot.slane %v2345, 4
      %v2348 = vshll.u32 %v2086, 16
      %v2350 = vrot.slane %v2348, 5
      %v2351 = vor.u32 %v2347, %v2350
      %v2352 = vrot.slane %v2351, 4
      %v2354 = vshll.u32 %v2087, 16
      %v2356 = vrot.slane %v2354, 5
      %v2357 = vsel %vm296, %v2352, %v2356
      %v2358 = vshrl.u32 %v2087, 16
      %v2360 = vrot.slane %v2358, 4
      %v2361 = vor.u32 %v2360, %v2356
      %v2362 = vrot.slane %v2361, 4
      %v2364 = vshll.u32 %v2088, 16
      %v2366 = vrot.slane %v2364, 5
      %v2367 = vsel %vm296, %v2362, %v2366
      %v2369 = vshrl.u32 %v2089, 16
      %v2371 = vrot.slane %v2369, 4
      %v2372 = vshll.u32 %v2089, 16
      %v2374 = vrot.slane %v2372, 5
      %v2375 = vor.u32 %v2371, %v2374
      %v2376 = vrot.slane %v2375, 4
      %v2378 = vshll.u32 %v2090, 16
      %v2380 = vrot.slane %v2378, 5
      %v2381 = vsel %vm296, %v2376, %v2380
      %v2382 = vshrl.u32 %v2090, 16
      %v2384 = vrot.slane %v2382, 4
      %v2385 = vor.u32 %v2384, %v2380
      %v2386 = vrot.slane %v2385, 4
      %v2388 = vshll.u32 %v2091, 16
      %v2390 = vrot.slane %v2388, 5
      %v2391 = vsel %vm296, %v2386, %v2390
      %v2393 = vshrl.u32 %v2092, 16
      %v2395 = vrot.slane %v2393, 4
      %v2396 = vshll.u32 %v2092, 16
      %v2398 = vrot.slane %v2396, 5
      %v2399 = vor.u32 %v2395, %v2398
      %v2400 = vrot.slane %v2399, 4
      %v2402 = vshll.u32 %v2093, 16
      %v2404 = vrot.slane %v2402, 5
      %v2405 = vsel %vm296, %v2400, %v2404
      %v2406 = vshrl.u32 %v2093, 16
      %v2408 = vrot.slane %v2406, 4
      %v2409 = vor.u32 %v2408, %v2404
      %v2410 = vrot.slane %v2409, 4
      %v2412 = vshll.u32 %v2094, 16
      %v2414 = vrot.slane %v2412, 5
      %v2415 = vsel %vm296, %v2410, %v2414
      %v2417 = vshrl.u32 %v2095, 16
      %v2419 = vrot.slane %v2417, 4
      %v2420 = vshll.u32 %v2095, 16
      %v2422 = vrot.slane %v2420, 5
      %v2423 = vor.u32 %v2419, %v2422
      %v2424 = vrot.slane %v2423, 4
      %v2426 = vshll.u32 %v2096, 16
      %v2428 = vrot.slane %v2426, 5
      %v2429 = vsel %vm296, %v2424, %v2428
      %v2430 = vshrl.u32 %v2096, 16
      %v2432 = vrot.slane %v2430, 4
      %v2433 = vor.u32 %v2432, %v2428
      %v2434 = vrot.slane %v2433, 4
      %v2436 = vshll.u32 %v2097, 16
      %v2438 = vrot.slane %v2436, 5
      %v2439 = vsel %vm296, %v2434, %v2438
      %v2441 = vshrl.u32 %v2098, 16
      %v2443 = vrot.slane %v2441, 4
      %v2444 = vshll.u32 %v2098, 16
      %v2446 = vrot.slane %v2444, 5
      %v2447 = vor.u32 %v2443, %v2446
      %v2448 = vrot.slane %v2447, 4
      %v2450 = vshll.u32 %v2099, 16
      %v2452 = vrot.slane %v2450, 5
      %v2453 = vsel %vm296, %v2448, %v2452
      %v2454 = vshrl.u32 %v2099, 16
      %v2456 = vrot.slane %v2454, 4
      %v2457 = vor.u32 %v2456, %v2452
      %v2458 = vrot.slane %v2457, 4
      %v2460 = vshll.u32 %v2100, 16
      %v2462 = vrot.slane %v2460, 5
      %v2463 = vsel %vm296, %v2458, %v2462
      %v2465 = vshrl.u32 %v2101, 16
      %v2467 = vrot.slane %v2465, 4
      %v2468 = vshll.u32 %v2101, 16
      %v2470 = vrot.slane %v2468, 5
      %v2471 = vor.u32 %v2467, %v2470
      %v2472 = vrot.slane %v2471, 4
      %v2474 = vshll.u32 %v2102, 16
      %v2476 = vrot.slane %v2474, 5
      %v2477 = vsel %vm296, %v2472, %v2476
      %v2478 = vshrl.u32 %v2102, 16
      %v2480 = vrot.slane %v2478, 4
      %v2481 = vor.u32 %v2480, %v2476
      %v2482 = vrot.slane %v2481, 4
      %v2484 = vshll.u32 %v2103, 16
      %v2486 = vrot.slane %v2484, 5
      %v2487 = vsel %vm296, %v2482, %v2486
      %s2488 = scalar_lea.vmem %s223, 8
      %v2489 = vld [vmem:[%s2488] sm:$0x3]
      %v2490 = vunpack.c.l.b16 %v2117
      %v2491 = vunpack.c.l.b16 %v2127
      %v2492 = vunpack.c.l.b16 %v2141
      %v2493 = vunpack.c.l.b16 %v2151
      %v2494 = vunpack.c.l.b16 %v2165
      %v2495 = vunpack.c.l.b16 %v2175
      %v2496 = vunpack.c.l.b16 %v2189
      %v2497 = vunpack.c.l.b16 %v2199
      %v2498 = vunpack.c.l.b16 %v2213
      %v2499 = vunpack.c.l.b16 %v2223
      %v2500 = vunpack.c.l.b16 %v2237
      %v2501 = vunpack.c.l.b16 %v2247
      %v2502 = vunpack.c.l.b16 %v2261
      %v2503 = vunpack.c.l.b16 %v2271
      %v2504 = vunpack.c.l.b16 %v2285
      %v2505 = vunpack.c.l.b16 %v2295
      %v2506 = vunpack.c.l.b16 %v2309
      %v2507 = vunpack.c.l.b16 %v2319
      %v2508 = vunpack.c.l.b16 %v2333
      %v2509 = vunpack.c.l.b16 %v2343
      %v2510 = vunpack.c.l.b16 %v2357
      %v2511 = vunpack.c.l.b16 %v2367
      %v2512 = vunpack.c.l.b16 %v2381
      %v2513 = vunpack.c.l.b16 %v2391
      %v2514 = vunpack.c.l.b16 %v2405
      %v2515 = vunpack.c.l.b16 %v2415
      %v2516 = vunpack.c.l.b16 %v2429
      %v2517 = vunpack.c.l.b16 %v2439
      %v2518 = vunpack.c.l.b16 %v2453
      %v2519 = vunpack.c.l.b16 %v2463
      %v2520 = vunpack.c.l.b16 %v2477
      %v2521 = vunpack.c.l.b16 %v2487
      %v2522 = vpack.c.b16 %v2491, %v2490
      %v2523 = vpack.c.b16 %v2493, %v2492
      %v2524 = vpack.c.b16 %v2495, %v2494
      %v2525 = vpack.c.b16 %v2497, %v2496
      %v2526 = vpack.c.b16 %v2499, %v2498
      %v2527 = vpack.c.b16 %v2501, %v2500
      %v2528 = vpack.c.b16 %v2503, %v2502
      %v2529 = vpack.c.b16 %v2505, %v2504
      %v2530 = vpack.c.b16 %v2507, %v2506
      %v2531 = vpack.c.b16 %v2509, %v2508
      %v2532 = vpack.c.b16 %v2511, %v2510
      %v2533 = vpack.c.b16 %v2513, %v2512
      %v2534 = vpack.c.b16 %v2515, %v2514
      %v2535 = vpack.c.b16 %v2517, %v2516
      %v2536 = vpack.c.b16 %v2519, %v2518
      %v2537 = vpack.c.b16 %v2521, %v2520
      %v2539 = vsel %vm731, %v2522, 0
      %v2542 = vsel %vm731, %v2523, 0
      %v2545 = vsel %vm731, %v2524, 0
      %v2548 = vsel %vm731, %v2525, 0
      %v2551 = vsel %vm731, %v2526, 0
      %v2554 = vsel %vm731, %v2527, 0
      %v2557 = vsel %vm731, %v2528, 0
      %v2560 = vsel %vm731, %v2529, 0
      %v2563 = vsel %vm731, %v2530, 0
      %v2566 = vsel %vm731, %v2531, 0
      %v2569 = vsel %vm731, %v2532, 0
      %v2572 = vsel %vm731, %v2533, 0
      %v2575 = vsel %vm731, %v2534, 0
      %v2578 = vsel %vm731, %v2535, 0
      %v2581 = vsel %vm731, %v2536, 0
      %v2584 = vsel %vm731, %v2537, 0
      %v2587 = vsel %vm780, %v2489, 0
      %2589 = vmatprep.subr.bf16.mxu0 0
      %2590 = vmatpush1.bf16.msra.mxu0 %v2587
      %2591 = vmatprep.subr.bf16.mxu0 0
      %2592 = vmatpush1.bf16.msra.mxu0 0
      %2593 = vmatprep.subr.bf16.mxu0 0
      %2594 = vmatpush1.bf16.msra.mxu0 0
      %2595 = vmatprep.subr.bf16.mxu0 0
      %2596 = vmatpush1.bf16.msra.mxu0 0
      %2597 = vmatprep.subr.bf16.mxu0 0
      %2598 = vmatpush1.bf16.msra.mxu0 0
      %2599 = vmatprep.subr.bf16.mxu0 0
      %2600 = vmatpush1.bf16.msra.mxu0 0
      %2601 = vmatprep.subr.bf16.mxu0 0
      %2602 = vmatpush1.bf16.msra.mxu0 0
      %2603 = vmatprep.subr.bf16.mxu0 0
      %2604 = vmatpush1.bf16.msra.mxu0 0
      %2605 = vmatprep.subr.bf16.mxu0 0
      %2606 = vmatpush1.bf16.msra.mxu0 0
      %2607 = vmatprep.subr.bf16.mxu0 0
      %2608 = vmatpush1.bf16.msra.mxu0 0
      %2609 = vmatprep.subr.bf16.mxu0 0
      %2610 = vmatpush1.bf16.msra.mxu0 0
      %2611 = vmatprep.subr.bf16.mxu0 0
      %2612 = vmatpush1.bf16.msra.mxu0 0
      %2613 = vmatprep.subr.bf16.mxu0 0
      %2614 = vmatpush1.bf16.msra.mxu0 0
      %2615 = vmatprep.subr.bf16.mxu0 0
      %2616 = vmatpush1.bf16.msra.mxu0 0
      %2617 = vmatprep.subr.bf16.mxu0 0
      %2618 = vmatpush1.bf16.msra.mxu0 0
      %2619 = vmatprep.subr.bf16.mxu0 0
      %2620 = vmatpush1.bf16.msra.mxu0 0
      %2621 = vmatprep.mubr.bf16.mxu0 0
      %2622 = vmatmul.mubr.bf16.gmra.mrb[0].mxu0 %v2539
      %v2623 = vpop.f32.mrb[0].mxu0
      %v2624 = vadd.f32 0.0, %v2623
      %v2625 = vpop.f32.mrb[0].mxu0
      %v2626 = vpop.f32.mrb[0].mxu0
      %v2627 = vadd.f32 0.0, %v2626
      %v2628 = vpop.f32.mrb[0].mxu0
      %2629 = vmatprep.mubr.bf16.mxu0 0
      %2630 = vmatmul.mubr.bf16.gmra.mrb[0].mxu0 %v2542
      %v2631 = vpop.f32.mrb[0].mxu0
      %v2632 = vadd.f32 0.0, %v2631
      %v2633 = vpop.f32.mrb[0].mxu0
      %v2634 = vpop.f32.mrb[0].mxu0
      %v2635 = vadd.f32 0.0, %v2634
      %v2636 = vpop.f32.mrb[0].mxu0
      %2637 = vmatprep.mubr.bf16.mxu0 0
      %2638 = vmatmul.mubr.bf16.gmra.mrb[0].mxu0 %v2545
      %v2639 = vpop.f32.mrb[0].mxu0
      %v2640 = vadd.f32 0.0, %v2639
      %v2641 = vpop.f32.mrb[0].mxu0
      %v2642 = vpop.f32.mrb[0].mxu0
      %v2643 = vadd.f32 0.0, %v2642
      %v2644 = vpop.f32.mrb[0].mxu0
      %2645 = vmatprep.mubr.bf16.mxu0 0
      %2646 = vmatmul.mubr.bf16.gmra.mrb[0].mxu0 %v2548
      %v2647 = vpop.f32.mrb[0].mxu0
      %v2648 = vadd.f32 0.0, %v2647
      %v2649 = vpop.f32.mrb[0].mxu0
      %v2650 = vpop.f32.mrb[0].mxu0
      %v2651 = vadd.f32 0.0, %v2650
      %v2652 = vpop.f32.mrb[0].mxu0
      %2653 = vmatprep.mubr.bf16.mxu0 0
      %2654 = vmatmul.mubr.bf16.gmra.mrb[0].mxu0 %v2551
      %v2655 = vpop.f32.mrb[0].mxu0
      %v2656 = vadd.f32 0.0, %v2655
      %v2657 = vpop.f32.mrb[0].mxu0
      %v2658 = vpop.f32.mrb[0].mxu0
      %v2659 = vadd.f32 0.0, %v2658
      %v2660 = vpop.f32.mrb[0].mxu0
      %2661 = vmatprep.mubr.bf16.mxu0 0
      %2662 = vmatmul.mubr.bf16.gmra.mrb[0].mxu0 %v2554
      %v2663 = vpop.f32.mrb[0].mxu0
      %v2664 = vadd.f32 0.0, %v2663
      %v2665 = vpop.f32.mrb[0].mxu0
      %v2666 = vpop.f32.mrb[0].mxu0
      %v2667 = vadd.f32 0.0, %v2666
      %v2668 = vpop.f32.mrb[0].mxu0
      %2669 = vmatprep.mubr.bf16.mxu0 0
      %2670 = vmatmul.mubr.bf16.gmra.mrb[0].mxu0 %v2557
      %v2671 = vpop.f32.mrb[0].mxu0
      %v2672 = vadd.f32 0.0, %v2671
      %v2673 = vpop.f32.mrb[0].mxu0
      %v2674 = vpop.f32.mrb[0].mxu0
      %v2675 = vadd.f32 0.0, %v2674
      %v2676 = vpop.f32.mrb[0].mxu0
      %2677 = vmatprep.mubr.bf16.mxu0 0
      %2678 = vmatmul.mubr.bf16.gmra.mrb[0].mxu0 %v2560
      %v2679 = vpop.f32.mrb[0].mxu0
      %v2680 = vadd.f32 0.0, %v2679
      %v2681 = vpop.f32.mrb[0].mxu0
      %v2682 = vpop.f32.mrb[0].mxu0
      %v2683 = vadd.f32 0.0, %v2682
      %v2684 = vpop.f32.mrb[0].mxu0
      %2685 = vmatprep.mubr.bf16.mxu0 0
      %2686 = vmatmul.mubr.bf16.gmra.mrb[0].mxu0 %v2563
      %v2687 = vpop.f32.mrb[0].mxu0
      %v2688 = vadd.f32 0.0, %v2687
      %v2689 = vpop.f32.mrb[0].mxu0
      %v2690 = vpop.f32.mrb[0].mxu0
      %v2691 = vadd.f32 0.0, %v2690
      %v2692 = vpop.f32.mrb[0].mxu0
      %2693 = vmatprep.mubr.bf16.mxu0 0
      %2694 = vmatmul.mubr.bf16.gmra.mrb[0].mxu0 %v2566
      %v2695 = vpop.f32.mrb[0].mxu0
      %v2696 = vadd.f32 0.0, %v2695
      %v2697 = vpop.f32.mrb[0].mxu0
      %v2698 = vpop.f32.mrb[0].mxu0
      %v2699 = vadd.f32 0.0, %v2698
      %v2700 = vpop.f32.mrb[0].mxu0
      %2701 = vmatprep.mubr.bf16.mxu0 0
      %2702 = vmatmul.mubr.bf16.gmra.mrb[0].mxu0 %v2569
      %v2703 = vpop.f32.mrb[0].mxu0
      %v2704 = vadd.f32 0.0, %v2703
      %v2705 = vpop.f32.mrb[0].mxu0
      %v2706 = vpop.f32.mrb[0].mxu0
      %v2707 = vadd.f32 0.0, %v2706
      %v2708 = vpop.f32.mrb[0].mxu0
      %2709 = vmatprep.mubr.bf16.mxu0 0
      %2710 = vmatmul.mubr.bf16.gmra.mrb[0].mxu0 %v2572
      %v2711 = vpop.f32.mrb[0].mxu0
      %v2712 = vadd.f32 0.0, %v2711
      %v2713 = vpop.f32.mrb[0].mxu0
      %v2714 = vpop.f32.mrb[0].mxu0
      %v2715 = vadd.f32 0.0, %v2714
      %v2716 = vpop.f32.mrb[0].mxu0
      %2717 = vmatprep.mubr.bf16.mxu0 0
      %2718 = vmatmul.mubr.bf16.gmra.mrb[0].mxu0 %v2575
      %v2719 = vpop.f32.mrb[0].mxu0
      %v2720 = vadd.f32 0.0, %v2719
      %v2721 = vpop.f32.mrb[0].mxu0
      %v2722 = vpop.f32.mrb[0].mxu0
      %v2723 = vadd.f32 0.0, %v2722
      %v2724 = vpop.f32.mrb[0].mxu0
      %2725 = vmatprep.mubr.bf16.mxu0 0
      %2726 = vmatmul.mubr.bf16.gmra.mrb[0].mxu0 %v2578
      %v2727 = vpop.f32.mrb[0].mxu0
      %v2728 = vadd.f32 0.0, %v2727
      %v2729 = vpop.f32.mrb[0].mxu0
      %v2730 = vpop.f32.mrb[0].mxu0
      %v2731 = vadd.f32 0.0, %v2730
      %v2732 = vpop.f32.mrb[0].mxu0
      %2733 = vmatprep.mubr.bf16.mxu0 0
      %2734 = vmatmul.mubr.bf16.gmra.mrb[0].mxu0 %v2581
      %v2735 = vpop.f32.mrb[0].mxu0
      %v2736 = vadd.f32 0.0, %v2735
      %v2737 = vpop.f32.mrb[0].mxu0
      %v2738 = vpop.f32.mrb[0].mxu0
      %v2739 = vadd.f32 0.0, %v2738
      %v2740 = vpop.f32.mrb[0].mxu0
      %2741 = vmatprep.mubr.bf16.mxu0 0
      %2742 = vmatmul.mubr.bf16.gmra.mrb[0].mxu0 %v2584
      %v2743 = vpop.f32.mrb[0].mxu0
      %v2744 = vadd.f32 0.0, %v2743
      %v2745 = vpop.f32.mrb[0].mxu0
      %v2746 = vpop.f32.mrb[0].mxu0
      %v2747 = vadd.f32 0.0, %v2746
      %v2748 = vpop.f32.mrb[0].mxu0
      %2749 = vdwg.mxu0
      %v2750 = vadd.f32 %v2024, %v2624
      %v2751 = vadd.f32 %v2025, %v2627
      %v2752 = vadd.f32 %v2026, %v2632
      %v2753 = vadd.f32 %v2027, %v2635
      %v2754 = vadd.f32 %v2028, %v2640
      %v2755 = vadd.f32 %v2029, %v2643
      %v2756 = vadd.f32 %v2030, %v2648
      %v2757 = vadd.f32 %v2031, %v2651
      %v2758 = vadd.f32 %v2032, %v2656
      %v2759 = vadd.f32 %v2033, %v2659
      %v2760 = vadd.f32 %v2034, %v2664
      %v2761 = vadd.f32 %v2035, %v2667
      %v2762 = vadd.f32 %v2036, %v2672
      %v2763 = vadd.f32 %v2037, %v2675
      %v2764 = vadd.f32 %v2038, %v2680
      %v2765 = vadd.f32 %v2039, %v2683
      %v2766 = vadd.f32 %v2040, %v2688
      %v2767 = vadd.f32 %v2041, %v2691
      %v2768 = vadd.f32 %v2042, %v2696
      %v2769 = vadd.f32 %v2043, %v2699
      %v2770 = vadd.f32 %v2044, %v2704
      %v2771 = vadd.f32 %v2045, %v2707
      %v2772 = vadd.f32 %v2046, %v2712
      %v2773 = vadd.f32 %v2047, %v2715
      %v2774 = vadd.f32 %v2048, %v2720
      %v2775 = vadd.f32 %v2049, %v2723
      %v2776 = vadd.f32 %v2050, %v2728
      %v2777 = vadd.f32 %v2051, %v2731
      %v2778 = vadd.f32 %v2052, %v2736
      %v2779 = vadd.f32 %v2053, %v2739
      %v2780 = vadd.f32 %v2054, %v2744
      %v2781 = vadd.f32 %v2055, %v2747
      %v2782 = vld [vmem:[%s1697] sm:$0xe]
      %v2783 = vld [vmem:[%s1697 + $0xc] sm:$0xe]
      %v2784 = vld [vmem:[%s1697 + $0x18] sm:$0xe]
      %v2785 = vld [vmem:[%s1697 + $0x24] sm:$0xe]
      %v2786 = vld [vmem:[%s1697 + $0x30] sm:$0xe]
      %v2787 = vld [vmem:[%s1697 + $0x3c] sm:$0xe]
      %v2788 = vld [vmem:[%s1697 + $0x48] sm:$0xe]
      %v2789 = vld [vmem:[%s1697 + $0x54] sm:$0xe]
      %v2790 = vld [vmem:[%s1697 + $0x60] sm:$0xe]
      %v2791 = vld [vmem:[%s1697 + $0x6c] sm:$0xe]
      %v2792 = vld [vmem:[%s1697 + $0x78] sm:$0xe]
      %v2793 = vld [vmem:[%s1697 + $0x84] sm:$0xe]
      %v2794 = vld [vmem:[%s1697 + $0x90] sm:$0xe]
      %v2795 = vld [vmem:[%s1697 + $0x9c] sm:$0xe]
      %v2796 = vld [vmem:[%s1697 + $0xa8] sm:$0xe]
      %v2797 = vld [vmem:[%s1697 + $0xb4] sm:$0xe]
      %v2846 = vrot.slane %v2782, 5
      %v2847 = vrot.slane %v2846, 4
      %v2848 = vrot.slane %v2057, 5
      %v2849 = vsel %vm1287, %v2847, %v2848
      %v2850 = vrot.slane %v2848, 4
      %v2851 = vrot.slane %v2058, 5
      %v2852 = vsel %vm1287, %v2850, %v2851
      %v2853 = vrot.slane %v2783, 5
      %v2854 = vrot.slane %v2853, 4
      %v2855 = vrot.slane %v2060, 5
      %v2856 = vsel %vm1287, %v2854, %v2855
      %v2857 = vrot.slane %v2855, 4
      %v2858 = vrot.slane %v2061, 5
      %v2859 = vsel %vm1287, %v2857, %v2858
      %v2860 = vrot.slane %v2784, 5
      %v2861 = vrot.slane %v2860, 4
      %v2862 = vrot.slane %v2063, 5
      %v2863 = vsel %vm1287, %v2861, %v2862
      %v2864 = vrot.slane %v2862, 4
      %v2865 = vrot.slane %v2064, 5
      %v2866 = vsel %vm1287, %v2864, %v2865
      %v2867 = vrot.slane %v2785, 5
      %v2868 = vrot.slane %v2867, 4
      %v2869 = vrot.slane %v2066, 5
      %v2870 = vsel %vm1287, %v2868, %v2869
      %v2871 = vrot.slane %v2869, 4
      %v2872 = vrot.slane %v2067, 5
      %v2873 = vsel %vm1287, %v2871, %v2872
      %v2874 = vrot.slane %v2786, 5
      %v2875 = vrot.slane %v2874, 4
      %v2876 = vrot.slane %v2069, 5
      %v2877 = vsel %vm1287, %v2875, %v2876
      %v2878 = vrot.slane %v2876, 4
      %v2879 = vrot.slane %v2070, 5
      %v2880 = vsel %vm1287, %v2878, %v2879
      %v2881 = vrot.slane %v2787, 5
      %v2882 = vrot.slane %v2881, 4
      %v2883 = vrot.slane %v2072, 5
      %v2884 = vsel %vm1287, %v2882, %v2883
      %v2885 = vrot.slane %v2883, 4
      %v2886 = vrot.slane %v2073, 5
      %v2887 = vsel %vm1287, %v2885, %v2886
      %v2888 = vrot.slane %v2788, 5
      %v2889 = vrot.slane %v2888, 4
      %v2890 = vrot.slane %v2075, 5
      %v2891 = vsel %vm1287, %v2889, %v2890
      %v2892 = vrot.slane %v2890, 4
      %v2893 = vrot.slane %v2076, 5
      %v2894 = vsel %vm1287, %v2892, %v2893
      %v2895 = vrot.slane %v2789, 5
      %v2896 = vrot.slane %v2895, 4
      %v2897 = vrot.slane %v2078, 5
      %v2898 = vsel %vm1287, %v2896, %v2897
      %v2899 = vrot.slane %v2897, 4
      %v2900 = vrot.slane %v2079, 5
      %v2901 = vsel %vm1287, %v2899, %v2900
      %v2902 = vrot.slane %v2790, 5
      %v2903 = vrot.slane %v2902, 4
      %v2904 = vrot.slane %v2081, 5
      %v2905 = vsel %vm1287, %v2903, %v2904
      %v2906 = vrot.slane %v2904, 4
      %v2907 = vrot.slane %v2082, 5
      %v2908 = vsel %vm1287, %v2906, %v2907
      %v2909 = vrot.slane %v2791, 5
      %v2910 = vrot.slane %v2909, 4
      %v2911 = vrot.slane %v2084, 5
      %v2912 = vsel %vm1287, %v2910, %v2911
      %v2913 = vrot.slane %v2911, 4
      %v2914 = vrot.slane %v2085, 5
      %v2915 = vsel %vm1287, %v2913, %v2914
      %v2916 = vrot.slane %v2792, 5
      %v2917 = vrot.slane %v2916, 4
      %v2918 = vrot.slane %v2087, 5
      %v2919 = vsel %vm1287, %v2917, %v2918
      %v2920 = vrot.slane %v2918, 4
      %v2921 = vrot.slane %v2088, 5
      %v2922 = vsel %vm1287, %v2920, %v2921
      %v2923 = vrot.slane %v2793, 5
      %v2924 = vrot.slane %v2923, 4
      %v2925 = vrot.slane %v2090, 5
      %v2926 = vsel %vm1287, %v2924, %v2925
      %v2927 = vrot.slane %v2925, 4
      %v2928 = vrot.slane %v2091, 5
      %v2929 = vsel %vm1287, %v2927, %v2928
      %v2930 = vrot.slane %v2794, 5
      %v2931 = vrot.slane %v2930, 4
      %v2932 = vrot.slane %v2093, 5
      %v2933 = vsel %vm1287, %v2931, %v2932
      %v2934 = vrot.slane %v2932, 4
      %v2935 = vrot.slane %v2094, 5
      %v2936 = vsel %vm1287, %v2934, %v2935
      %v2937 = vrot.slane %v2795, 5
      %v2938 = vrot.slane %v2937, 4
      %v2939 = vrot.slane %v2096, 5
      %v2940 = vsel %vm1287, %v2938, %v2939
      %v2941 = vrot.slane %v2939, 4
      %v2942 = vrot.slane %v2097, 5
      %v2943 = vsel %vm1287, %v2941, %v2942
      %v2944 = vrot.slane %v2796, 5
      %v2945 = vrot.slane %v2944, 4
      %v2946 = vrot.slane %v2099, 5
      %v2947 = vsel %vm1287, %v2945, %v2946
      %v2948 = vrot.slane %v2946, 4
      %v2949 = vrot.slane %v2100, 5
      %v2950 = vsel %vm1287, %v2948, %v2949
      %v2951 = vrot.slane %v2797, 5
      %v2952 = vrot.slane %v2951, 4
      %v2953 = vrot.slane %v2102, 5
      %v2954 = vsel %vm1287, %v2952, %v2953
      %v2955 = vrot.slane %v2953, 4
      %v2956 = vrot.slane %v2103, 5
      %v2957 = vsel %vm1287, %v2955, %v2956
      %s2958 = scalar_lea.vmem %s223, 10
      %v2959 = vld [vmem:[%s2958] sm:$0x3]
      %v2960 = vunpack.c.l.b16 %v2849
      %v2961 = vunpack.c.l.b16 %v2852
      %v2962 = vunpack.c.l.b16 %v2856
      %v2963 = vunpack.c.l.b16 %v2859
      %v2964 = vunpack.c.l.b16 %v2863
      %v2965 = vunpack.c.l.b16 %v2866
      %v2966 = vunpack.c.l.b16 %v2870
      %v2967 = vunpack.c.l.b16 %v2873
      %v2968 = vunpack.c.l.b16 %v2877
      %v2969 = vunpack.c.l.b16 %v2880
      %v2970 = vunpack.c.l.b16 %v2884
      %v2971 = vunpack.c.l.b16 %v2887
      %v2972 = vunpack.c.l.b16 %v2891
      %v2973 = vunpack.c.l.b16 %v2894
      %v2974 = vunpack.c.l.b16 %v2898
      %v2975 = vunpack.c.l.b16 %v2901
      %v2976 = vunpack.c.l.b16 %v2905
      %v2977 = vunpack.c.l.b16 %v2908
      %v2978 = vunpack.c.l.b16 %v2912
      %v2979 = vunpack.c.l.b16 %v2915
      %v2980 = vunpack.c.l.b16 %v2919
      %v2981 = vunpack.c.l.b16 %v2922
      %v2982 = vunpack.c.l.b16 %v2926
      %v2983 = vunpack.c.l.b16 %v2929
      %v2984 = vunpack.c.l.b16 %v2933
      %v2985 = vunpack.c.l.b16 %v2936
      %v2986 = vunpack.c.l.b16 %v2940
      %v2987 = vunpack.c.l.b16 %v2943
      %v2988 = vunpack.c.l.b16 %v2947
      %v2989 = vunpack.c.l.b16 %v2950
      %v2990 = vunpack.c.l.b16 %v2954
      %v2991 = vunpack.c.l.b16 %v2957
      %v2992 = vpack.c.b16 %v2961, %v2960
      %v2993 = vpack.c.b16 %v2963, %v2962
      %v2994 = vpack.c.b16 %v2965, %v2964
      %v2995 = vpack.c.b16 %v2967, %v2966
      %v2996 = vpack.c.b16 %v2969, %v2968
      %v2997 = vpack.c.b16 %v2971, %v2970
      %v2998 = vpack.c.b16 %v2973, %v2972
      %v2999 = vpack.c.b16 %v2975, %v2974
      %v3000 = vpack.c.b16 %v2977, %v2976
      %v3001 = vpack.c.b16 %v2979, %v2978
      %v3002 = vpack.c.b16 %v2981, %v2980
      %v3003 = vpack.c.b16 %v2983, %v2982
      %v3004 = vpack.c.b16 %v2985, %v2984
      %v3005 = vpack.c.b16 %v2987, %v2986
      %v3006 = vpack.c.b16 %v2989, %v2988
      %v3007 = vpack.c.b16 %v2991, %v2990
      %v3009 = vsel %vm731, %v2992, 0
      %v3012 = vsel %vm731, %v2993, 0
      %v3015 = vsel %vm731, %v2994, 0
      %v3018 = vsel %vm731, %v2995, 0
      %v3021 = vsel %vm731, %v2996, 0
      %v3024 = vsel %vm731, %v2997, 0
      %v3027 = vsel %vm731, %v2998, 0
      %v3030 = vsel %vm731, %v2999, 0
      %v3033 = vsel %vm731, %v3000, 0
      %v3036 = vsel %vm731, %v3001, 0
      %v3039 = vsel %vm731, %v3002, 0
      %v3042 = vsel %vm731, %v3003, 0
      %v3045 = vsel %vm731, %v3004, 0
      %v3048 = vsel %vm731, %v3005, 0
      %v3051 = vsel %vm731, %v3006, 0
      %v3054 = vsel %vm731, %v3007, 0
      %v3057 = vsel %vm780, %v2959, 0
      %3059 = vmatprep.subr.bf16.mxu0 0
      %3060 = vmatpush1.bf16.msra.mxu0 %v3057
      %3061 = vmatprep.subr.bf16.mxu0 0
      %3062 = vmatpush1.bf16.msra.mxu0 0
      %3063 = vmatprep.subr.bf16.mxu0 0
      %3064 = vmatpush1.bf16.msra.mxu0 0
      %3065 = vmatprep.subr.bf16.mxu0 0
      %3066 = vmatpush1.bf16.msra.mxu0 0
      %3067 = vmatprep.subr.bf16.mxu0 0
      %3068 = vmatpush1.bf16.msra.mxu0 0
      %3069 = vmatprep.subr.bf16.mxu0 0
      %3070 = vmatpush1.bf16.msra.mxu0 0
      %3071 = vmatprep.subr.bf16.mxu0 0
      %3072 = vmatpush1.bf16.msra.mxu0 0
      %3073 = vmatprep.subr.bf16.mxu0 0
      %3074 = vmatpush1.bf16.msra.mxu0 0
      %3075 = vmatprep.subr.bf16.mxu0 0
      %3076 = vmatpush1.bf16.msra.mxu0 0
      %3077 = vmatprep.subr.bf16.mxu0 0
      %3078 = vmatpush1.bf16.msra.mxu0 0
      %3079 = vmatprep.subr.bf16.mxu0 0
      %3080 = vmatpush1.bf16.msra.mxu0 0
      %3081 = vmatprep.subr.bf16.mxu0 0
      %3082 = vmatpush1.bf16.msra.mxu0 0
      %3083 = vmatprep.subr.bf16.mxu0 0
      %3084 = vmatpush1.bf16.msra.mxu0 0
      %3085 = vmatprep.subr.bf16.mxu0 0
      %3086 = vmatpush1.bf16.msra.mxu0 0
      %3087 = vmatprep.subr.bf16.mxu0 0
      %3088 = vmatpush1.bf16.msra.mxu0 0
      %3089 = vmatprep.subr.bf16.mxu0 0
      %3090 = vmatpush1.bf16.msra.mxu0 0
      %3091 = vmatprep.mubr.bf16.mxu0 0
      %3092 = vmatmul.mubr.bf16.gmra.mrb[0].mxu0 %v3009
      %v3093 = vpop.f32.mrb[0].mxu0
      %v3094 = vadd.f32 0.0, %v3093
      %v3095 = vpop.f32.mrb[0].mxu0
      %v3096 = vpop.f32.mrb[0].mxu0
      %v3097 = vadd.f32 0.0, %v3096
      %v3098 = vpop.f32.mrb[0].mxu0
      %3099 = vmatprep.mubr.bf16.mxu0 0
      %3100 = vmatmul.mubr.bf16.gmra.mrb[0].mxu0 %v3012
      %v3101 = vpop.f32.mrb[0].mxu0
      %v3102 = vadd.f32 0.0, %v3101
      %v3103 = vpop.f32.mrb[0].mxu0
      %v3104 = vpop.f32.mrb[0].mxu0
      %v3105 = vadd.f32 0.0, %v3104
      %v3106 = vpop.f32.mrb[0].mxu0
      %3107 = vmatprep.mubr.bf16.mxu0 0
      %3108 = vmatmul.mubr.bf16.gmra.mrb[0].mxu0 %v3015
      %v3109 = vpop.f32.mrb[0].mxu0
      %v3110 = vadd.f32 0.0, %v3109
      %v3111 = vpop.f32.mrb[0].mxu0
      %v3112 = vpop.f32.mrb[0].mxu0
      %v3113 = vadd.f32 0.0, %v3112
      %v3114 = vpop.f32.mrb[0].mxu0
      %3115 = vmatprep.mubr.bf16.mxu0 0
      %3116 = vmatmul.mubr.bf16.gmra.mrb[0].mxu0 %v3018
      %v3117 = vpop.f32.mrb[0].mxu0
      %v3118 = vadd.f32 0.0, %v3117
      %v3119 = vpop.f32.mrb[0].mxu0
      %v3120 = vpop.f32.mrb[0].mxu0
      %v3121 = vadd.f32 0.0, %v3120
      %v3122 = vpop.f32.mrb[0].mxu0
      %3123 = vmatprep.mubr.bf16.mxu0 0
      %3124 = vmatmul.mubr.bf16.gmra.mrb[0].mxu0 %v3021
      %v3125 = vpop.f32.mrb[0].mxu0
      %v3126 = vadd.f32 0.0, %v3125
      %v3127 = vpop.f32.mrb[0].mxu0
      %v3128 = vpop.f32.mrb[0].mxu0
      %v3129 = vadd.f32 0.0, %v3128
      %v3130 = vpop.f32.mrb[0].mxu0
      %3131 = vmatprep.mubr.bf16.mxu0 0
      %3132 = vmatmul.mubr.bf16.gmra.mrb[0].mxu0 %v3024
      %v3133 = vpop.f32.mrb[0].mxu0
      %v3134 = vadd.f32 0.0, %v3133
      %v3135 = vpop.f32.mrb[0].mxu0
      %v3136 = vpop.f32.mrb[0].mxu0
      %v3137 = vadd.f32 0.0, %v3136
      %v3138 = vpop.f32.mrb[0].mxu0
      %3139 = vmatprep.mubr.bf16.mxu0 0
      %3140 = vmatmul.mubr.bf16.gmra.mrb[0].mxu0 %v3027
      %v3141 = vpop.f32.mrb[0].mxu0
      %v3142 = vadd.f32 0.0, %v3141
      %v3143 = vpop.f32.mrb[0].mxu0
      %v3144 = vpop.f32.mrb[0].mxu0
      %v3145 = vadd.f32 0.0, %v3144
      %v3146 = vpop.f32.mrb[0].mxu0
      %3147 = vmatprep.mubr.bf16.mxu0 0
      %3148 = vmatmul.mubr.bf16.gmra.mrb[0].mxu0 %v3030
      %v3149 = vpop.f32.mrb[0].mxu0
      %v3150 = vadd.f32 0.0, %v3149
      %v3151 = vpop.f32.mrb[0].mxu0
      %v3152 = vpop.f32.mrb[0].mxu0
      %v3153 = vadd.f32 0.0, %v3152
      %v3154 = vpop.f32.mrb[0].mxu0
      %3155 = vmatprep.mubr.bf16.mxu0 0
      %3156 = vmatmul.mubr.bf16.gmra.mrb[0].mxu0 %v3033
      %v3157 = vpop.f32.mrb[0].mxu0
      %v3158 = vadd.f32 0.0, %v3157
      %v3159 = vpop.f32.mrb[0].mxu0
      %v3160 = vpop.f32.mrb[0].mxu0
      %v3161 = vadd.f32 0.0, %v3160
      %v3162 = vpop.f32.mrb[0].mxu0
      %3163 = vmatprep.mubr.bf16.mxu0 0
      %3164 = vmatmul.mubr.bf16.gmra.mrb[0].mxu0 %v3036
      %v3165 = vpop.f32.mrb[0].mxu0
      %v3166 = vadd.f32 0.0, %v3165
      %v3167 = vpop.f32.mrb[0].mxu0
      %v3168 = vpop.f32.mrb[0].mxu0
      %v3169 = vadd.f32 0.0, %v3168
      %v3170 = vpop.f32.mrb[0].mxu0
      %3171 = vmatprep.mubr.bf16.mxu0 0
      %3172 = vmatmul.mubr.bf16.gmra.mrb[0].mxu0 %v3039
      %v3173 = vpop.f32.mrb[0].mxu0
      %v3174 = vadd.f32 0.0, %v3173
      %v3175 = vpop.f32.mrb[0].mxu0
      %v3176 = vpop.f32.mrb[0].mxu0
      %v3177 = vadd.f32 0.0, %v3176
      %v3178 = vpop.f32.mrb[0].mxu0
      %3179 = vmatprep.mubr.bf16.mxu0 0
      %3180 = vmatmul.mubr.bf16.gmra.mrb[0].mxu0 %v3042
      %v3181 = vpop.f32.mrb[0].mxu0
      %v3182 = vadd.f32 0.0, %v3181
      %v3183 = vpop.f32.mrb[0].mxu0
      %v3184 = vpop.f32.mrb[0].mxu0
      %v3185 = vadd.f32 0.0, %v3184
      %v3186 = vpop.f32.mrb[0].mxu0
      %3187 = vmatprep.mubr.bf16.mxu0 0
      %3188 = vmatmul.mubr.bf16.gmra.mrb[0].mxu0 %v3045
      %v3189 = vpop.f32.mrb[0].mxu0
      %v3190 = vadd.f32 0.0, %v3189
      %v3191 = vpop.f32.mrb[0].mxu0
      %v3192 = vpop.f32.mrb[0].mxu0
      %v3193 = vadd.f32 0.0, %v3192
      %v3194 = vpop.f32.mrb[0].mxu0
      %3195 = vmatprep.mubr.bf16.mxu0 0
      %3196 = vmatmul.mubr.bf16.gmra.mrb[0].mxu0 %v3048
      %v3197 = vpop.f32.mrb[0].mxu0
      %v3198 = vadd.f32 0.0, %v3197
      %v3199 = vpop.f32.mrb[0].mxu0
      %v3200 = vpop.f32.mrb[0].mxu0
      %v3201 = vadd.f32 0.0, %v3200
      %v3202 = vpop.f32.mrb[0].mxu0
      %3203 = vmatprep.mubr.bf16.mxu0 0
      %3204 = vmatmul.mubr.bf16.gmra.mrb[0].mxu0 %v3051
      %v3205 = vpop.f32.mrb[0].mxu0
      %v3206 = vadd.f32 0.0, %v3205
      %v3207 = vpop.f32.mrb[0].mxu0
      %v3208 = vpop.f32.mrb[0].mxu0
      %v3209 = vadd.f32 0.0, %v3208
      %v3210 = vpop.f32.mrb[0].mxu0
      %3211 = vmatprep.mubr.bf16.mxu0 0
      %3212 = vmatmul.mubr.bf16.gmra.mrb[0].mxu0 %v3054
      %v3213 = vpop.f32.mrb[0].mxu0
      %v3214 = vadd.f32 0.0, %v3213
      %v3215 = vpop.f32.mrb[0].mxu0
      %v3216 = vpop.f32.mrb[0].mxu0
      %v3217 = vadd.f32 0.0, %v3216
      %v3218 = vpop.f32.mrb[0].mxu0
      %3219 = vdwg.mxu0
      %v3220 = vadd.f32 %v2750, %v3094
      %v3221 = vadd.f32 %v2751, %v3097
      %v3222 = vadd.f32 %v2752, %v3102
      %v3223 = vadd.f32 %v2753, %v3105
      %v3224 = vadd.f32 %v2754, %v3110
      %v3225 = vadd.f32 %v2755, %v3113
      %v3226 = vadd.f32 %v2756, %v3118
      %v3227 = vadd.f32 %v2757, %v3121
      %v3228 = vadd.f32 %v2758, %v3126
      %v3229 = vadd.f32 %v2759, %v3129
      %v3230 = vadd.f32 %v2760, %v3134
      %v3231 = vadd.f32 %v2761, %v3137
      %v3232 = vadd.f32 %v2762, %v3142
      %v3233 = vadd.f32 %v2763, %v3145
      %v3234 = vadd.f32 %v2764, %v3150
      %v3235 = vadd.f32 %v2765, %v3153
      %v3236 = vadd.f32 %v2766, %v3158
      %v3237 = vadd.f32 %v2767, %v3161
      %v3238 = vadd.f32 %v2768, %v3166
      %v3239 = vadd.f32 %v2769, %v3169
      %v3240 = vadd.f32 %v2770, %v3174
      %v3241 = vadd.f32 %v2771, %v3177
      %v3242 = vadd.f32 %v2772, %v3182
      %v3243 = vadd.f32 %v2773, %v3185
      %v3244 = vadd.f32 %v2774, %v3190
      %v3245 = vadd.f32 %v2775, %v3193
      %v3246 = vadd.f32 %v2776, %v3198
      %v3247 = vadd.f32 %v2777, %v3201
      %v3248 = vadd.f32 %v2778, %v3206
      %v3249 = vadd.f32 %v2779, %v3209
      %v3250 = vadd.f32 %v2780, %v3214
      %v3251 = vadd.f32 %v2781, %v3217
      %s3252 = sadd.s32 %s241, 2
      %s3253 = smul.u32 %s3252, 3
      %s3254 = smul.addr %s3253, 4
      %s3255 = scalar_lea.vmem %s219, %s3254
      %v3256 = vld [vmem:[%s3255] sm:$0xf]
      %v3257 = vld [vmem:[%s3255 + $0x4] sm:$0xf]
      %v3258 = vld [vmem:[%s3255 + $0xc] sm:$0xf]
      %v3259 = vld [vmem:[%s3255 + $0x10] sm:$0xf]
      %v3260 = vld [vmem:[%s3255 + $0x18] sm:$0xf]
      %v3261 = vld [vmem:[%s3255 + $0x1c] sm:$0xf]
      %v3262 = vld [vmem:[%s3255 + $0x24] sm:$0xf]
      %v3263 = vld [vmem:[%s3255 + $0x28] sm:$0xf]
      %v3264 = vld [vmem:[%s3255 + $0x30] sm:$0xf]
      %v3265 = vld [vmem:[%s3255 + $0x34] sm:$0xf]
      %v3266 = vld [vmem:[%s3255 + $0x3c] sm:$0xf]
      %v3267 = vld [vmem:[%s3255 + $0x40] sm:$0xf]
      %v3268 = vld [vmem:[%s3255 + $0x48] sm:$0xf]
      %v3269 = vld [vmem:[%s3255 + $0x4c] sm:$0xf]
      %v3270 = vld [vmem:[%s3255 + $0x54] sm:$0xf]
      %v3271 = vld [vmem:[%s3255 + $0x58] sm:$0xf]
      %v3272 = vld [vmem:[%s3255 + $0x60] sm:$0xf]
      %v3273 = vld [vmem:[%s3255 + $0x64] sm:$0xf]
      %v3274 = vld [vmem:[%s3255 + $0x6c] sm:$0xf]
      %v3275 = vld [vmem:[%s3255 + $0x70] sm:$0xf]
      %v3276 = vld [vmem:[%s3255 + $0x78] sm:$0xf]
      %v3277 = vld [vmem:[%s3255 + $0x7c] sm:$0xf]
      %v3278 = vld [vmem:[%s3255 + $0x84] sm:$0xf]
      %v3279 = vld [vmem:[%s3255 + $0x88] sm:$0xf]
      %v3280 = vld [vmem:[%s3255 + $0x90] sm:$0xf]
      %v3281 = vld [vmem:[%s3255 + $0x94] sm:$0xf]
      %v3282 = vld [vmem:[%s3255 + $0x9c] sm:$0xf]
      %v3283 = vld [vmem:[%s3255 + $0xa0] sm:$0xf]
      %v3284 = vld [vmem:[%s3255 + $0xa8] sm:$0xf]
      %v3285 = vld [vmem:[%s3255 + $0xac] sm:$0xf]
      %v3286 = vld [vmem:[%s3255 + $0xb4] sm:$0xf]
      %v3287 = vld [vmem:[%s3255 + $0xb8] sm:$0xf]
      %s3288 = scalar_lea.vmem %s223, 12
      %v3289 = vld [vmem:[%s3288] sm:$0x3]
      %v3322 = vunpack.c.l.b16 %v3256
      %v3323 = vunpack.c.l.b16 %v3257
      %v3324 = vunpack.c.l.b16 %v3258
      %v3325 = vunpack.c.l.b16 %v3259
      %v3326 = vunpack.c.l.b16 %v3260
      %v3327 = vunpack.c.l.b16 %v3261
      %v3328 = vunpack.c.l.b16 %v3262
      %v3329 = vunpack.c.l.b16 %v3263
      %v3330 = vunpack.c.l.b16 %v3264
      %v3331 = vunpack.c.l.b16 %v3265
      %v3332 = vunpack.c.l.b16 %v3266
      %v3333 = vunpack.c.l.b16 %v3267
      %v3334 = vunpack.c.l.b16 %v3268
      %v3335 = vunpack.c.l.b16 %v3269
      %v3336 = vunpack.c.l.b16 %v3270
      %v3337 = vunpack.c.l.b16 %v3271
      %v3338 = vunpack.c.l.b16 %v3272
      %v3339 = vunpack.c.l.b16 %v3273
      %v3340 = vunpack.c.l.b16 %v3274
      %v3341 = vunpack.c.l.b16 %v3275
      %v3342 = vunpack.c.l.b16 %v3276
      %v3343 = vunpack.c.l.b16 %v3277
      %v3344 = vunpack.c.l.b16 %v3278
      %v3345 = vunpack.c.l.b16 %v3279
      %v3346 = vunpack.c.l.b16 %v3280
      %v3347 = vunpack.c.l.b16 %v3281
      %v3348 = vunpack.c.l.b16 %v3282
      %v3349 = vunpack.c.l.b16 %v3283
      %v3350 = vunpack.c.l.b16 %v3284
      %v3351 = vunpack.c.l.b16 %v3285
      %v3352 = vunpack.c.l.b16 %v3286
      %v3353 = vunpack.c.l.b16 %v3287
      %v3354 = vpack.c.b16 %v3323, %v3322
      %v3355 = vpack.c.b16 %v3325, %v3324
      %v3356 = vpack.c.b16 %v3327, %v3326
      %v3357 = vpack.c.b16 %v3329, %v3328
      %v3358 = vpack.c.b16 %v3331, %v3330
      %v3359 = vpack.c.b16 %v3333, %v3332
      %v3360 = vpack.c.b16 %v3335, %v3334
      %v3361 = vpack.c.b16 %v3337, %v3336
      %v3362 = vpack.c.b16 %v3339, %v3338
      %v3363 = vpack.c.b16 %v3341, %v3340
      %v3364 = vpack.c.b16 %v3343, %v3342
      %v3365 = vpack.c.b16 %v3345, %v3344
      %v3366 = vpack.c.b16 %v3347, %v3346
      %v3367 = vpack.c.b16 %v3349, %v3348
      %v3368 = vpack.c.b16 %v3351, %v3350
      %v3369 = vpack.c.b16 %v3353, %v3352
      %v3371 = vsel %vm731, %v3354, 0
      %v3374 = vsel %vm731, %v3355, 0
      %v3377 = vsel %vm731, %v3356, 0
      %v3380 = vsel %vm731, %v3357, 0
      %v3383 = vsel %vm731, %v3358, 0
      %v3386 = vsel %vm731, %v3359, 0
      %v3389 = vsel %vm731, %v3360, 0
      %v3392 = vsel %vm731, %v3361, 0
      %v3395 = vsel %vm731, %v3362, 0
      %v3398 = vsel %vm731, %v3363, 0
      %v3401 = vsel %vm731, %v3364, 0
      %v3404 = vsel %vm731, %v3365, 0
      %v3407 = vsel %vm731, %v3366, 0
      %v3410 = vsel %vm731, %v3367, 0
      %v3413 = vsel %vm731, %v3368, 0
      %v3416 = vsel %vm731, %v3369, 0
      %v3419 = vsel %vm780, %v3289, 0
      %3421 = vmatprep.subr.bf16.mxu0 0
      %3422 = vmatpush1.bf16.msra.mxu0 %v3419
      %3423 = vmatprep.subr.bf16.mxu0 0
      %3424 = vmatpush1.bf16.msra.mxu0 0
      %3425 = vmatprep.subr.bf16.mxu0 0
      %3426 = vmatpush1.bf16.msra.mxu0 0
      %3427 = vmatprep.subr.bf16.mxu0 0
      %3428 = vmatpush1.bf16.msra.mxu0 0
      %3429 = vmatprep.subr.bf16.mxu0 0
      %3430 = vmatpush1.bf16.msra.mxu0 0
      %3431 = vmatprep.subr.bf16.mxu0 0
      %3432 = vmatpush1.bf16.msra.mxu0 0
      %3433 = vmatprep.subr.bf16.mxu0 0
      %3434 = vmatpush1.bf16.msra.mxu0 0
      %3435 = vmatprep.subr.bf16.mxu0 0
      %3436 = vmatpush1.bf16.msra.mxu0 0
      %3437 = vmatprep.subr.bf16.mxu0 0
      %3438 = vmatpush1.bf16.msra.mxu0 0
      %3439 = vmatprep.subr.bf16.mxu0 0
      %3440 = vmatpush1.bf16.msra.mxu0 0
      %3441 = vmatprep.subr.bf16.mxu0 0
      %3442 = vmatpush1.bf16.msra.mxu0 0
      %3443 = vmatprep.subr.bf16.mxu0 0
      %3444 = vmatpush1.bf16.msra.mxu0 0
      %3445 = vmatprep.subr.bf16.mxu0 0
      %3446 = vmatpush1.bf16.msra.mxu0 0
      %3447 = vmatprep.subr.bf16.mxu0 0
      %3448 = vmatpush1.bf16.msra.mxu0 0
      %3449 = vmatprep.subr.bf16.mxu0 0
      %3450 = vmatpush1.bf16.msra.mxu0 0
      %3451 = vmatprep.subr.bf16.mxu0 0
      %3452 = vmatpush1.bf16.msra.mxu0 0
      %3453 = vmatprep.mubr.bf16.mxu0 0
      %3454 = vmatmul.mubr.bf16.gmra.mrb[0].mxu0 %v3371
      %v3455 = vpop.f32.mrb[0].mxu0
      %v3456 = vadd.f32 0.0, %v3455
      %v3457 = vpop.f32.mrb[0].mxu0
      %v3458 = vpop.f32.mrb[0].mxu0
      %v3459 = vadd.f32 0.0, %v3458
      %v3460 = vpop.f32.mrb[0].mxu0
      %3461 = vmatprep.mubr.bf16.mxu0 0
      %3462 = vmatmul.mubr.bf16.gmra.mrb[0].mxu0 %v3374
      %v3463 = vpop.f32.mrb[0].mxu0
      %v3464 = vadd.f32 0.0, %v3463
      %v3465 = vpop.f32.mrb[0].mxu0
      %v3466 = vpop.f32.mrb[0].mxu0
      %v3467 = vadd.f32 0.0, %v3466
      %v3468 = vpop.f32.mrb[0].mxu0
      %3469 = vmatprep.mubr.bf16.mxu0 0
      %3470 = vmatmul.mubr.bf16.gmra.mrb[0].mxu0 %v3377
      %v3471 = vpop.f32.mrb[0].mxu0
      %v3472 = vadd.f32 0.0, %v3471
      %v3473 = vpop.f32.mrb[0].mxu0
      %v3474 = vpop.f32.mrb[0].mxu0
      %v3475 = vadd.f32 0.0, %v3474
      %v3476 = vpop.f32.mrb[0].mxu0
      %3477 = vmatprep.mubr.bf16.mxu0 0
      %3478 = vmatmul.mubr.bf16.gmra.mrb[0].mxu0 %v3380
      %v3479 = vpop.f32.mrb[0].mxu0
      %v3480 = vadd.f32 0.0, %v3479
      %v3481 = vpop.f32.mrb[0].mxu0
      %v3482 = vpop.f32.mrb[0].mxu0
      %v3483 = vadd.f32 0.0, %v3482
      %v3484 = vpop.f32.mrb[0].mxu0
      %3485 = vmatprep.mubr.bf16.mxu0 0
      %3486 = vmatmul.mubr.bf16.gmra.mrb[0].mxu0 %v3383
      %v3487 = vpop.f32.mrb[0].mxu0
      %v3488 = vadd.f32 0.0, %v3487
      %v3489 = vpop.f32.mrb[0].mxu0
      %v3490 = vpop.f32.mrb[0].mxu0
      %v3491 = vadd.f32 0.0, %v3490
      %v3492 = vpop.f32.mrb[0].mxu0
      %3493 = vmatprep.mubr.bf16.mxu0 0
      %3494 = vmatmul.mubr.bf16.gmra.mrb[0].mxu0 %v3386
      %v3495 = vpop.f32.mrb[0].mxu0
      %v3496 = vadd.f32 0.0, %v3495
      %v3497 = vpop.f32.mrb[0].mxu0
      %v3498 = vpop.f32.mrb[0].mxu0
      %v3499 = vadd.f32 0.0, %v3498
      %v3500 = vpop.f32.mrb[0].mxu0
      %3501 = vmatprep.mubr.bf16.mxu0 0
      %3502 = vmatmul.mubr.bf16.gmra.mrb[0].mxu0 %v3389
      %v3503 = vpop.f32.mrb[0].mxu0
      %v3504 = vadd.f32 0.0, %v3503
      %v3505 = vpop.f32.mrb[0].mxu0
      %v3506 = vpop.f32.mrb[0].mxu0
      %v3507 = vadd.f32 0.0, %v3506
      %v3508 = vpop.f32.mrb[0].mxu0
      %3509 = vmatprep.mubr.bf16.mxu0 0
      %3510 = vmatmul.mubr.bf16.gmra.mrb[0].mxu0 %v3392
      %v3511 = vpop.f32.mrb[0].mxu0
      %v3512 = vadd.f32 0.0, %v3511
      %v3513 = vpop.f32.mrb[0].mxu0
      %v3514 = vpop.f32.mrb[0].mxu0
      %v3515 = vadd.f32 0.0, %v3514
      %v3516 = vpop.f32.mrb[0].mxu0
      %3517 = vmatprep.mubr.bf16.mxu0 0
      %3518 = vmatmul.mubr.bf16.gmra.mrb[0].mxu0 %v3395
      %v3519 = vpop.f32.mrb[0].mxu0
      %v3520 = vadd.f32 0.0, %v3519
      %v3521 = vpop.f32.mrb[0].mxu0
      %v3522 = vpop.f32.mrb[0].mxu0
      %v3523 = vadd.f32 0.0, %v3522
      %v3524 = vpop.f32.mrb[0].mxu0
      %3525 = vmatprep.mubr.bf16.mxu0 0
      %3526 = vmatmul.mubr.bf16.gmra.mrb[0].mxu0 %v3398
      %v3527 = vpop.f32.mrb[0].mxu0
      %v3528 = vadd.f32 0.0, %v3527
      %v3529 = vpop.f32.mrb[0].mxu0
      %v3530 = vpop.f32.mrb[0].mxu0
      %v3531 = vadd.f32 0.0, %v3530
      %v3532 = vpop.f32.mrb[0].mxu0
      %3533 = vmatprep.mubr.bf16.mxu0 0
      %3534 = vmatmul.mubr.bf16.gmra.mrb[0].mxu0 %v3401
      %v3535 = vpop.f32.mrb[0].mxu0
      %v3536 = vadd.f32 0.0, %v3535
      %v3537 = vpop.f32.mrb[0].mxu0
      %v3538 = vpop.f32.mrb[0].mxu0
      %v3539 = vadd.f32 0.0, %v3538
      %v3540 = vpop.f32.mrb[0].mxu0
      %3541 = vmatprep.mubr.bf16.mxu0 0
      %3542 = vmatmul.mubr.bf16.gmra.mrb[0].mxu0 %v3404
      %v3543 = vpop.f32.mrb[0].mxu0
      %v3544 = vadd.f32 0.0, %v3543
      %v3545 = vpop.f32.mrb[0].mxu0
      %v3546 = vpop.f32.mrb[0].mxu0
      %v3547 = vadd.f32 0.0, %v3546
      %v3548 = vpop.f32.mrb[0].mxu0
      %3549 = vmatprep.mubr.bf16.mxu0 0
      %3550 = vmatmul.mubr.bf16.gmra.mrb[0].mxu0 %v3407
      %v3551 = vpop.f32.mrb[0].mxu0
      %v3552 = vadd.f32 0.0, %v3551
      %v3553 = vpop.f32.mrb[0].mxu0
      %v3554 = vpop.f32.mrb[0].mxu0
      %v3555 = vadd.f32 0.0, %v3554
      %v3556 = vpop.f32.mrb[0].mxu0
      %3557 = vmatprep.mubr.bf16.mxu0 0
      %3558 = vmatmul.mubr.bf16.gmra.mrb[0].mxu0 %v3410
      %v3559 = vpop.f32.mrb[0].mxu0
      %v3560 = vadd.f32 0.0, %v3559
      %v3561 = vpop.f32.mrb[0].mxu0
      %v3562 = vpop.f32.mrb[0].mxu0
      %v3563 = vadd.f32 0.0, %v3562
      %v3564 = vpop.f32.mrb[0].mxu0
      %3565 = vmatprep.mubr.bf16.mxu0 0
      %3566 = vmatmul.mubr.bf16.gmra.mrb[0].mxu0 %v3413
      %v3567 = vpop.f32.mrb[0].mxu0
      %v3568 = vadd.f32 0.0, %v3567
      %v3569 = vpop.f32.mrb[0].mxu0
      %v3570 = vpop.f32.mrb[0].mxu0
      %v3571 = vadd.f32 0.0, %v3570
      %v3572 = vpop.f32.mrb[0].mxu0
      %3573 = vmatprep.mubr.bf16.mxu0 0
      %3574 = vmatmul.mubr.bf16.gmra.mrb[0].mxu0 %v3416
      %v3575 = vpop.f32.mrb[0].mxu0
      %v3576 = vadd.f32 0.0, %v3575
      %v3577 = vpop.f32.mrb[0].mxu0
      %v3578 = vpop.f32.mrb[0].mxu0
      %v3579 = vadd.f32 0.0, %v3578
      %v3580 = vpop.f32.mrb[0].mxu0
      %3581 = vdwg.mxu0
      %v3582 = vadd.f32 %v3220, %v3456
      %v3583 = vadd.f32 %v3221, %v3459
      %v3584 = vadd.f32 %v3222, %v3464
      %v3585 = vadd.f32 %v3223, %v3467
      %v3586 = vadd.f32 %v3224, %v3472
      %v3587 = vadd.f32 %v3225, %v3475
      %v3588 = vadd.f32 %v3226, %v3480
      %v3589 = vadd.f32 %v3227, %v3483
      %v3590 = vadd.f32 %v3228, %v3488
      %v3591 = vadd.f32 %v3229, %v3491
      %v3592 = vadd.f32 %v3230, %v3496
      %v3593 = vadd.f32 %v3231, %v3499
      %v3594 = vadd.f32 %v3232, %v3504
      %v3595 = vadd.f32 %v3233, %v3507
      %v3596 = vadd.f32 %v3234, %v3512
      %v3597 = vadd.f32 %v3235, %v3515
      %v3598 = vadd.f32 %v3236, %v3520
      %v3599 = vadd.f32 %v3237, %v3523
      %v3600 = vadd.f32 %v3238, %v3528
      %v3601 = vadd.f32 %v3239, %v3531
      %v3602 = vadd.f32 %v3240, %v3536
      %v3603 = vadd.f32 %v3241, %v3539
      %v3604 = vadd.f32 %v3242, %v3544
      %v3605 = vadd.f32 %v3243, %v3547
      %v3606 = vadd.f32 %v3244, %v3552
      %v3607 = vadd.f32 %v3245, %v3555
      %v3608 = vadd.f32 %v3246, %v3560
      %v3609 = vadd.f32 %v3247, %v3563
      %v3610 = vadd.f32 %v3248, %v3568
      %v3611 = vadd.f32 %v3249, %v3571
      %v3612 = vadd.f32 %v3250, %v3576
      %v3613 = vadd.f32 %v3251, %v3579
      %v3614 = vld [vmem:[%s3255] sm:$0xf]
      %v3615 = vld [vmem:[%s3255 + $0x4] sm:$0xf]
      %v3616 = vld [vmem:[%s3255 + $0x8] sm:$0x1]
      %v3617 = vld [vmem:[%s3255 + $0xc] sm:$0xf]
      %v3618 = vld [vmem:[%s3255 + $0x10] sm:$0xf]
      %v3619 = vld [vmem:[%s3255 + $0x14] sm:$0x1]
      %v3620 = vld [vmem:[%s3255 + $0x18] sm:$0xf]
      %v3621 = vld [vmem:[%s3255 + $0x1c] sm:$0xf]
      %v3622 = vld [vmem:[%s3255 + $0x20] sm:$0x1]
      %v3623 = vld [vmem:[%s3255 + $0x24] sm:$0xf]
      %v3624 = vld [vmem:[%s3255 + $0x28] sm:$0xf]
      %v3625 = vld [vmem:[%s3255 + $0x2c] sm:$0x1]
      %v3626 = vld [vmem:[%s3255 + $0x30] sm:$0xf]
      %v3627 = vld [vmem:[%s3255 + $0x34] sm:$0xf]
      %v3628 = vld [vmem:[%s3255 + $0x38] sm:$0x1]
      %v3629 = vld [vmem:[%s3255 + $0x3c] sm:$0xf]
      %v3630 = vld [vmem:[%s3255 + $0x40] sm:$0xf]
      %v3631 = vld [vmem:[%s3255 + $0x44] sm:$0x1]
      %v3632 = vld [vmem:[%s3255 + $0x48] sm:$0xf]
      %v3633 = vld [vmem:[%s3255 + $0x4c] sm:$0xf]
      %v3634 = vld [vmem:[%s3255 + $0x50] sm:$0x1]
      %v3635 = vld [vmem:[%s3255 + $0x54] sm:$0xf]
      %v3636 = vld [vmem:[%s3255 + $0x58] sm:$0xf]
      %v3637 = vld [vmem:[%s3255 + $0x5c] sm:$0x1]
      %v3638 = vld [vmem:[%s3255 + $0x60] sm:$0xf]
      %v3639 = vld [vmem:[%s3255 + $0x64] sm:$0xf]
      %v3640 = vld [vmem:[%s3255 + $0x68] sm:$0x1]
      %v3641 = vld [vmem:[%s3255 + $0x6c] sm:$0xf]
      %v3642 = vld [vmem:[%s3255 + $0x70] sm:$0xf]
      %v3643 = vld [vmem:[%s3255 + $0x74] sm:$0x1]
      %v3644 = vld [vmem:[%s3255 + $0x78] sm:$0xf]
      %v3645 = vld [vmem:[%s3255 + $0x7c] sm:$0xf]
      %v3646 = vld [vmem:[%s3255 + $0x80] sm:$0x1]
      %v3647 = vld [vmem:[%s3255 + $0x84] sm:$0xf]
      %v3648 = vld [vmem:[%s3255 + $0x88] sm:$0xf]
      %v3649 = vld [vmem:[%s3255 + $0x8c] sm:$0x1]
      %v3650 = vld [vmem:[%s3255 + $0x90] sm:$0xf]
      %v3651 = vld [vmem:[%s3255 + $0x94] sm:$0xf]
      %v3652 = vld [vmem:[%s3255 + $0x98] sm:$0x1]
      %v3653 = vld [vmem:[%s3255 + $0x9c] sm:$0xf]
      %v3654 = vld [vmem:[%s3255 + $0xa0] sm:$0xf]
      %v3655 = vld [vmem:[%s3255 + $0xa4] sm:$0x1]
      %v3656 = vld [vmem:[%s3255 + $0xa8] sm:$0xf]
      %v3657 = vld [vmem:[%s3255 + $0xac] sm:$0xf]
      %v3658 = vld [vmem:[%s3255 + $0xb0] sm:$0x1]
      %v3659 = vld [vmem:[%s3255 + $0xb4] sm:$0xf]
      %v3660 = vld [vmem:[%s3255 + $0xb8] sm:$0xf]
      %v3661 = vld [vmem:[%s3255 + $0xbc] sm:$0x1]
      %v3663 = vshrl.u32 %v3614, 16
      %v3665 = vrot.slane %v3663, 4
      %v3666 = vshll.u32 %v3614, 16
      %v3668 = vrot.slane %v3666, 5
      %v3669 = vor.u32 %v3665, %v3668
      %v3670 = vrot.slane %v3669, 4
      %v3672 = vshll.u32 %v3615, 16
      %v3674 = vrot.slane %v3672, 5
      %v3675 = vsel %vm296, %v3670, %v3674
      %v3676 = vshrl.u32 %v3615, 16
      %v3678 = vrot.slane %v3676, 4
      %v3679 = vor.u32 %v3678, %v3674
      %v3680 = vrot.slane %v3679, 4
      %v3682 = vshll.u32 %v3616, 16
      %v3684 = vrot.slane %v3682, 5
      %v3685 = vsel %vm296, %v3680, %v3684
      %v3687 = vshrl.u32 %v3617, 16
      %v3689 = vrot.slane %v3687, 4
      %v3690 = vshll.u32 %v3617, 16
      %v3692 = vrot.slane %v3690, 5
      %v3693 = vor.u32 %v3689, %v3692
      %v3694 = vrot.slane %v3693, 4
      %v3696 = vshll.u32 %v3618, 16
      %v3698 = vrot.slane %v3696, 5
      %v3699 = vsel %vm296, %v3694, %v3698
      %v3700 = vshrl.u32 %v3618, 16
      %v3702 = vrot.slane %v3700, 4
      %v3703 = vor.u32 %v3702, %v3698
      %v3704 = vrot.slane %v3703, 4
      %v3706 = vshll.u32 %v3619, 16
      %v3708 = vrot.slane %v3706, 5
      %v3709 = vsel %vm296, %v3704, %v3708
      %v3711 = vshrl.u32 %v3620, 16
      %v3713 = vrot.slane %v3711, 4
      %v3714 = vshll.u32 %v3620, 16
      %v3716 = vrot.slane %v3714, 5
      %v3717 = vor.u32 %v3713, %v3716
      %v3718 = vrot.slane %v3717, 4
      %v3720 = vshll.u32 %v3621, 16
      %v3722 = vrot.slane %v3720, 5
      %v3723 = vsel %vm296, %v3718, %v3722
      %v3724 = vshrl.u32 %v3621, 16
      %v3726 = vrot.slane %v3724, 4
      %v3727 = vor.u32 %v3726, %v3722
      %v3728 = vrot.slane %v3727, 4
      %v3730 = vshll.u32 %v3622, 16
      %v3732 = vrot.slane %v3730, 5
      %v3733 = vsel %vm296, %v3728, %v3732
      %v3735 = vshrl.u32 %v3623, 16
      %v3737 = vrot.slane %v3735, 4
      %v3738 = vshll.u32 %v3623, 16
      %v3740 = vrot.slane %v3738, 5
      %v3741 = vor.u32 %v3737, %v3740
      %v3742 = vrot.slane %v3741, 4
      %v3744 = vshll.u32 %v3624, 16
      %v3746 = vrot.slane %v3744, 5
      %v3747 = vsel %vm296, %v3742, %v3746
      %v3748 = vshrl.u32 %v3624, 16
      %v3750 = vrot.slane %v3748, 4
      %v3751 = vor.u32 %v3750, %v3746
      %v3752 = vrot.slane %v3751, 4
      %v3754 = vshll.u32 %v3625, 16
      %v3756 = vrot.slane %v3754, 5
      %v3757 = vsel %vm296, %v3752, %v3756
      %v3759 = vshrl.u32 %v3626, 16
      %v3761 = vrot.slane %v3759, 4
      %v3762 = vshll.u32 %v3626, 16
      %v3764 = vrot.slane %v3762, 5
      %v3765 = vor.u32 %v3761, %v3764
      %v3766 = vrot.slane %v3765, 4
      %v3768 = vshll.u32 %v3627, 16
      %v3770 = vrot.slane %v3768, 5
      %v3771 = vsel %vm296, %v3766, %v3770
      %v3772 = vshrl.u32 %v3627, 16
      %v3774 = vrot.slane %v3772, 4
      %v3775 = vor.u32 %v3774, %v3770
      %v3776 = vrot.slane %v3775, 4
      %v3778 = vshll.u32 %v3628, 16
      %v3780 = vrot.slane %v3778, 5
      %v3781 = vsel %vm296, %v3776, %v3780
      %v3783 = vshrl.u32 %v3629, 16
      %v3785 = vrot.slane %v3783, 4
      %v3786 = vshll.u32 %v3629, 16
      %v3788 = vrot.slane %v3786, 5
      %v3789 = vor.u32 %v3785, %v3788
      %v3790 = vrot.slane %v3789, 4
      %v3792 = vshll.u32 %v3630, 16
      %v3794 = vrot.slane %v3792, 5
      %v3795 = vsel %vm296, %v3790, %v3794
      %v3796 = vshrl.u32 %v3630, 16
      %v3798 = vrot.slane %v3796, 4
      %v3799 = vor.u32 %v3798, %v3794
      %v3800 = vrot.slane %v3799, 4
      %v3802 = vshll.u32 %v3631, 16
      %v3804 = vrot.slane %v3802, 5
      %v3805 = vsel %vm296, %v3800, %v3804
      %v3807 = vshrl.u32 %v3632, 16
      %v3809 = vrot.slane %v3807, 4
      %v3810 = vshll.u32 %v3632, 16
      %v3812 = vrot.slane %v3810, 5
      %v3813 = vor.u32 %v3809, %v3812
      %v3814 = vrot.slane %v3813, 4
      %v3816 = vshll.u32 %v3633, 16
      %v3818 = vrot.slane %v3816, 5
      %v3819 = vsel %vm296, %v3814, %v3818
      %v3820 = vshrl.u32 %v3633, 16
      %v3822 = vrot.slane %v3820, 4
      %v3823 = vor.u32 %v3822, %v3818
      %v3824 = vrot.slane %v3823, 4
      %v3826 = vshll.u32 %v3634, 16
      %v3828 = vrot.slane %v3826, 5
      %v3829 = vsel %vm296, %v3824, %v3828
      %v3831 = vshrl.u32 %v3635, 16
      %v3833 = vrot.slane %v3831, 4
      %v3834 = vshll.u32 %v3635, 16
      %v3836 = vrot.slane %v3834, 5
      %v3837 = vor.u32 %v3833, %v3836
      %v3838 = vrot.slane %v3837, 4
      %v3840 = vshll.u32 %v3636, 16
      %v3842 = vrot.slane %v3840, 5
      %v3843 = vsel %vm296, %v3838, %v3842
      %v3844 = vshrl.u32 %v3636, 16
      %v3846 = vrot.slane %v3844, 4
      %v3847 = vor.u32 %v3846, %v3842
      %v3848 = vrot.slane %v3847, 4
      %v3850 = vshll.u32 %v3637, 16
      %v3852 = vrot.slane %v3850, 5
      %v3853 = vsel %vm296, %v3848, %v3852
      %v3855 = vshrl.u32 %v3638, 16
      %v3857 = vrot.slane %v3855, 4
      %v3858 = vshll.u32 %v3638, 16
      %v3860 = vrot.slane %v3858, 5
      %v3861 = vor.u32 %v3857, %v3860
      %v3862 = vrot.slane %v3861, 4
      %v3864 = vshll.u32 %v3639, 16
      %v3866 = vrot.slane %v3864, 5
      %v3867 = vsel %vm296, %v3862, %v3866
      %v3868 = vshrl.u32 %v3639, 16
      %v3870 = vrot.slane %v3868, 4
      %v3871 = vor.u32 %v3870, %v3866
      %v3872 = vrot.slane %v3871, 4
      %v3874 = vshll.u32 %v3640, 16
      %v3876 = vrot.slane %v3874, 5
      %v3877 = vsel %vm296, %v3872, %v3876
      %v3879 = vshrl.u32 %v3641, 16
      %v3881 = vrot.slane %v3879, 4
      %v3882 = vshll.u32 %v3641, 16
      %v3884 = vrot.slane %v3882, 5
      %v3885 = vor.u32 %v3881, %v3884
      %v3886 = vrot.slane %v3885, 4
      %v3888 = vshll.u32 %v3642, 16
      %v3890 = vrot.slane %v3888, 5
      %v3891 = vsel %vm296, %v3886, %v3890
      %v3892 = vshrl.u32 %v3642, 16
      %v3894 = vrot.slane %v3892, 4
      %v3895 = vor.u32 %v3894, %v3890
      %v3896 = vrot.slane %v3895, 4
      %v3898 = vshll.u32 %v3643, 16
      %v3900 = vrot.slane %v3898, 5
      %v3901 = vsel %vm296, %v3896, %v3900
      %v3903 = vshrl.u32 %v3644, 16
      %v3905 = vrot.slane %v3903, 4
      %v3906 = vshll.u32 %v3644, 16
      %v3908 = vrot.slane %v3906, 5
      %v3909 = vor.u32 %v3905, %v3908
      %v3910 = vrot.slane %v3909, 4
      %v3912 = vshll.u32 %v3645, 16
      %v3914 = vrot.slane %v3912, 5
      %v3915 = vsel %vm296, %v3910, %v3914
      %v3916 = vshrl.u32 %v3645, 16
      %v3918 = vrot.slane %v3916, 4
      %v3919 = vor.u32 %v3918, %v3914
      %v3920 = vrot.slane %v3919, 4
      %v3922 = vshll.u32 %v3646, 16
      %v3924 = vrot.slane %v3922, 5
      %v3925 = vsel %vm296, %v3920, %v3924
      %v3927 = vshrl.u32 %v3647, 16
      %v3929 = vrot.slane %v3927, 4
      %v3930 = vshll.u32 %v3647, 16
      %v3932 = vrot.slane %v3930, 5
      %v3933 = vor.u32 %v3929, %v3932
      %v3934 = vrot.slane %v3933, 4
      %v3936 = vshll.u32 %v3648, 16
      %v3938 = vrot.slane %v3936, 5
      %v3939 = vsel %vm296, %v3934, %v3938
      %v3940 = vshrl.u32 %v3648, 16
      %v3942 = vrot.slane %v3940, 4
      %v3943 = vor.u32 %v3942, %v3938
      %v3944 = vrot.slane %v3943, 4
      %v3946 = vshll.u32 %v3649, 16
      %v3948 = vrot.slane %v3946, 5
      %v3949 = vsel %vm296, %v3944, %v3948
      %v3951 = vshrl.u32 %v3650, 16
      %v3953 = vrot.slane %v3951, 4
      %v3954 = vshll.u32 %v3650, 16
      %v3956 = vrot.slane %v3954, 5
      %v3957 = vor.u32 %v3953, %v3956
      %v3958 = vrot.slane %v3957, 4
      %v3960 = vshll.u32 %v3651, 16
      %v3962 = vrot.slane %v3960, 5
      %v3963 = vsel %vm296, %v3958, %v3962
      %v3964 = vshrl.u32 %v3651, 16
      %v3966 = vrot.slane %v3964, 4
      %v3967 = vor.u32 %v3966, %v3962
      %v3968 = vrot.slane %v3967, 4
      %v3970 = vshll.u32 %v3652, 16
      %v3972 = vrot.slane %v3970, 5
      %v3973 = vsel %vm296, %v3968, %v3972
      %v3975 = vshrl.u32 %v3653, 16
      %v3977 = vrot.slane %v3975, 4
      %v3978 = vshll.u32 %v3653, 16
      %v3980 = vrot.slane %v3978, 5
      %v3981 = vor.u32 %v3977, %v3980
      %v3982 = vrot.slane %v3981, 4
      %v3984 = vshll.u32 %v3654, 16
      %v3986 = vrot.slane %v3984, 5
      %v3987 = vsel %vm296, %v3982, %v3986
      %v3988 = vshrl.u32 %v3654, 16
      %v3990 = vrot.slane %v3988, 4
      %v3991 = vor.u32 %v3990, %v3986
      %v3992 = vrot.slane %v3991, 4
      %v3994 = vshll.u32 %v3655, 16
      %v3996 = vrot.slane %v3994, 5
      %v3997 = vsel %vm296, %v3992, %v3996
      %v3999 = vshrl.u32 %v3656, 16
      %v4001 = vrot.slane %v3999, 4
      %v4002 = vshll.u32 %v3656, 16
      %v4004 = vrot.slane %v4002, 5
      %v4005 = vor.u32 %v4001, %v4004
      %v4006 = vrot.slane %v4005, 4
      %v4008 = vshll.u32 %v3657, 16
      %v4010 = vrot.slane %v4008, 5
      %v4011 = vsel %vm296, %v4006, %v4010
      %v4012 = vshrl.u32 %v3657, 16
      %v4014 = vrot.slane %v4012, 4
      %v4015 = vor.u32 %v4014, %v4010
      %v4016 = vrot.slane %v4015, 4
      %v4018 = vshll.u32 %v3658, 16
      %v4020 = vrot.slane %v4018, 5
      %v4021 = vsel %vm296, %v4016, %v4020
      %v4023 = vshrl.u32 %v3659, 16
      %v4025 = vrot.slane %v4023, 4
      %v4026 = vshll.u32 %v3659, 16
      %v4028 = vrot.slane %v4026, 5
      %v4029 = vor.u32 %v4025, %v4028
      %v4030 = vrot.slane %v4029, 4
      %v4032 = vshll.u32 %v3660, 16
      %v4034 = vrot.slane %v4032, 5
      %v4035 = vsel %vm296, %v4030, %v4034
      %v4036 = vshrl.u32 %v3660, 16
      %v4038 = vrot.slane %v4036, 4
      %v4039 = vor.u32 %v4038, %v4034
      %v4040 = vrot.slane %v4039, 4
      %v4042 = vshll.u32 %v3661, 16
      %v4044 = vrot.slane %v4042, 5
      %v4045 = vsel %vm296, %v4040, %v4044
      %s4046 = scalar_lea.vmem %s223, 14
      %v4047 = vld [vmem:[%s4046] sm:$0x3]
      %v4048 = vunpack.c.l.b16 %v3675
      %v4049 = vunpack.c.l.b16 %v3685
      %v4050 = vunpack.c.l.b16 %v3699
      %v4051 = vunpack.c.l.b16 %v3709
      %v4052 = vunpack.c.l.b16 %v3723
      %v4053 = vunpack.c.l.b16 %v3733
      %v4054 = vunpack.c.l.b16 %v3747
      %v4055 = vunpack.c.l.b16 %v3757
      %v4056 = vunpack.c.l.b16 %v3771
      %v4057 = vunpack.c.l.b16 %v3781
      %v4058 = vunpack.c.l.b16 %v3795
      %v4059 = vunpack.c.l.b16 %v3805
      %v4060 = vunpack.c.l.b16 %v3819
      %v4061 = vunpack.c.l.b16 %v3829
      %v4062 = vunpack.c.l.b16 %v3843
      %v4063 = vunpack.c.l.b16 %v3853
      %v4064 = vunpack.c.l.b16 %v3867
      %v4065 = vunpack.c.l.b16 %v3877
      %v4066 = vunpack.c.l.b16 %v3891
      %v4067 = vunpack.c.l.b16 %v3901
      %v4068 = vunpack.c.l.b16 %v3915
      %v4069 = vunpack.c.l.b16 %v3925
      %v4070 = vunpack.c.l.b16 %v3939
      %v4071 = vunpack.c.l.b16 %v3949
      %v4072 = vunpack.c.l.b16 %v3963
      %v4073 = vunpack.c.l.b16 %v3973
      %v4074 = vunpack.c.l.b16 %v3987
      %v4075 = vunpack.c.l.b16 %v3997
      %v4076 = vunpack.c.l.b16 %v4011
      %v4077 = vunpack.c.l.b16 %v4021
      %v4078 = vunpack.c.l.b16 %v4035
      %v4079 = vunpack.c.l.b16 %v4045
      %v4080 = vpack.c.b16 %v4049, %v4048
      %v4081 = vpack.c.b16 %v4051, %v4050
      %v4082 = vpack.c.b16 %v4053, %v4052
      %v4083 = vpack.c.b16 %v4055, %v4054
      %v4084 = vpack.c.b16 %v4057, %v4056
      %v4085 = vpack.c.b16 %v4059, %v4058
      %v4086 = vpack.c.b16 %v4061, %v4060
      %v4087 = vpack.c.b16 %v4063, %v4062
      %v4088 = vpack.c.b16 %v4065, %v4064
      %v4089 = vpack.c.b16 %v4067, %v4066
      %v4090 = vpack.c.b16 %v4069, %v4068
      %v4091 = vpack.c.b16 %v4071, %v4070
      %v4092 = vpack.c.b16 %v4073, %v4072
      %v4093 = vpack.c.b16 %v4075, %v4074
      %v4094 = vpack.c.b16 %v4077, %v4076
      %v4095 = vpack.c.b16 %v4079, %v4078
      %v4097 = vsel %vm731, %v4080, 0
      %v4100 = vsel %vm731, %v4081, 0
      %v4103 = vsel %vm731, %v4082, 0
      %v4106 = vsel %vm731, %v4083, 0
      %v4109 = vsel %vm731, %v4084, 0
      %v4112 = vsel %vm731, %v4085, 0
      %v4115 = vsel %vm731, %v4086, 0
      %v4118 = vsel %vm731, %v4087, 0
      %v4121 = vsel %vm731, %v4088, 0
      %v4124 = vsel %vm731, %v4089, 0
      %v4127 = vsel %vm731, %v4090, 0
      %v4130 = vsel %vm731, %v4091, 0
      %v4133 = vsel %vm731, %v4092, 0
      %v4136 = vsel %vm731, %v4093, 0
      %v4139 = vsel %vm731, %v4094, 0
      %v4142 = vsel %vm731, %v4095, 0
      %v4145 = vsel %vm780, %v4047, 0
      %4147 = vmatprep.subr.bf16.mxu0 0
      %4148 = vmatpush1.bf16.msra.mxu0 %v4145
      %4149 = vmatprep.subr.bf16.mxu0 0
      %4150 = vmatpush1.bf16.msra.mxu0 0
      %4151 = vmatprep.subr.bf16.mxu0 0
      %4152 = vmatpush1.bf16.msra.mxu0 0
      %4153 = vmatprep.subr.bf16.mxu0 0
      %4154 = vmatpush1.bf16.msra.mxu0 0
      %4155 = vmatprep.subr.bf16.mxu0 0
      %4156 = vmatpush1.bf16.msra.mxu0 0
      %4157 = vmatprep.subr.bf16.mxu0 0
      %4158 = vmatpush1.bf16.msra.mxu0 0
      %4159 = vmatprep.subr.bf16.mxu0 0
      %4160 = vmatpush1.bf16.msra.mxu0 0
      %4161 = vmatprep.subr.bf16.mxu0 0
      %4162 = vmatpush1.bf16.msra.mxu0 0
      %4163 = vmatprep.subr.bf16.mxu0 0
      %4164 = vmatpush1.bf16.msra.mxu0 0
      %4165 = vmatprep.subr.bf16.mxu0 0
      %4166 = vmatpush1.bf16.msra.mxu0 0
      %4167 = vmatprep.subr.bf16.mxu0 0
      %4168 = vmatpush1.bf16.msra.mxu0 0
      %4169 = vmatprep.subr.bf16.mxu0 0
      %4170 = vmatpush1.bf16.msra.mxu0 0
      %4171 = vmatprep.subr.bf16.mxu0 0
      %4172 = vmatpush1.bf16.msra.mxu0 0
      %4173 = vmatprep.subr.bf16.mxu0 0
      %4174 = vmatpush1.bf16.msra.mxu0 0
      %4175 = vmatprep.subr.bf16.mxu0 0
      %4176 = vmatpush1.bf16.msra.mxu0 0
      %4177 = vmatprep.subr.bf16.mxu0 0
      %4178 = vmatpush1.bf16.msra.mxu0 0
      %4179 = vmatprep.mubr.bf16.mxu0 0
      %4180 = vmatmul.mubr.bf16.gmra.mrb[0].mxu0 %v4097
      %v4181 = vpop.f32.mrb[0].mxu0
      %v4182 = vadd.f32 0.0, %v4181
      %v4183 = vpop.f32.mrb[0].mxu0
      %v4184 = vpop.f32.mrb[0].mxu0
      %v4185 = vadd.f32 0.0, %v4184
      %v4186 = vpop.f32.mrb[0].mxu0
      %4187 = vmatprep.mubr.bf16.mxu0 0
      %4188 = vmatmul.mubr.bf16.gmra.mrb[0].mxu0 %v4100
      %v4189 = vpop.f32.mrb[0].mxu0
      %v4190 = vadd.f32 0.0, %v4189
      %v4191 = vpop.f32.mrb[0].mxu0
      %v4192 = vpop.f32.mrb[0].mxu0
      %v4193 = vadd.f32 0.0, %v4192
      %v4194 = vpop.f32.mrb[0].mxu0
      %4195 = vmatprep.mubr.bf16.mxu0 0
      %4196 = vmatmul.mubr.bf16.gmra.mrb[0].mxu0 %v4103
      %v4197 = vpop.f32.mrb[0].mxu0
      %v4198 = vadd.f32 0.0, %v4197
      %v4199 = vpop.f32.mrb[0].mxu0
      %v4200 = vpop.f32.mrb[0].mxu0
      %v4201 = vadd.f32 0.0, %v4200
      %v4202 = vpop.f32.mrb[0].mxu0
      %4203 = vmatprep.mubr.bf16.mxu0 0
      %4204 = vmatmul.mubr.bf16.gmra.mrb[0].mxu0 %v4106
      %v4205 = vpop.f32.mrb[0].mxu0
      %v4206 = vadd.f32 0.0, %v4205
      %v4207 = vpop.f32.mrb[0].mxu0
      %v4208 = vpop.f32.mrb[0].mxu0
      %v4209 = vadd.f32 0.0, %v4208
      %v4210 = vpop.f32.mrb[0].mxu0
      %4211 = vmatprep.mubr.bf16.mxu0 0
      %4212 = vmatmul.mubr.bf16.gmra.mrb[0].mxu0 %v4109
      %v4213 = vpop.f32.mrb[0].mxu0
      %v4214 = vadd.f32 0.0, %v4213
      %v4215 = vpop.f32.mrb[0].mxu0
      %v4216 = vpop.f32.mrb[0].mxu0
      %v4217 = vadd.f32 0.0, %v4216
      %v4218 = vpop.f32.mrb[0].mxu0
      %4219 = vmatprep.mubr.bf16.mxu0 0
      %4220 = vmatmul.mubr.bf16.gmra.mrb[0].mxu0 %v4112
      %v4221 = vpop.f32.mrb[0].mxu0
      %v4222 = vadd.f32 0.0, %v4221
      %v4223 = vpop.f32.mrb[0].mxu0
      %v4224 = vpop.f32.mrb[0].mxu0
      %v4225 = vadd.f32 0.0, %v4224
      %v4226 = vpop.f32.mrb[0].mxu0
      %4227 = vmatprep.mubr.bf16.mxu0 0
      %4228 = vmatmul.mubr.bf16.gmra.mrb[0].mxu0 %v4115
      %v4229 = vpop.f32.mrb[0].mxu0
      %v4230 = vadd.f32 0.0, %v4229
      %v4231 = vpop.f32.mrb[0].mxu0
      %v4232 = vpop.f32.mrb[0].mxu0
      %v4233 = vadd.f32 0.0, %v4232
      %v4234 = vpop.f32.mrb[0].mxu0
      %4235 = vmatprep.mubr.bf16.mxu0 0
      %4236 = vmatmul.mubr.bf16.gmra.mrb[0].mxu0 %v4118
      %v4237 = vpop.f32.mrb[0].mxu0
      %v4238 = vadd.f32 0.0, %v4237
      %v4239 = vpop.f32.mrb[0].mxu0
      %v4240 = vpop.f32.mrb[0].mxu0
      %v4241 = vadd.f32 0.0, %v4240
      %v4242 = vpop.f32.mrb[0].mxu0
      %4243 = vmatprep.mubr.bf16.mxu0 0
      %4244 = vmatmul.mubr.bf16.gmra.mrb[0].mxu0 %v4121
      %v4245 = vpop.f32.mrb[0].mxu0
      %v4246 = vadd.f32 0.0, %v4245
      %v4247 = vpop.f32.mrb[0].mxu0
      %v4248 = vpop.f32.mrb[0].mxu0
      %v4249 = vadd.f32 0.0, %v4248
      %v4250 = vpop.f32.mrb[0].mxu0
      %4251 = vmatprep.mubr.bf16.mxu0 0
      %4252 = vmatmul.mubr.bf16.gmra.mrb[0].mxu0 %v4124
      %v4253 = vpop.f32.mrb[0].mxu0
      %v4254 = vadd.f32 0.0, %v4253
      %v4255 = vpop.f32.mrb[0].mxu0
      %v4256 = vpop.f32.mrb[0].mxu0
      %v4257 = vadd.f32 0.0, %v4256
      %v4258 = vpop.f32.mrb[0].mxu0
      %4259 = vmatprep.mubr.bf16.mxu0 0
      %4260 = vmatmul.mubr.bf16.gmra.mrb[0].mxu0 %v4127
      %v4261 = vpop.f32.mrb[0].mxu0
      %v4262 = vadd.f32 0.0, %v4261
      %v4263 = vpop.f32.mrb[0].mxu0
      %v4264 = vpop.f32.mrb[0].mxu0
      %v4265 = vadd.f32 0.0, %v4264
      %v4266 = vpop.f32.mrb[0].mxu0
      %4267 = vmatprep.mubr.bf16.mxu0 0
      %4268 = vmatmul.mubr.bf16.gmra.mrb[0].mxu0 %v4130
      %v4269 = vpop.f32.mrb[0].mxu0
      %v4270 = vadd.f32 0.0, %v4269
      %v4271 = vpop.f32.mrb[0].mxu0
      %v4272 = vpop.f32.mrb[0].mxu0
      %v4273 = vadd.f32 0.0, %v4272
      %v4274 = vpop.f32.mrb[0].mxu0
      %4275 = vmatprep.mubr.bf16.mxu0 0
      %4276 = vmatmul.mubr.bf16.gmra.mrb[0].mxu0 %v4133
      %v4277 = vpop.f32.mrb[0].mxu0
      %v4278 = vadd.f32 0.0, %v4277
      %v4279 = vpop.f32.mrb[0].mxu0
      %v4280 = vpop.f32.mrb[0].mxu0
      %v4281 = vadd.f32 0.0, %v4280
      %v4282 = vpop.f32.mrb[0].mxu0
      %4283 = vmatprep.mubr.bf16.mxu0 0
      %4284 = vmatmul.mubr.bf16.gmra.mrb[0].mxu0 %v4136
      %v4285 = vpop.f32.mrb[0].mxu0
      %v4286 = vadd.f32 0.0, %v4285
      %v4287 = vpop.f32.mrb[0].mxu0
      %v4288 = vpop.f32.mrb[0].mxu0
      %v4289 = vadd.f32 0.0, %v4288
      %v4290 = vpop.f32.mrb[0].mxu0
      %4291 = vmatprep.mubr.bf16.mxu0 0
      %4292 = vmatmul.mubr.bf16.gmra.mrb[0].mxu0 %v4139
      %v4293 = vpop.f32.mrb[0].mxu0
      %v4294 = vadd.f32 0.0, %v4293
      %v4295 = vpop.f32.mrb[0].mxu0
      %v4296 = vpop.f32.mrb[0].mxu0
      %v4297 = vadd.f32 0.0, %v4296
      %v4298 = vpop.f32.mrb[0].mxu0
      %4299 = vmatprep.mubr.bf16.mxu0 0
      %4300 = vmatmul.mubr.bf16.gmra.mrb[0].mxu0 %v4142
      %v4301 = vpop.f32.mrb[0].mxu0
      %v4302 = vadd.f32 0.0, %v4301
      %v4303 = vpop.f32.mrb[0].mxu0
      %v4304 = vpop.f32.mrb[0].mxu0
      %v4305 = vadd.f32 0.0, %v4304
      %v4306 = vpop.f32.mrb[0].mxu0
      %4307 = vdwg.mxu0
      %v4308 = vadd.f32 %v3582, %v4182
      %v4309 = vadd.f32 %v3583, %v4185
      %v4310 = vadd.f32 %v3584, %v4190
      %v4311 = vadd.f32 %v3585, %v4193
      %v4312 = vadd.f32 %v3586, %v4198
      %v4313 = vadd.f32 %v3587, %v4201
      %v4314 = vadd.f32 %v3588, %v4206
      %v4315 = vadd.f32 %v3589, %v4209
      %v4316 = vadd.f32 %v3590, %v4214
      %v4317 = vadd.f32 %v3591, %v4217
      %v4318 = vadd.f32 %v3592, %v4222
      %v4319 = vadd.f32 %v3593, %v4225
      %v4320 = vadd.f32 %v3594, %v4230
      %v4321 = vadd.f32 %v3595, %v4233
      %v4322 = vadd.f32 %v3596, %v4238
      %v4323 = vadd.f32 %v3597, %v4241
      %v4324 = vadd.f32 %v3598, %v4246
      %v4325 = vadd.f32 %v3599, %v4249
      %v4326 = vadd.f32 %v3600, %v4254
      %v4327 = vadd.f32 %v3601, %v4257
      %v4328 = vadd.f32 %v3602, %v4262
      %v4329 = vadd.f32 %v3603, %v4265
      %v4330 = vadd.f32 %v3604, %v4270
      %v4331 = vadd.f32 %v3605, %v4273
      %v4332 = vadd.f32 %v3606, %v4278
      %v4333 = vadd.f32 %v3607, %v4281
      %v4334 = vadd.f32 %v3608, %v4286
      %v4335 = vadd.f32 %v3609, %v4289
      %v4336 = vadd.f32 %v3610, %v4294
      %v4337 = vadd.f32 %v3611, %v4297
      %v4338 = vadd.f32 %v3612, %v4302
      %v4339 = vadd.f32 %v3613, %v4305
      %v4340 = vld [vmem:[%s3255] sm:$0xe]
      %v4341 = vld [vmem:[%s3255 + $0xc] sm:$0xe]
      %v4342 = vld [vmem:[%s3255 + $0x18] sm:$0xe]
      %v4343 = vld [vmem:[%s3255 + $0x24] sm:$0xe]
      %v4344 = vld [vmem:[%s3255 + $0x30] sm:$0xe]
      %v4345 = vld [vmem:[%s3255 + $0x3c] sm:$0xe]
      %v4346 = vld [vmem:[%s3255 + $0x48] sm:$0xe]
      %v4347 = vld [vmem:[%s3255 + $0x54] sm:$0xe]
      %v4348 = vld [vmem:[%s3255 + $0x60] sm:$0xe]
      %v4349 = vld [vmem:[%s3255 + $0x6c] sm:$0xe]
      %v4350 = vld [vmem:[%s3255 + $0x78] sm:$0xe]
      %v4351 = vld [vmem:[%s3255 + $0x84] sm:$0xe]
      %v4352 = vld [vmem:[%s3255 + $0x90] sm:$0xe]
      %v4353 = vld [vmem:[%s3255 + $0x9c] sm:$0xe]
      %v4354 = vld [vmem:[%s3255 + $0xa8] sm:$0xe]
      %v4355 = vld [vmem:[%s3255 + $0xb4] sm:$0xe]
      %v4404 = vrot.slane %v4340, 5
      %v4405 = vrot.slane %v4404, 4
      %v4406 = vrot.slane %v3615, 5
      %v4407 = vsel %vm1287, %v4405, %v4406
      %v4408 = vrot.slane %v4406, 4
      %v4409 = vrot.slane %v3616, 5
      %v4410 = vsel %vm1287, %v4408, %v4409
      %v4411 = vrot.slane %v4341, 5
      %v4412 = vrot.slane %v4411, 4
      %v4413 = vrot.slane %v3618, 5
      %v4414 = vsel %vm1287, %v4412, %v4413
      %v4415 = vrot.slane %v4413, 4
      %v4416 = vrot.slane %v3619, 5
      %v4417 = vsel %vm1287, %v4415, %v4416
      %v4418 = vrot.slane %v4342, 5
      %v4419 = vrot.slane %v4418, 4
      %v4420 = vrot.slane %v3621, 5
      %v4421 = vsel %vm1287, %v4419, %v4420
      %v4422 = vrot.slane %v4420, 4
      %v4423 = vrot.slane %v3622, 5
      %v4424 = vsel %vm1287, %v4422, %v4423
      %v4425 = vrot.slane %v4343, 5
      %v4426 = vrot.slane %v4425, 4
      %v4427 = vrot.slane %v3624, 5
      %v4428 = vsel %vm1287, %v4426, %v4427
      %v4429 = vrot.slane %v4427, 4
      %v4430 = vrot.slane %v3625, 5
      %v4431 = vsel %vm1287, %v4429, %v4430
      %v4432 = vrot.slane %v4344, 5
      %v4433 = vrot.slane %v4432, 4
      %v4434 = vrot.slane %v3627, 5
      %v4435 = vsel %vm1287, %v4433, %v4434
      %v4436 = vrot.slane %v4434, 4
      %v4437 = vrot.slane %v3628, 5
      %v4438 = vsel %vm1287, %v4436, %v4437
      %v4439 = vrot.slane %v4345, 5
      %v4440 = vrot.slane %v4439, 4
      %v4441 = vrot.slane %v3630, 5
      %v4442 = vsel %vm1287, %v4440, %v4441
      %v4443 = vrot.slane %v4441, 4
      %v4444 = vrot.slane %v3631, 5
      %v4445 = vsel %vm1287, %v4443, %v4444
      %v4446 = vrot.slane %v4346, 5
      %v4447 = vrot.slane %v4446, 4
      %v4448 = vrot.slane %v3633, 5
      %v4449 = vsel %vm1287, %v4447, %v4448
      %v4450 = vrot.slane %v4448, 4
      %v4451 = vrot.slane %v3634, 5
      %v4452 = vsel %vm1287, %v4450, %v4451
      %v4453 = vrot.slane %v4347, 5
      %v4454 = vrot.slane %v4453, 4
      %v4455 = vrot.slane %v3636, 5
      %v4456 = vsel %vm1287, %v4454, %v4455
      %v4457 = vrot.slane %v4455, 4
      %v4458 = vrot.slane %v3637, 5
      %v4459 = vsel %vm1287, %v4457, %v4458
      %v4460 = vrot.slane %v4348, 5
      %v4461 = vrot.slane %v4460, 4
      %v4462 = vrot.slane %v3639, 5
      %v4463 = vsel %vm1287, %v4461, %v4462
      %v4464 = vrot.slane %v4462, 4
      %v4465 = vrot.slane %v3640, 5
      %v4466 = vsel %vm1287, %v4464, %v4465
      %v4467 = vrot.slane %v4349, 5
      %v4468 = vrot.slane %v4467, 4
      %v4469 = vrot.slane %v3642, 5
      %v4470 = vsel %vm1287, %v4468, %v4469
      %v4471 = vrot.slane %v4469, 4
      %v4472 = vrot.slane %v3643, 5
      %v4473 = vsel %vm1287, %v4471, %v4472
      %v4474 = vrot.slane %v4350, 5
      %v4475 = vrot.slane %v4474, 4
      %v4476 = vrot.slane %v3645, 5
      %v4477 = vsel %vm1287, %v4475, %v4476
      %v4478 = vrot.slane %v4476, 4
      %v4479 = vrot.slane %v3646, 5
      %v4480 = vsel %vm1287, %v4478, %v4479
      %v4481 = vrot.slane %v4351, 5
      %v4482 = vrot.slane %v4481, 4
      %v4483 = vrot.slane %v3648, 5
      %v4484 = vsel %vm1287, %v4482, %v4483
      %v4485 = vrot.slane %v4483, 4
      %v4486 = vrot.slane %v3649, 5
      %v4487 = vsel %vm1287, %v4485, %v4486
      %v4488 = vrot.slane %v4352, 5
      %v4489 = vrot.slane %v4488, 4
      %v4490 = vrot.slane %v3651, 5
      %v4491 = vsel %vm1287, %v4489, %v4490
      %v4492 = vrot.slane %v4490, 4
      %v4493 = vrot.slane %v3652, 5
      %v4494 = vsel %vm1287, %v4492, %v4493
      %v4495 = vrot.slane %v4353, 5
      %v4496 = vrot.slane %v4495, 4
      %v4497 = vrot.slane %v3654, 5
      %v4498 = vsel %vm1287, %v4496, %v4497
      %v4499 = vrot.slane %v4497, 4
      %v4500 = vrot.slane %v3655, 5
      %v4501 = vsel %vm1287, %v4499, %v4500
      %v4502 = vrot.slane %v4354, 5
      %v4503 = vrot.slane %v4502, 4
      %v4504 = vrot.slane %v3657, 5
      %v4505 = vsel %vm1287, %v4503, %v4504
      %v4506 = vrot.slane %v4504, 4
      %v4507 = vrot.slane %v3658, 5
      %v4508 = vsel %vm1287, %v4506, %v4507
      %v4509 = vrot.slane %v4355, 5
      %v4510 = vrot.slane %v4509, 4
      %v4511 = vrot.slane %v3660, 5
      %v4512 = vsel %vm1287, %v4510, %v4511
      %v4513 = vrot.slane %v4511, 4
      %v4514 = vrot.slane %v3661, 5
      %v4515 = vsel %vm1287, %v4513, %v4514
      %s4516 = scalar_lea.vmem %s223, 16
      %v4517 = vld [vmem:[%s4516] sm:$0x3]
      %v4518 = vunpack.c.l.b16 %v4407
      %v4519 = vunpack.c.l.b16 %v4410
      %v4520 = vunpack.c.l.b16 %v4414
      %v4521 = vunpack.c.l.b16 %v4417
      %v4522 = vunpack.c.l.b16 %v4421
      %v4523 = vunpack.c.l.b16 %v4424
      %v4524 = vunpack.c.l.b16 %v4428
      %v4525 = vunpack.c.l.b16 %v4431
      %v4526 = vunpack.c.l.b16 %v4435
      %v4527 = vunpack.c.l.b16 %v4438
      %v4528 = vunpack.c.l.b16 %v4442
      %v4529 = vunpack.c.l.b16 %v4445
      %v4530 = vunpack.c.l.b16 %v4449
      %v4531 = vunpack.c.l.b16 %v4452
      %v4532 = vunpack.c.l.b16 %v4456
      %v4533 = vunpack.c.l.b16 %v4459
      %v4534 = vunpack.c.l.b16 %v4463
      %v4535 = vunpack.c.l.b16 %v4466
      %v4536 = vunpack.c.l.b16 %v4470
      %v4537 = vunpack.c.l.b16 %v4473
      %v4538 = vunpack.c.l.b16 %v4477
      %v4539 = vunpack.c.l.b16 %v4480
      %v4540 = vunpack.c.l.b16 %v4484
      %v4541 = vunpack.c.l.b16 %v4487
      %v4542 = vunpack.c.l.b16 %v4491
      %v4543 = vunpack.c.l.b16 %v4494
      %v4544 = vunpack.c.l.b16 %v4498
      %v4545 = vunpack.c.l.b16 %v4501
      %v4546 = vunpack.c.l.b16 %v4505
      %v4547 = vunpack.c.l.b16 %v4508
      %v4548 = vunpack.c.l.b16 %v4512
      %v4549 = vunpack.c.l.b16 %v4515
      %v4550 = vpack.c.b16 %v4519, %v4518
      %v4551 = vpack.c.b16 %v4521, %v4520
      %v4552 = vpack.c.b16 %v4523, %v4522
      %v4553 = vpack.c.b16 %v4525, %v4524
      %v4554 = vpack.c.b16 %v4527, %v4526
      %v4555 = vpack.c.b16 %v4529, %v4528
      %v4556 = vpack.c.b16 %v4531, %v4530
      %v4557 = vpack.c.b16 %v4533, %v4532
      %v4558 = vpack.c.b16 %v4535, %v4534
      %v4559 = vpack.c.b16 %v4537, %v4536
      %v4560 = vpack.c.b16 %v4539, %v4538
      %v4561 = vpack.c.b16 %v4541, %v4540
      %v4562 = vpack.c.b16 %v4543, %v4542
      %v4563 = vpack.c.b16 %v4545, %v4544
      %v4564 = vpack.c.b16 %v4547, %v4546
      %v4565 = vpack.c.b16 %v4549, %v4548
      %v4567 = vsel %vm731, %v4550, 0
      %v4570 = vsel %vm731, %v4551, 0
      %v4573 = vsel %vm731, %v4552, 0
      %v4576 = vsel %vm731, %v4553, 0
      %v4579 = vsel %vm731, %v4554, 0
      %v4582 = vsel %vm731, %v4555, 0
      %v4585 = vsel %vm731, %v4556, 0
      %v4588 = vsel %vm731, %v4557, 0
      %v4591 = vsel %vm731, %v4558, 0
      %v4594 = vsel %vm731, %v4559, 0
      %v4597 = vsel %vm731, %v4560, 0
      %v4600 = vsel %vm731, %v4561, 0
      %v4603 = vsel %vm731, %v4562, 0
      %v4606 = vsel %vm731, %v4563, 0
      %v4609 = vsel %vm731, %v4564, 0
      %v4612 = vsel %vm731, %v4565, 0
      %v4615 = vsel %vm780, %v4517, 0
      %4617 = vmatprep.subr.bf16.mxu0 0
      %4618 = vmatpush1.bf16.msra.mxu0 %v4615
      %4619 = vmatprep.subr.bf16.mxu0 0
      %4620 = vmatpush1.bf16.msra.mxu0 0
      %4621 = vmatprep.subr.bf16.mxu0 0
      %4622 = vmatpush1.bf16.msra.mxu0 0
      %4623 = vmatprep.subr.bf16.mxu0 0
      %4624 = vmatpush1.bf16.msra.mxu0 0
      %4625 = vmatprep.subr.bf16.mxu0 0
      %4626 = vmatpush1.bf16.msra.mxu0 0
      %4627 = vmatprep.subr.bf16.mxu0 0
      %4628 = vmatpush1.bf16.msra.mxu0 0
      %4629 = vmatprep.subr.bf16.mxu0 0
      %4630 = vmatpush1.bf16.msra.mxu0 0
      %4631 = vmatprep.subr.bf16.mxu0 0
      %4632 = vmatpush1.bf16.msra.mxu0 0
      %4633 = vmatprep.subr.bf16.mxu0 0
      %4634 = vmatpush1.bf16.msra.mxu0 0
      %4635 = vmatprep.subr.bf16.mxu0 0
      %4636 = vmatpush1.bf16.msra.mxu0 0
      %4637 = vmatprep.subr.bf16.mxu0 0
      %4638 = vmatpush1.bf16.msra.mxu0 0
      %4639 = vmatprep.subr.bf16.mxu0 0
      %4640 = vmatpush1.bf16.msra.mxu0 0
      %4641 = vmatprep.subr.bf16.mxu0 0
      %4642 = vmatpush1.bf16.msra.mxu0 0
      %4643 = vmatprep.subr.bf16.mxu0 0
      %4644 = vmatpush1.bf16.msra.mxu0 0
      %4645 = vmatprep.subr.bf16.mxu0 0
      %4646 = vmatpush1.bf16.msra.mxu0 0
      %4647 = vmatprep.subr.bf16.mxu0 0
      %4648 = vmatpush1.bf16.msra.mxu0 0
      %4649 = vmatprep.mubr.bf16.mxu0 0
      %4650 = vmatmul.mubr.bf16.gmra.mrb[0].mxu0 %v4567
      %v4651 = vpop.f32.mrb[0].mxu0
      %v4652 = vadd.f32 0.0, %v4651
      %v4653 = vpop.f32.mrb[0].mxu0
      %v4654 = vpop.f32.mrb[0].mxu0
      %v4655 = vadd.f32 0.0, %v4654
      %v4656 = vpop.f32.mrb[0].mxu0
      %4657 = vmatprep.mubr.bf16.mxu0 0
      %4658 = vmatmul.mubr.bf16.gmra.mrb[0].mxu0 %v4570
      %v4659 = vpop.f32.mrb[0].mxu0
      %v4660 = vadd.f32 0.0, %v4659
      %v4661 = vpop.f32.mrb[0].mxu0
      %v4662 = vpop.f32.mrb[0].mxu0
      %v4663 = vadd.f32 0.0, %v4662
      %v4664 = vpop.f32.mrb[0].mxu0
      %4665 = vmatprep.mubr.bf16.mxu0 0
      %4666 = vmatmul.mubr.bf16.gmra.mrb[0].mxu0 %v4573
      %v4667 = vpop.f32.mrb[0].mxu0
      %v4668 = vadd.f32 0.0, %v4667
      %v4669 = vpop.f32.mrb[0].mxu0
      %v4670 = vpop.f32.mrb[0].mxu0
      %v4671 = vadd.f32 0.0, %v4670
      %v4672 = vpop.f32.mrb[0].mxu0
      %4673 = vmatprep.mubr.bf16.mxu0 0
      %4674 = vmatmul.mubr.bf16.gmra.mrb[0].mxu0 %v4576
      %v4675 = vpop.f32.mrb[0].mxu0
      %v4676 = vadd.f32 0.0, %v4675
      %v4677 = vpop.f32.mrb[0].mxu0
      %v4678 = vpop.f32.mrb[0].mxu0
      %v4679 = vadd.f32 0.0, %v4678
      %v4680 = vpop.f32.mrb[0].mxu0
      %4681 = vmatprep.mubr.bf16.mxu0 0
      %4682 = vmatmul.mubr.bf16.gmra.mrb[0].mxu0 %v4579
      %v4683 = vpop.f32.mrb[0].mxu0
      %v4684 = vadd.f32 0.0, %v4683
      %v4685 = vpop.f32.mrb[0].mxu0
      %v4686 = vpop.f32.mrb[0].mxu0
      %v4687 = vadd.f32 0.0, %v4686
      %v4688 = vpop.f32.mrb[0].mxu0
      %4689 = vmatprep.mubr.bf16.mxu0 0
      %4690 = vmatmul.mubr.bf16.gmra.mrb[0].mxu0 %v4582
      %v4691 = vpop.f32.mrb[0].mxu0
      %v4692 = vadd.f32 0.0, %v4691
      %v4693 = vpop.f32.mrb[0].mxu0
      %v4694 = vpop.f32.mrb[0].mxu0
      %v4695 = vadd.f32 0.0, %v4694
      %v4696 = vpop.f32.mrb[0].mxu0
      %4697 = vmatprep.mubr.bf16.mxu0 0
      %4698 = vmatmul.mubr.bf16.gmra.mrb[0].mxu0 %v4585
      %v4699 = vpop.f32.mrb[0].mxu0
      %v4700 = vadd.f32 0.0, %v4699
      %v4701 = vpop.f32.mrb[0].mxu0
      %v4702 = vpop.f32.mrb[0].mxu0
      %v4703 = vadd.f32 0.0, %v4702
      %v4704 = vpop.f32.mrb[0].mxu0
      %4705 = vmatprep.mubr.bf16.mxu0 0
      %4706 = vmatmul.mubr.bf16.gmra.mrb[0].mxu0 %v4588
      %v4707 = vpop.f32.mrb[0].mxu0
      %v4708 = vadd.f32 0.0, %v4707
      %v4709 = vpop.f32.mrb[0].mxu0
      %v4710 = vpop.f32.mrb[0].mxu0
      %v4711 = vadd.f32 0.0, %v4710
      %v4712 = vpop.f32.mrb[0].mxu0
      %4713 = vmatprep.mubr.bf16.mxu0 0
      %4714 = vmatmul.mubr.bf16.gmra.mrb[0].mxu0 %v4591
      %v4715 = vpop.f32.mrb[0].mxu0
      %v4716 = vadd.f32 0.0, %v4715
      %v4717 = vpop.f32.mrb[0].mxu0
      %v4718 = vpop.f32.mrb[0].mxu0
      %v4719 = vadd.f32 0.0, %v4718
      %v4720 = vpop.f32.mrb[0].mxu0
      %4721 = vmatprep.mubr.bf16.mxu0 0
      %4722 = vmatmul.mubr.bf16.gmra.mrb[0].mxu0 %v4594
      %v4723 = vpop.f32.mrb[0].mxu0
      %v4724 = vadd.f32 0.0, %v4723
      %v4725 = vpop.f32.mrb[0].mxu0
      %v4726 = vpop.f32.mrb[0].mxu0
      %v4727 = vadd.f32 0.0, %v4726
      %v4728 = vpop.f32.mrb[0].mxu0
      %4729 = vmatprep.mubr.bf16.mxu0 0
      %4730 = vmatmul.mubr.bf16.gmra.mrb[0].mxu0 %v4597
      %v4731 = vpop.f32.mrb[0].mxu0
      %v4732 = vadd.f32 0.0, %v4731
      %v4733 = vpop.f32.mrb[0].mxu0
      %v4734 = vpop.f32.mrb[0].mxu0
      %v4735 = vadd.f32 0.0, %v4734
      %v4736 = vpop.f32.mrb[0].mxu0
      %4737 = vmatprep.mubr.bf16.mxu0 0
      %4738 = vmatmul.mubr.bf16.gmra.mrb[0].mxu0 %v4600
      %v4739 = vpop.f32.mrb[0].mxu0
      %v4740 = vadd.f32 0.0, %v4739
      %v4741 = vpop.f32.mrb[0].mxu0
      %v4742 = vpop.f32.mrb[0].mxu0
      %v4743 = vadd.f32 0.0, %v4742
      %v4744 = vpop.f32.mrb[0].mxu0
      %4745 = vmatprep.mubr.bf16.mxu0 0
      %4746 = vmatmul.mubr.bf16.gmra.mrb[0].mxu0 %v4603
      %v4747 = vpop.f32.mrb[0].mxu0
      %v4748 = vadd.f32 0.0, %v4747
      %v4749 = vpop.f32.mrb[0].mxu0
      %v4750 = vpop.f32.mrb[0].mxu0
      %v4751 = vadd.f32 0.0, %v4750
      %v4752 = vpop.f32.mrb[0].mxu0
      %4753 = vmatprep.mubr.bf16.mxu0 0
      %4754 = vmatmul.mubr.bf16.gmra.mrb[0].mxu0 %v4606
      %v4755 = vpop.f32.mrb[0].mxu0
      %v4756 = vadd.f32 0.0, %v4755
      %v4757 = vpop.f32.mrb[0].mxu0
      %v4758 = vpop.f32.mrb[0].mxu0
      %v4759 = vadd.f32 0.0, %v4758
      %v4760 = vpop.f32.mrb[0].mxu0
      %4761 = vmatprep.mubr.bf16.mxu0 0
      %4762 = vmatmul.mubr.bf16.gmra.mrb[0].mxu0 %v4609
      %v4763 = vpop.f32.mrb[0].mxu0
      %v4764 = vadd.f32 0.0, %v4763
      %v4765 = vpop.f32.mrb[0].mxu0
      %v4766 = vpop.f32.mrb[0].mxu0
      %v4767 = vadd.f32 0.0, %v4766
      %v4768 = vpop.f32.mrb[0].mxu0
      %4769 = vmatprep.mubr.bf16.mxu0 0
      %4770 = vmatmul.mubr.bf16.gmra.mrb[0].mxu0 %v4612
      %v4771 = vpop.f32.mrb[0].mxu0
      %v4772 = vadd.f32 0.0, %v4771
      %v4773 = vpop.f32.mrb[0].mxu0
      %v4774 = vpop.f32.mrb[0].mxu0
      %v4775 = vadd.f32 0.0, %v4774
      %v4776 = vpop.f32.mrb[0].mxu0
      %4777 = vdwg.mxu0
      %v4778 = vadd.f32 %v4308, %v4652
      %v4779 = vadd.f32 %v4309, %v4655
      %v4780 = vadd.f32 %v4310, %v4660
      %v4781 = vadd.f32 %v4311, %v4663
      %v4782 = vadd.f32 %v4312, %v4668
      %v4783 = vadd.f32 %v4313, %v4671
      %v4784 = vadd.f32 %v4314, %v4676
      %v4785 = vadd.f32 %v4315, %v4679
      %v4786 = vadd.f32 %v4316, %v4684
      %v4787 = vadd.f32 %v4317, %v4687
      %v4788 = vadd.f32 %v4318, %v4692
      %v4789 = vadd.f32 %v4319, %v4695
      %v4790 = vadd.f32 %v4320, %v4700
      %v4791 = vadd.f32 %v4321, %v4703
      %v4792 = vadd.f32 %v4322, %v4708
      %v4793 = vadd.f32 %v4323, %v4711
      %v4794 = vadd.f32 %v4324, %v4716
      %v4795 = vadd.f32 %v4325, %v4719
      %v4796 = vadd.f32 %v4326, %v4724
      %v4797 = vadd.f32 %v4327, %v4727
      %v4798 = vadd.f32 %v4328, %v4732
      %v4799 = vadd.f32 %v4329, %v4735
      %v4800 = vadd.f32 %v4330, %v4740
      %v4801 = vadd.f32 %v4331, %v4743
      %v4802 = vadd.f32 %v4332, %v4748
      %v4803 = vadd.f32 %v4333, %v4751
      %v4804 = vadd.f32 %v4334, %v4756
      %v4805 = vadd.f32 %v4335, %v4759
      %v4806 = vadd.f32 %v4336, %v4764
      %v4807 = vadd.f32 %v4337, %v4767
      %v4808 = vadd.f32 %v4338, %v4772
      %v4809 = vadd.f32 %v4339, %v4775
      %v4810 = vld [vmem:[%s226] sm:$0x1]
      %v4812 = vlaneseq
      %v4813 = vshrl.u32 %v4812, 7
      %v4814 = vsub.s32 0, %v4813
      %v4815 = vrot.slane %v4810, %v4814
      %v4817 = vadd.f32 %v4778, %v4815
      %v4818 = vadd.f32 %v4779, %v4815
      %v4819 = vadd.f32 %v4780, %v4815
      %v4820 = vadd.f32 %v4781, %v4815
      %v4821 = vadd.f32 %v4782, %v4815
      %v4822 = vadd.f32 %v4783, %v4815
      %v4823 = vadd.f32 %v4784, %v4815
      %v4824 = vadd.f32 %v4785, %v4815
      %v4825 = vadd.f32 %v4786, %v4815
      %v4826 = vadd.f32 %v4787, %v4815
      %v4827 = vadd.f32 %v4788, %v4815
      %v4828 = vadd.f32 %v4789, %v4815
      %v4829 = vadd.f32 %v4790, %v4815
      %v4830 = vadd.f32 %v4791, %v4815
      %v4831 = vadd.f32 %v4792, %v4815
      %v4832 = vadd.f32 %v4793, %v4815
      %v4833 = vadd.f32 %v4794, %v4815
      %v4834 = vadd.f32 %v4795, %v4815
      %v4835 = vadd.f32 %v4796, %v4815
      %v4836 = vadd.f32 %v4797, %v4815
      %v4837 = vadd.f32 %v4798, %v4815
      %v4838 = vadd.f32 %v4799, %v4815
      %v4839 = vadd.f32 %v4800, %v4815
      %v4840 = vadd.f32 %v4801, %v4815
      %v4841 = vadd.f32 %v4802, %v4815
      %v4842 = vadd.f32 %v4803, %v4815
      %v4843 = vadd.f32 %v4804, %v4815
      %v4844 = vadd.f32 %v4805, %v4815
      %v4845 = vadd.f32 %v4806, %v4815
      %v4846 = vadd.f32 %v4807, %v4815
      %v4847 = vadd.f32 %v4808, %v4815
      %v4848 = vadd.f32 %v4809, %v4815
      %v4849 = vpack.c.bf16 %v4818, %v4817
      %v4850 = vpack.c.bf16 %v4820, %v4819
      %v4851 = vpack.c.bf16 %v4822, %v4821
      %v4852 = vpack.c.bf16 %v4824, %v4823
      %v4853 = vpack.c.bf16 %v4826, %v4825
      %v4854 = vpack.c.bf16 %v4828, %v4827
      %v4855 = vpack.c.bf16 %v4830, %v4829
      %v4856 = vpack.c.bf16 %v4832, %v4831
      %v4857 = vpack.c.bf16 %v4834, %v4833
      %v4858 = vpack.c.bf16 %v4836, %v4835
      %v4859 = vpack.c.bf16 %v4838, %v4837
      %v4860 = vpack.c.bf16 %v4840, %v4839
      %v4861 = vpack.c.bf16 %v4842, %v4841
      %v4862 = vpack.c.bf16 %v4844, %v4843
      %v4863 = vpack.c.bf16 %v4846, %v4845
      %v4864 = vpack.c.bf16 %v4848, %v4847
      %v4881 = vunpack.c.l.b16 %v4849
      %v4882 = vunpack.c.h.b16 %v4849
      %v4883 = vunpack.c.l.b16 %v4850
      %v4884 = vunpack.c.h.b16 %v4850
      %v4885 = vunpack.c.l.b16 %v4851
      %v4886 = vunpack.c.h.b16 %v4851
      %v4887 = vunpack.c.l.b16 %v4852
      %v4888 = vunpack.c.h.b16 %v4852
      %v4889 = vunpack.c.l.b16 %v4853
      %v4890 = vunpack.c.h.b16 %v4853
      %v4891 = vunpack.c.l.b16 %v4854
      %v4892 = vunpack.c.h.b16 %v4854
      %v4893 = vunpack.c.l.b16 %v4855
      %v4894 = vunpack.c.h.b16 %v4855
      %v4895 = vunpack.c.l.b16 %v4856
      %v4896 = vunpack.c.h.b16 %v4856
      %v4897 = vunpack.c.l.b16 %v4857
      %v4898 = vunpack.c.h.b16 %v4857
      %v4899 = vunpack.c.l.b16 %v4858
      %v4900 = vunpack.c.h.b16 %v4858
      %v4901 = vunpack.c.l.b16 %v4859
      %v4902 = vunpack.c.h.b16 %v4859
      %v4903 = vunpack.c.l.b16 %v4860
      %v4904 = vunpack.c.h.b16 %v4860
      %v4905 = vunpack.c.l.b16 %v4861
      %v4906 = vunpack.c.h.b16 %v4861
      %v4907 = vunpack.c.l.b16 %v4862
      %v4908 = vunpack.c.h.b16 %v4862
      %v4909 = vunpack.c.l.b16 %v4863
      %v4910 = vunpack.c.h.b16 %v4863
      %v4911 = vunpack.c.l.b16 %v4864
      %v4912 = vunpack.c.h.b16 %v4864
      %v4913 = vpack.c.b16 %v4881, %v4881
      %v4914 = vpack.c.b16 %v4882, %v4882
      %v4915 = vpack.c.b16 %v4883, %v4883
      %v4916 = vpack.c.b16 %v4884, %v4884
      %v4917 = vpack.c.b16 %v4885, %v4885
      %v4918 = vpack.c.b16 %v4886, %v4886
      %v4919 = vpack.c.b16 %v4887, %v4887
      %v4920 = vpack.c.b16 %v4888, %v4888
      %v4921 = vpack.c.b16 %v4889, %v4889
      %v4922 = vpack.c.b16 %v4890, %v4890
      %v4923 = vpack.c.b16 %v4891, %v4891
      %v4924 = vpack.c.b16 %v4892, %v4892
      %v4925 = vpack.c.b16 %v4893, %v4893
      %v4926 = vpack.c.b16 %v4894, %v4894
      %v4927 = vpack.c.b16 %v4895, %v4895
      %v4928 = vpack.c.b16 %v4896, %v4896
      %v4929 = vpack.c.b16 %v4897, %v4897
      %v4930 = vpack.c.b16 %v4898, %v4898
      %v4931 = vpack.c.b16 %v4899, %v4899
      %v4932 = vpack.c.b16 %v4900, %v4900
      %v4933 = vpack.c.b16 %v4901, %v4901
      %v4934 = vpack.c.b16 %v4902, %v4902
      %v4935 = vpack.c.b16 %v4903, %v4903
      %v4936 = vpack.c.b16 %v4904, %v4904
      %v4937 = vpack.c.b16 %v4905, %v4905
      %v4938 = vpack.c.b16 %v4906, %v4906
      %v4939 = vpack.c.b16 %v4907, %v4907
      %v4940 = vpack.c.b16 %v4908, %v4908
      %v4941 = vpack.c.b16 %v4909, %v4909
      %v4942 = vpack.c.b16 %v4910, %v4910
      %v4943 = vpack.c.b16 %v4911, %v4911
      %v4944 = vpack.c.b16 %v4912, %v4912
      %4977 = vst [vmem:[%s238] sm:$0xf] %v4913
      %4978 = vst [vmem:[%s238 + $0x4] sm:$0xf] %v4914
      %4979 = vst [vmem:[%s238 + $0x8] sm:$0xf] %v4915
      %4980 = vst [vmem:[%s238 + $0xc] sm:$0xf] %v4916
      %4981 = vst [vmem:[%s238 + $0x10] sm:$0xf] %v4917
      %4982 = vst [vmem:[%s238 + $0x14] sm:$0xf] %v4918
      %4983 = vst [vmem:[%s238 + $0x18] sm:$0xf] %v4919
      %4984 = vst [vmem:[%s238 + $0x1c] sm:$0xf] %v4920
      %4985 = vst [vmem:[%s238 + $0x20] sm:$0xf] %v4921
      %4986 = vst [vmem:[%s238 + $0x24] sm:$0xf] %v4922
      %4987 = vst [vmem:[%s238 + $0x28] sm:$0xf] %v4923
      %4988 = vst [vmem:[%s238 + $0x2c] sm:$0xf] %v4924
      %4989 = vst [vmem:[%s238 + $0x30] sm:$0xf] %v4925
      %4990 = vst [vmem:[%s238 + $0x34] sm:$0xf] %v4926
      %4991 = vst [vmem:[%s238 + $0x38] sm:$0xf] %v4927
      %4992 = vst [vmem:[%s238 + $0x3c] sm:$0xf] %v4928
      %4993 = vst [vmem:[%s238 + $0x40] sm:$0xf] %v4929
      %4994 = vst [vmem:[%s238 + $0x44] sm:$0xf] %v4930
      %4995 = vst [vmem:[%s238 + $0x48] sm:$0xf] %v4931
      %4996 = vst [vmem:[%s238 + $0x4c] sm:$0xf] %v4932
      %4997 = vst [vmem:[%s238 + $0x50] sm:$0xf] %v4933
      %4998 = vst [vmem:[%s238 + $0x54] sm:$0xf] %v4934
      %4999 = vst [vmem:[%s238 + $0x58] sm:$0xf] %v4935
      %5000 = vst [vmem:[%s238 + $0x5c] sm:$0xf] %v4936
      %5001 = vst [vmem:[%s238 + $0x60] sm:$0xf] %v4937
      %5002 = vst [vmem:[%s238 + $0x64] sm:$0xf] %v4938
      %5003 = vst [vmem:[%s238 + $0x68] sm:$0xf] %v4939
      %5004 = vst [vmem:[%s238 + $0x6c] sm:$0xf] %v4940
      %5005 = vst [vmem:[%s238 + $0x70] sm:$0xf] %v4941
      %5006 = vst [vmem:[%s238 + $0x74] sm:$0xf] %v4942
      %5007 = vst [vmem:[%s238 + $0x78] sm:$0xf] %v4943
      %5008 = vst [vmem:[%s238 + $0x7c] sm:$0xf] %v4944
      %s5009 = smul.u32 32, %s20
      %p5010 = scmp.lt.s32.totalorder %s19, 1
      %s5011 = scalar_select %p5010, %s19, 1
      %p5012 = scmp.lt.s32.totalorder %s5009, 31
      %s5013 = scalar_select %p5012, %s5009, 31
      %p5014 = scmp.lt.s32.totalorder %s21, 0
      %s5015 = scalar_select %p5014, %s21, 0
      %s5016 = sadd.s32 %s5015, %s5013
      %s5017 = smul.addr %s5011, 32
      %s5018 = sadd.s32 %s5016, %s5017
      %s5019 = smul.addr %s5018, 4
      %s5020 = scalar_lea.vmem %s3, %s5019
      // Predicated region
      $region33: #{upsample_forward.1} parent=31 // pred_check
        %p5021 = pneg %p133
      $region34: #{upsample_forward.1} parent=31 // pred_check_branch
        %5023 = sbr.rel (%p5021) target = $region36
      $region35: #{upsample_forward.1} parent=31 // pred_region
        %s5024 = smul.u32 32, %s20
      $region36: #{upsample_forward.1} parent=31 // pred_fallthru
        _
    $region32: #{upsample_forward.1} parent=5 // pred_fallthru
      _
    %p5025 = scmp.le.s32.totalorder 2, %s9
    // Predicated region
    $region37: #{upsample_forward.1} parent=5 // pred_check
      %p5026 = pneg %p5025
    $region38: #{upsample_forward.1} parent=5 // pred_check_branch
      %5028 = sbr.rel (%p5026) target = $region40
    $region39: #{upsample_forward.1} parent=5 // pred_region
      %s5029 = ssub.s32 %s9, 2
      // Predicated region
      $region41: #{upsample_forward.1} parent=39 // pred_check
        %p5030 = pneg %p139
      $region42: #{upsample_forward.1} parent=39 // pred_check_branch
        %5032 = sbr.rel (%p5030) target = $region44
      $region43: #{upsample_forward.1} parent=39 // pred_region
        %s5033 = smul.u32 32, %s23
        %p5034 = scmp.lt.s32.totalorder %s22, 1
        %s5035 = scalar_select %p5034, %s22, 1
        %p5036 = scmp.lt.s32.totalorder %s5033, 31
        %s5037 = scalar_select %p5036, %s5033, 31
        %p5038 = scmp.lt.s32.totalorder %s24, 0
        %s5039 = scalar_select %p5038, %s24, 0
        %s5040 = sadd.s32 %s5039, %s5037
        %s5041 = smul.addr %s5035, 32
        %s5042 = sadd.s32 %s5040, %s5041
        %s5043 = smul.addr %s5042, 4
        %s5044 = scalar_lea.vmem %s3, %s5043
      $region44: #{upsample_forward.1} parent=39 // pred_fallthru
        _
    $region40: #{upsample_forward.1} parent=5 // pred_fallthru
      _
  $region6: #{upsample_forward.1} parent=0 // loop_footer
    %s13 = sadd.s32 1, %s9
  $region7: #{upsample_forward.1} parent=0 // loop_footer_branch
    %8 = sbr.rel target = $region3
  $region8: #{upsample_forward.1} parent=0 // loop_exit
    _

</llo_original>
